<compile_context>
chip_gen: v7x
topology: tpu7x:2x2x1
jax: 0.10.0
libtpu: 0.0.40
codegen_flags: <defaults>
</compile_context>

<pallas_src>
import jax
import jax.numpy as jnp
from jax import lax
from jax.experimental import pallas as pl
from jax.experimental.pallas import tpu as pltpu

LANE = 128


# ----------------------------- kernel helpers --------------------------------

def _dw3x3(load_rows, w9, n_cols, col_stride=1):
    """3x3 depthwise conv.

    load_rows(dy) returns one aligned row-block (rows, width, C): 3 loads per
    stage instead of 9; the dx shifts are value-level slices (register shifts,
    not extra VMEM loads); the accumulator is seeded with the first tap.
    """
    acc = None
    span = (n_cols - 1) * col_stride + 1
    for dy in range(3):
        rows = load_rows(dy)
        for dx in range(3):
            t = 3 * dy + dx
            if col_stride == 1:
                patch = rows[:, dx:dx + n_cols, :]
            else:
                patch = rows[:, dx:dx + span:col_stride, :]
            term = patch * w9[t:t + 1]
            acc = term if acc is None else acc + term
    return acc


def _resblock_body(x_ref, wdw1_ref, wpw1_ref, sc1_ref, bi1_ref,
                   wdw2_ref, wpw2_ref, sc2_ref, bi2_ref,
                   out_ref, y1pad_sc, *, stride, identity_fn):
    TH, Wo, cq = out_ref.shape[1], out_ref.shape[2], out_ref.shape[3]
    r = pl.program_id(1)
    last = pl.num_programs(1) - 1

    # ---- stage 1: depthwise 3x3 (stride s) read straight from the halo'd
    #      input window block; produces the TH output rows plus the 1-row halo
    #      above/below that stage 2 needs (halo recompute). -------------------
    def x_rows(dy):
        if stride == 1:
            return x_ref[0, 0, pl.ds(dy, TH + 2), :, :]
        return x_ref[0, 0, pl.ds(dy, TH + 2, stride), :, :]

    acc1 = _dw3x3(x_rows, wdw1_ref[...], Wo, stride)       # (TH+2, Wo, cin_p) f32
    cin_p = acc1.shape[-1]
    y1 = jnp.dot(acc1.reshape((TH + 2) * Wo, cin_p).astype(jnp.bfloat16),
                 wpw1_ref[...], preferred_element_type=jnp.float32)
    y1 = jnp.maximum(y1 * sc1_ref[...] + bi1_ref[...], 0.0)

    # ---- stash y1 (+halo rows) in the bf16 scratch; rebuild conv2's zero
    #      padding only on the thin border (no full-scratch zeroing). ---------
    y1pad_sc[:, pl.ds(1, Wo), :] = y1.reshape(TH + 2, Wo, cq).astype(y1pad_sc.dtype)
    zcol = jnp.zeros((TH + 2, 1, cq), y1pad_sc.dtype)
    y1pad_sc[:, pl.ds(0, 1), :] = zcol
    y1pad_sc[:, pl.ds(Wo + 1, 1), :] = zcol

    zrow = jnp.zeros((1, Wo + 2, cq), y1pad_sc.dtype)

    @pl.when(r == 0)           # top image edge: the y1 halo row is conv2 padding
    def _():
        y1pad_sc[pl.ds(0, 1), :, :] = zrow

    @pl.when(r == last)        # bottom image edge
    def _():
        y1pad_sc[pl.ds(TH + 1, 1), :, :] = zrow

    # ---- stage 2: depthwise 3x3 (stride 1) -> pointwise (bf16 MXU) -> BN ----
    acc2 = _dw3x3(lambda dy: y1pad_sc[pl.ds(dy, TH), :, :].astype(jnp.float32),
                  wdw2_ref[...], Wo, 1)                     # (TH, Wo, cq) f32
    y2 = jnp.dot(acc2.reshape(TH * Wo, cq).astype(jnp.bfloat16),
                 wpw2_ref[...], preferred_element_type=jnp.float32)
    y2 = y2 * sc2_ref[...] + bi2_ref[...]

    # ---- residual add + ReLU -------------------------------------------------
    out = jnp.maximum(y2 + identity_fn(x_ref), 0.0)
    out_ref[0] = out.reshape(TH, Wo, cq).astype(out_ref.dtype)


def _fused_kernel(x_ref, wdw1, wpw1, sc1, bi1, wdw2, wpw2, sc2, bi2,
                  out_ref, y1pad_sc):
    TH, Wo, cq = out_ref.shape[1], out_ref.shape[2], out_ref.shape[3]

    def identity_fn(xr):
        # stride-1 residual: this tile's x rows/cols sit at window offset (+2, +1)
        return xr[0, 0, pl.ds(2, TH), pl.ds(1, Wo), :].reshape(TH * Wo, cq)

    _resblock_body(x_ref, wdw1, wpw1, sc1, bi1, wdw2, wpw2, sc2, bi2,
                   out_ref, y1pad_sc, stride=1, identity_fn=identity_fn)


def _fused_ds_kernel(x_ref, wdw1, wpw1, sc1, bi1, wdw2, wpw2, sc2, bi2,
                     wds, scd, bid, out_ref, y1pad_sc):
    TH, Wo, cq = out_ref.shape[1], out_ref.shape[2], out_ref.shape[3]
    cin_p = x_ref.shape[-1]

    def identity_fn(xr):
        # 1x1 stride-2 conv + BN: only the needed rows/cols are read (strided ds).
        xs = xr[0, 0, pl.ds(3, TH, 2), pl.ds(1, Wo, 2), :]
        xs = xs.reshape(TH * Wo, cin_p).astype(jnp.bfloat16)
        yd = jnp.dot(xs, wds[...], preferred_element_type=jnp.float32)
        return yd * scd[...] + bid[...]

    _resblock_body(x_ref, wdw1, wpw1, sc1, bi1, wdw2, wpw2, sc2, bi2,
                   out_ref, y1pad_sc, stride=2, identity_fn=identity_fn)


# ------------------------------ pallas_call wrapper ---------------------------

def _vmem_capacity_bytes(default=64 << 20):
    try:
        return int(getattr(pltpu.get_tpu_info(), "vmem_capacity_bytes", default))
    except Exception:
        return default


def _call_fused(xwin, weights, ds, *, TH, Wo, cq, out_dtype=jnp.float32):
    N, nT, win_h, win_w, cin_p = xwin.shape
    Ho = nT * TH
    inputs = [xwin] + list(weights) + (list(ds) if ds is not None else [])
    kernel = _fused_ds_kernel if ds is not None else _fused_kernel

    in_specs = [pl.BlockSpec((1, 1, win_h, win_w, cin_p),
                             lambda n, r: (n, r, 0, 0, 0))]
    for a in inputs[1:]:
        nd = a.ndim
        # constant index_map -> weights stay VMEM-resident across the grid
        in_specs.append(pl.BlockSpec(a.shape, lambda n, r, _nd=nd: (0,) * _nd))
    out_specs = pl.BlockSpec((1, TH, Wo, cq), lambda n, r: (n, r, 0, 0))

    # VMEM budget: double-buffered in/out blocks + scratch + resident weights +
    # an explicit allowance for in-kernel temporaries (acc1/y1/acc2/y2/identity,
    # bf16 copies, spills), capped by the chip's capacity.
    f32 = 4
    in_blk = win_h * win_w * cin_p * f32
    out_blk = TH * Wo * cq * f32
    scratch = (TH + 2) * (Wo + 2) * cq * 2                  # bf16
    wbytes = sum(int(a.size) * a.dtype.itemsize for a in inputs[1:])
    temps = 10 * max((TH + 2) * Wo * cin_p, TH * Wo * cq) * f32
    need = 2 * (in_blk + out_blk) + scratch + 2 * wbytes + temps
    cap = _vmem_capacity_bytes()
    vmem_limit = int(min(0.9 * cap, max(1.25 * need, 32 << 20)))

    return pl.pallas_call(
        kernel,
        out_shape=jax.ShapeDtypeStruct((N, Ho, Wo, cq), out_dtype),
        grid=(N, nT),
        in_specs=in_specs,
        out_specs=out_specs,
        scratch_shapes=[pltpu.VMEM((TH + 2, Wo + 2, cq), jnp.bfloat16)],
        compiler_params=pltpu.CompilerParams(
            dimension_semantics=("parallel", "parallel"),
            vmem_limit_bytes=vmem_limit),
    )(*inputs)


def resnet_block_forward(x_nchw, p, downsample=False, eps=1e-5, row_tile=8):
    """Forward pass of ResNetBlock.  Input/output are NCHW, float32."""
    x = jnp.transpose(x_nchw, (0, 2, 3, 1)).astype(jnp.float32)    # -> NHWC
    N, H, W, cin = x.shape
    s = 2 if downsample else 1
    Ho = (H + 2 - 3) // s + 1
    Wo = (W + 2 - 3) // s + 1
    cout = p["pw1_w"].shape[1]
    if not downsample:
        assert cin == cout, "residual add requires in_channels == out_channels"

    # Lane-dense channel padding (multiple of 128): padded channels are exactly
    # zero end-to-end (weights / scale / bias zero-padded) and sliced off after.
    cin_p = -(-cin // LANE) * LANE
    cout_p = -(-cout // LANE) * LANE

    # Row tiling (stride-1 path): bounds per-step VMEM and gives megacore a
    # second parallel grid axis.
    if s == 1 and row_tile % 8 == 0 and Ho % row_tile == 0:
        TH = min(row_tile, Ho)
    else:
        TH = Ho                 # TODO(synk): stride-2 / remainder row tiles
    nT = Ho // TH

    # Zero-pad H/W once in the wrapper and build per-tile overlapping row
    # windows (2-input-row halo per side).  One cheap XLA pass over x buys: no
    # in-kernel padded-x scratch, no per-step interior copy/zeroing, and plain
    # non-overlapping BlockSpecs for the row-tile grid axis.
    pad_top = s + 1
    win_h = s * (TH + 1) + 3
    H_need = s * TH * (nT - 1) + win_h
    pad_bot = max(0, H_need - H - pad_top)
    W_need = s * (Wo - 1) + 3
    pad_r = max(0, W_need - W - 1)
    xp = jnp.pad(x, ((0, 0), (pad_top, pad_bot), (1, pad_r), (0, cin_p - cin)))
    xwin = jnp.stack([xp[:, r * TH * s: r * TH * s + win_h] for r in range(nT)],
                     axis=1)                      # (N, nT, win_h, win_w, cin_p)

    # Fold conv biases + BN (inference-mode, eps matches nn.BatchNorm2d) into a
    # single per-channel scale/bias:
    #   ((dw_out + dw_b) @ W_pw + pw_b) |> BN  ==  (dw_out @ W_pw) * sc + bi
    def fold(pw_w, pw_b, dw_b, gamma, beta, mean, var):
        scale = gamma / jnp.sqrt(var + eps)
        bias = beta - mean * scale
        cb = pw_b.reshape(-1)
        if dw_b is not None:
            cb = cb + dw_b.reshape(-1) @ pw_w
        return scale, cb * scale + bias

    def pad2(a, rows, cols, dtype):
        a = jnp.asarray(a, jnp.float32)
        return jnp.pad(a, ((0, rows - a.shape[0]), (0, cols - a.shape[1]))).astype(dtype)

    def padv(v, cols):
        v = jnp.asarray(v, jnp.float32).reshape(1, -1)
        return jnp.pad(v, ((0, 0), (0, cols - v.shape[1])))

    sc1, bi1 = fold(p["pw1_w"], p["pw1_b"], p["dw1_b"],
                    p["bn1_gamma"], p["bn1_beta"], p["bn1_mean"], p["bn1_var"])
    sc2, bi2 = fold(p["pw2_w"], p["pw2_b"], p["dw2_b"],
                    p["bn2_gamma"], p["bn2_beta"], p["bn2_mean"], p["bn2_var"])
    weights = (
        pad2(p["dw1_w"], 9, cin_p, jnp.float32),        # depthwise taps (f32 VPU)
        pad2(p["pw1_w"], cin_p, cout_p, jnp.bfloat16),  # pointwise (bf16 MXU)
        padv(sc1, cout_p), padv(bi1, cout_p),
        pad2(p["dw2_w"], 9, cout_p, jnp.float32),
        pad2(p["pw2_w"], cout_p, cout_p, jnp.bfloat16),
        padv(sc2, cout_p), padv(bi2, cout_p),
    )
    ds = None
    if downsample:
        scd, bid = fold(p["ds_w"], p["ds_b"], None,
                        p["bnd_gamma"], p["bnd_beta"], p["bnd_mean"], p["bnd_var"])
        ds = (pad2(p["ds_w"], cin_p, cout_p, jnp.bfloat16),
              padv(scd, cout_p), padv(bid, cout_p))

    out = _call_fused(xwin, weights, ds, TH=TH, Wo=Wo, cq=cout_p)
    out = out[..., :cout]
    return jnp.transpose(out, (0, 3, 1, 2))               # -> NCHW


# ----------------------------- parameters -----------------------------------

def init_params(key, in_channels, out_channels, downsample=False):
    ks = jax.random.split(key, 24)

    def u(k, shape, lo=-0.3, hi=0.3):
        return jax.random.uniform(k, shape, jnp.float32, lo, hi)

    p = {
        # SeparableConv2D #1: depthwise (Cin,1,3,3) stored as (9,Cin), pointwise (Cin,Cout)
        "dw1_w": u(ks[0], (9, in_channels)),
        "dw1_b": u(ks[1], (1, in_channels)),
        "pw1_w": u(ks[2], (in_channels, out_channels)),
        "pw1_b": u(ks[3], (1, out_channels)),
        "bn1_gamma": jax.random.uniform(ks[4], (out_channels,), jnp.float32, 0.5, 1.5),
        "bn1_beta": u(ks[5], (out_channels,)),
        "bn1_mean": u(ks[6], (out_channels,)),
        "bn1_var": jax.random.uniform(ks[7], (out_channels,), jnp.float32, 0.5, 1.5),
        # SeparableConv2D #2
        "dw2_w": u(ks[8], (9, out_channels)),
        "dw2_b": u(ks[9], (1, out_channels)),
        "pw2_w": u(ks[10], (out_channels, out_channels)),
        "pw2_b": u(ks[11], (1, out_channels)),
        "bn2_gamma": jax.random.uniform(ks[12], (out_channels,), jnp.float32, 0.5, 1.5),
        "bn2_beta": u(ks[13], (out_channels,)),
        "bn2_mean": u(ks[14], (out_channels,)),
        "bn2_var": jax.random.uniform(ks[15], (out_channels,), jnp.float32, 0.5, 1.5),
    }
    if downsample:
        p.update({
            "ds_w": u(ks[16], (in_channels, out_channels)),
            "ds_b": u(ks[17], (1, out_channels)),
            "bnd_gamma": jax.random.uniform(ks[18], (out_channels,), jnp.float32, 0.5, 1.5),
            "bnd_beta": u(ks[19], (out_channels,)),
            "bnd_mean": u(ks[20], (out_channels,)),
            "bnd_var": jax.random.uniform(ks[21], (out_channels,), jnp.float32, 0.5, 1.5),
        })
    return p


# --------------------------- pure-JAX reference ------------------------------

def _ref_forward(x_nchw, p, downsample=False):
    x = jnp.transpose(x_nchw, (0, 2, 3, 1)).astype(jnp.float32)

    def dwconv(x, w9, b, stride):
        c = w9.shape[-1]
        w = w9.reshape(3, 3, 1, c)
        y = lax.conv_general_dilated(
            x, w, (stride, stride), ((1, 1), (1, 1)),
            dimension_numbers=("NHWC", "HWIO", "NHWC"), feature_group_count=c)
        return y + b.reshape(1, 1, 1, -1)

    def pwconv(x, w, b):
        return jnp.einsum("nhwc,cd->nhwd", x, w) + b.reshape(1, 1, 1, -1)

    def bn(x, g, be, m, v, eps=1e-5):
        return (x - m) / jnp.sqrt(v + eps) * g + be

    stride = 2 if downsample else 1
    out = dwconv(x, p["dw1_w"], p["dw1_b"], stride)
    out = pwconv(out, p["pw1_w"], p["pw1_b"])
    out = bn(out, p["bn1_gamma"], p["bn1_beta"], p["bn1_mean"], p["bn1_var"])
    out = jnp.maximum(out, 0.0)
    out = dwconv(out, p["dw2_w"], p["dw2_b"], 1)
    out = pwconv(out, p["pw2_w"], p["pw2_b"])
    out = bn(out, p["bn2_gamma"], p["bn2_beta"], p["bn2_mean"], p["bn2_var"])
    if downsample:
        ident = x[:, ::2, ::2, :]
        ident = pwconv(ident, p["ds_w"], p["ds_b"])
        ident = bn(ident, p["bnd_gamma"], p["bnd_beta"], p["bnd_mean"], p["bnd_var"])
    else:
        ident = x
    out = jnp.maximum(out + ident, 0.0)
    return jnp.transpose(out, (0, 3, 1, 2))


# --------------------------------- main --------------------------------------

if __name__ == "__main__":
    key = jax.random.PRNGKey(0)
    kx, kp = jax.random.split(key)

    N, C, H, W = 2, 4, 16, 16
    C_out = 4
    x = jax.random.normal(kx, (N, C, H, W), jnp.float32)
    params = init_params(kp, C, C_out, downsample=False)

    fwd = jax.jit(lambda xx: resnet_block_forward(xx, params, downsample=False))
    out = jax.block_until_ready(fwd(x))

    ref = _ref_forward(x, params, downsample=False)
    assert out.shape == (N, C_out, H, W), out.shape
    max_err = float(jnp.max(jnp.abs(out - ref)))
    # Tolerance loosened vs the f32 reference: the 1x1 convs use bf16 MXU
    # operands (f32 accumulation) and the inter-stage activation is staged bf16.
    assert jnp.allclose(out, ref, atol=5e-2, rtol=5e-2), max_err

    print("KERNEL_OK")
</pallas_src>

<mosaic_0001>
module attributes {stable_mosaic.version = 11 : i64} {
  func.func @_fused_kernel(%arg0: i32, %arg1: i32, %arg2: memref<1x1x12x18x128xf32, #tpu.memory_space<vmem>>, %arg3: memref<9x128xf32, #tpu.memory_space<vmem>>, %arg4: memref<128x128xbf16, #tpu.memory_space<vmem>>, %arg5: memref<1x128xf32, #tpu.memory_space<vmem>>, %arg6: memref<1x128xf32, #tpu.memory_space<vmem>>, %arg7: memref<9x128xf32, #tpu.memory_space<vmem>>, %arg8: memref<128x128xbf16, #tpu.memory_space<vmem>>, %arg9: memref<1x128xf32, #tpu.memory_space<vmem>>, %arg10: memref<1x128xf32, #tpu.memory_space<vmem>>, %arg11: memref<1x8x16x128xf32, #tpu.memory_space<vmem>>, %arg12: memref<10x18x128xbf16, #tpu.memory_space<vmem>>) attributes {dimension_semantics = [#tpu.dimension_semantics<parallel>, #tpu.dimension_semantics<parallel>], iteration_bounds = array<i64: 2, 2>, scalar_prefetch = 0 : i64, scratch_operands = 1 : i64, tpu.core_type = #tpu.core_type<tc>, window_params = [{transform_indices = @transform_0, window_bounds = array<i64: 1, 1, 12, 18, 128>}, {pipeline_mode = #tpu.pipeline_mode<synchronous>, transform_indices = @transform_1, window_bounds = array<i64: 9, 128>}, {pipeline_mode = #tpu.pipeline_mode<synchronous>, transform_indices = @transform_2, window_bounds = array<i64: 128, 128>}, {pipeline_mode = #tpu.pipeline_mode<synchronous>, transform_indices = @transform_3, window_bounds = array<i64: 1, 128>}, {pipeline_mode = #tpu.pipeline_mode<synchronous>, transform_indices = @transform_4, window_bounds = array<i64: 1, 128>}, {pipeline_mode = #tpu.pipeline_mode<synchronous>, transform_indices = @transform_5, window_bounds = array<i64: 9, 128>}, {pipeline_mode = #tpu.pipeline_mode<synchronous>, transform_indices = @transform_6, window_bounds = array<i64: 128, 128>}, {pipeline_mode = #tpu.pipeline_mode<synchronous>, transform_indices = @transform_7, window_bounds = array<i64: 1, 128>}, {pipeline_mode = #tpu.pipeline_mode<synchronous>, transform_indices = @transform_8, window_bounds = array<i64: 1, 128>}, {transform_indices = @transform_9, window_bounds = array<i64: 1, 8, 16, 128>}]} {
    %c0 = arith.constant 0 : index
    %c0_0 = arith.constant 0 : index
    %0 = vector.load %arg3[%c0, %c0_0] : memref<9x128xf32, #tpu.memory_space<vmem>>, vector<9x128xf32>
    %c0_1 = arith.constant 0 : index
    %c0_2 = arith.constant 0 : index
    %c0_3 = arith.constant 0 : index
    %c0_4 = arith.constant 0 : index
    %c0_5 = arith.constant 0 : index
    %1 = vector.load %arg2[%c0_1, %c0_2, %c0_3, %c0_4, %c0_5] : memref<1x1x12x18x128xf32, #tpu.memory_space<vmem>>, vector<1x1x10x18x128xf32>
    %2 = vector.shape_cast %1 : vector<1x1x10x18x128xf32> to vector<10x18x128xf32>
    %3 = vector.extract_strided_slice %2 {offsets = [0, 0, 0], sizes = [10, 16, 128], strides = [1, 1, 1]} : vector<10x18x128xf32> to vector<10x16x128xf32>
    %4 = vector.extract_strided_slice %0 {offsets = [0, 0], sizes = [1, 128], strides = [1, 1]} : vector<9x128xf32> to vector<1x128xf32>
    %5 = vector.shape_cast %4 : vector<1x128xf32> to vector<1x1x128xf32>
    %6 = vector.broadcast %5 : vector<1x1x128xf32> to vector<10x16x128xf32>
    %7 = arith.mulf %3, %6 : vector<10x16x128xf32>
    %8 = vector.extract_strided_slice %2 {offsets = [0, 1, 0], sizes = [10, 16, 128], strides = [1, 1, 1]} : vector<10x18x128xf32> to vector<10x16x128xf32>
    %9 = vector.extract_strided_slice %0 {offsets = [1, 0], sizes = [1, 128], strides = [1, 1]} : vector<9x128xf32> to vector<1x128xf32>
    %10 = vector.shape_cast %9 : vector<1x128xf32> to vector<1x1x128xf32>
    %11 = vector.broadcast %10 : vector<1x1x128xf32> to vector<10x16x128xf32>
    %12 = arith.mulf %8, %11 : vector<10x16x128xf32>
    %13 = arith.addf %7, %12 : vector<10x16x128xf32>
    %14 = vector.extract_strided_slice %2 {offsets = [0, 2, 0], sizes = [10, 16, 128], strides = [1, 1, 1]} : vector<10x18x128xf32> to vector<10x16x128xf32>
    %15 = vector.extract_strided_slice %0 {offsets = [2, 0], sizes = [1, 128], strides = [1, 1]} : vector<9x128xf32> to vector<1x128xf32>
    %16 = vector.shape_cast %15 : vector<1x128xf32> to vector<1x1x128xf32>
    %17 = vector.broadcast %16 : vector<1x1x128xf32> to vector<10x16x128xf32>
    %18 = arith.mulf %14, %17 : vector<10x16x128xf32>
    %19 = arith.addf %13, %18 : vector<10x16x128xf32>
    %c0_6 = arith.constant 0 : index
    %c0_7 = arith.constant 0 : index
    %c1 = arith.constant 1 : index
    %c0_8 = arith.constant 0 : index
    %c0_9 = arith.constant 0 : index
    %20 = vector.load %arg2[%c0_6, %c0_7, %c1, %c0_8, %c0_9] : memref<1x1x12x18x128xf32, #tpu.memory_space<vmem>>, vector<1x1x10x18x128xf32>
    %21 = vector.shape_cast %20 : vector<1x1x10x18x128xf32> to vector<10x18x128xf32>
    %22 = vector.extract_strided_slice %21 {offsets = [0, 0, 0], sizes = [10, 16, 128], strides = [1, 1, 1]} : vector<10x18x128xf32> to vector<10x16x128xf32>
    %23 = vector.extract_strided_slice %0 {offsets = [3, 0], sizes = [1, 128], strides = [1, 1]} : vector<9x128xf32> to vector<1x128xf32>
    %24 = vector.shape_cast %23 : vector<1x128xf32> to vector<1x1x128xf32>
    %25 = vector.broadcast %24 : vector<1x1x128xf32> to vector<10x16x128xf32>
    %26 = arith.mulf %22, %25 : vector<10x16x128xf32>
    %27 = arith.addf %19, %26 : vector<10x16x128xf32>
    %28 = vector.extract_strided_slice %21 {offsets = [0, 1, 0], sizes = [10, 16, 128], strides = [1, 1, 1]} : vector<10x18x128xf32> to vector<10x16x128xf32>
    %29 = vector.extract_strided_slice %0 {offsets = [4, 0], sizes = [1, 128], strides = [1, 1]} : vector<9x128xf32> to vector<1x128xf32>
    %30 = vector.shape_cast %29 : vector<1x128xf32> to vector<1x1x128xf32>
    %31 = vector.broadcast %30 : vector<1x1x128xf32> to vector<10x16x128xf32>
    %32 = arith.mulf %28, %31 : vector<10x16x128xf32>
    %33 = arith.addf %27, %32 : vector<10x16x128xf32>
    %34 = vector.extract_strided_slice %21 {offsets = [0, 2, 0], sizes = [10, 16, 128], strides = [1, 1, 1]} : vector<10x18x128xf32> to vector<10x16x128xf32>
    %35 = vector.extract_strided_slice %0 {offsets = [5, 0], sizes = [1, 128], strides = [1, 1]} : vector<9x128xf32> to vector<1x128xf32>
    %36 = vector.shape_cast %35 : vector<1x128xf32> to vector<1x1x128xf32>
    %37 = vector.broadcast %36 : vector<1x1x128xf32> to vector<10x16x128xf32>
    %38 = arith.mulf %34, %37 : vector<10x16x128xf32>
    %39 = arith.addf %33, %38 : vector<10x16x128xf32>
    %c0_10 = arith.constant 0 : index
    %c0_11 = arith.constant 0 : index
    %c2 = arith.constant 2 : index
    %c0_12 = arith.constant 0 : index
    %c0_13 = arith.constant 0 : index
    %40 = vector.load %arg2[%c0_10, %c0_11, %c2, %c0_12, %c0_13] : memref<1x1x12x18x128xf32, #tpu.memory_space<vmem>>, vector<1x1x10x18x128xf32>
    %41 = vector.shape_cast %40 : vector<1x1x10x18x128xf32> to vector<10x18x128xf32>
    %42 = vector.extract_strided_slice %41 {offsets = [0, 0, 0], sizes = [10, 16, 128], strides = [1, 1, 1]} : vector<10x18x128xf32> to vector<10x16x128xf32>
    %43 = vector.extract_strided_slice %0 {offsets = [6, 0], sizes = [1, 128], strides = [1, 1]} : vector<9x128xf32> to vector<1x128xf32>
    %44 = vector.shape_cast %43 : vector<1x128xf32> to vector<1x1x128xf32>
    %45 = vector.broadcast %44 : vector<1x1x128xf32> to vector<10x16x128xf32>
    %46 = arith.mulf %42, %45 : vector<10x16x128xf32>
    %47 = arith.addf %39, %46 : vector<10x16x128xf32>
    %48 = vector.extract_strided_slice %41 {offsets = [0, 1, 0], sizes = [10, 16, 128], strides = [1, 1, 1]} : vector<10x18x128xf32> to vector<10x16x128xf32>
    %49 = vector.extract_strided_slice %0 {offsets = [7, 0], sizes = [1, 128], strides = [1, 1]} : vector<9x128xf32> to vector<1x128xf32>
    %50 = vector.shape_cast %49 : vector<1x128xf32> to vector<1x1x128xf32>
    %51 = vector.broadcast %50 : vector<1x1x128xf32> to vector<10x16x128xf32>
    %52 = arith.mulf %48, %51 : vector<10x16x128xf32>
    %53 = arith.addf %47, %52 : vector<10x16x128xf32>
    %54 = vector.extract_strided_slice %41 {offsets = [0, 2, 0], sizes = [10, 16, 128], strides = [1, 1, 1]} : vector<10x18x128xf32> to vector<10x16x128xf32>
    %55 = vector.extract_strided_slice %0 {offsets = [8, 0], sizes = [1, 128], strides = [1, 1]} : vector<9x128xf32> to vector<1x128xf32>
    %56 = vector.shape_cast %55 : vector<1x128xf32> to vector<1x1x128xf32>
    %57 = vector.broadcast %56 : vector<1x1x128xf32> to vector<10x16x128xf32>
    %58 = arith.mulf %54, %57 : vector<10x16x128xf32>
    %59 = arith.addf %53, %58 : vector<10x16x128xf32>
    %60 = vector.shape_cast %59 : vector<10x16x128xf32> to vector<160x128xf32>
    %61 = arith.truncf %60 : vector<160x128xf32> to vector<160x128xbf16>
    %c0_14 = arith.constant 0 : index
    %c0_15 = arith.constant 0 : index
    %62 = vector.load %arg4[%c0_14, %c0_15] : memref<128x128xbf16, #tpu.memory_space<vmem>>, vector<128x128xbf16>
    %cst = arith.constant dense<0.000000e+00> : vector<160x128xf32>
    %63 = tpu.matmul %61, %62, %cst {dimension_numbers = #tpu.dot_dimension_numbers<[1], [0], [0], [1], [0, 0, 1, 1], [], []>} : vector<160x128xbf16>, vector<128x128xbf16>, vector<160x128xf32> -> vector<160x128xf32>
    %c0_16 = arith.constant 0 : index
    %c0_17 = arith.constant 0 : index
    %64 = vector.load %arg5[%c0_16, %c0_17] : memref<1x128xf32, #tpu.memory_space<vmem>>, vector<1x128xf32>
    %65 = vector.broadcast %64 : vector<1x128xf32> to vector<160x128xf32>
    %66 = arith.mulf %63, %65 : vector<160x128xf32>
    %c0_18 = arith.constant 0 : index
    %c0_19 = arith.constant 0 : index
    %67 = vector.load %arg6[%c0_18, %c0_19] : memref<1x128xf32, #tpu.memory_space<vmem>>, vector<1x128xf32>
    %68 = vector.broadcast %67 : vector<1x128xf32> to vector<160x128xf32>
    %69 = arith.addf %66, %68 : vector<160x128xf32>
    %cst_20 = arith.constant 0.000000e+00 : f32
    %70 = vector.broadcast %cst_20 : f32 to vector<160x128xf32>
    %71 = arith.maximumf %69, %70 : vector<160x128xf32>
    %72 = vector.shape_cast %71 : vector<160x128xf32> to vector<10x16x128xf32>
    %73 = arith.truncf %72 : vector<10x16x128xf32> to vector<10x16x128xbf16>
    %c0_21 = arith.constant 0 : index
    %c1_22 = arith.constant 1 : index
    %c0_23 = arith.constant 0 : index
    %74 = vector.load %arg12[%c0_21, %c1_22, %c0_23] : memref<10x18x128xbf16, #tpu.memory_space<vmem>>, vector<10x16x128xbf16>
    tpu.vector_store %arg12[%c0_21, %c1_22, %c0_23], %73 {strides = array<i32>} : memref<10x18x128xbf16, #tpu.memory_space<vmem>>, vector<10x16x128xbf16>,
    %cst_24 = arith.constant 0.000000e+00 : bf16
    %75 = vector.broadcast %cst_24 : bf16 to vector<10x1x128xbf16>
    %c0_25 = arith.constant 0 : index
    %c0_26 = arith.constant 0 : index
    %c0_27 = arith.constant 0 : index
    %76 = vector.load %arg12[%c0_25, %c0_26, %c0_27] : memref<10x18x128xbf16, #tpu.memory_space<vmem>>, vector<10x1x128xbf16>
    tpu.vector_store %arg12[%c0_25, %c0_26, %c0_27], %75 {strides = array<i32>} : memref<10x18x128xbf16, #tpu.memory_space<vmem>>, vector<10x1x128xbf16>,
    %c0_28 = arith.constant 0 : index
    %c17 = arith.constant 17 : index
    %c0_29 = arith.constant 0 : index
    %77 = vector.load %arg12[%c0_28, %c17, %c0_29] : memref<10x18x128xbf16, #tpu.memory_space<vmem>>, vector<10x1x128xbf16>
    tpu.vector_store %arg12[%c0_28, %c17, %c0_29], %75 {strides = array<i32>} : memref<10x18x128xbf16, #tpu.memory_space<vmem>>, vector<10x1x128xbf16>,
    %cst_30 = arith.constant 0.000000e+00 : bf16
    %78 = vector.broadcast %cst_30 : bf16 to vector<1x18x128xbf16>
    %c0_i32 = arith.constant 0 : i32
    %79 = arith.cmpi eq, %arg1, %c0_i32 : i32
    %80 = arith.extui %79 : i1 to i32
    %c0_i32_31 = arith.constant 0 : i32
    %81 = arith.cmpi ne, %80, %c0_i32_31 : i32
    scf.if %81 {
      %c0_61 = arith.constant 0 : index
      %c0_62 = arith.constant 0 : index
      %c0_63 = arith.constant 0 : index
      %165 = vector.load %arg12[%c0_61, %c0_62, %c0_63] : memref<10x18x128xbf16, #tpu.memory_space<vmem>>, vector<1x18x128xbf16>
      tpu.vector_store %arg12[%c0_61, %c0_62, %c0_63], %78 {strides = array<i32>} : memref<10x18x128xbf16, #tpu.memory_space<vmem>>, vector<1x18x128xbf16>,
    } else {
    }
    %c1_i32 = arith.constant 1 : i32
    %82 = arith.cmpi eq, %arg1, %c1_i32 : i32
    %83 = arith.extui %82 : i1 to i32
    %c0_i32_32 = arith.constant 0 : i32
    %84 = arith.cmpi ne, %83, %c0_i32_32 : i32
    scf.if %84 {
      %c9 = arith.constant 9 : index
      %c0_61 = arith.constant 0 : index
      %c0_62 = arith.constant 0 : index
      %165 = vector.load %arg12[%c9, %c0_61, %c0_62] : memref<10x18x128xbf16, #tpu.memory_space<vmem>>, vector<1x18x128xbf16>
      tpu.vector_store %arg12[%c9, %c0_61, %c0_62], %78 {strides = array<i32>} : memref<10x18x128xbf16, #tpu.memory_space<vmem>>, vector<1x18x128xbf16>,
    } else {
    }
    %c0_33 = arith.constant 0 : index
    %c0_34 = arith.constant 0 : index
    %85 = vector.load %arg7[%c0_33, %c0_34] : memref<9x128xf32, #tpu.memory_space<vmem>>, vector<9x128xf32>
    %c0_35 = arith.constant 0 : index
    %c0_36 = arith.constant 0 : index
    %c0_37 = arith.constant 0 : index
    %86 = vector.load %arg12[%c0_35, %c0_36, %c0_37] : memref<10x18x128xbf16, #tpu.memory_space<vmem>>, vector<8x18x128xbf16>
    %87 = arith.extf %86 : vector<8x18x128xbf16> to vector<8x18x128xf32>
    %88 = vector.extract_strided_slice %87 {offsets = [0, 0, 0], sizes = [8, 16, 128], strides = [1, 1, 1]} : vector<8x18x128xf32> to vector<8x16x128xf32>
    %89 = vector.extract_strided_slice %85 {offsets = [0, 0], sizes = [1, 128], strides = [1, 1]} : vector<9x128xf32> to vector<1x128xf32>
    %90 = vector.shape_cast %89 : vector<1x128xf32> to vector<1x1x128xf32>
    %91 = vector.broadcast %90 : vector<1x1x128xf32> to vector<8x16x128xf32>
    %92 = arith.mulf %88, %91 : vector<8x16x128xf32>
    %93 = vector.extract_strided_slice %87 {offsets = [0, 1, 0], sizes = [8, 16, 128], strides = [1, 1, 1]} : vector<8x18x128xf32> to vector<8x16x128xf32>
    %94 = vector.extract_strided_slice %85 {offsets = [1, 0], sizes = [1, 128], strides = [1, 1]} : vector<9x128xf32> to vector<1x128xf32>
    %95 = vector.shape_cast %94 : vector<1x128xf32> to vector<1x1x128xf32>
    %96 = vector.broadcast %95 : vector<1x1x128xf32> to vector<8x16x128xf32>
    %97 = arith.mulf %93, %96 : vector<8x16x128xf32>
    %98 = arith.addf %92, %97 : vector<8x16x128xf32>
    %99 = vector.extract_strided_slice %87 {offsets = [0, 2, 0], sizes = [8, 16, 128], strides = [1, 1, 1]} : vector<8x18x128xf32> to vector<8x16x128xf32>
    %100 = vector.extract_strided_slice %85 {offsets = [2, 0], sizes = [1, 128], strides = [1, 1]} : vector<9x128xf32> to vector<1x128xf32>
    %101 = vector.shape_cast %100 : vector<1x128xf32> to vector<1x1x128xf32>
    %102 = vector.broadcast %101 : vector<1x1x128xf32> to vector<8x16x128xf32>
    %103 = arith.mulf %99, %102 : vector<8x16x128xf32>
    %104 = arith.addf %98, %103 : vector<8x16x128xf32>
    %c1_38 = arith.constant 1 : index
    %c0_39 = arith.constant 0 : index
    %c0_40 = arith.constant 0 : index
    %105 = vector.load %arg12[%c1_38, %c0_39, %c0_40] : memref<10x18x128xbf16, #tpu.memory_space<vmem>>, vector<8x18x128xbf16>
    %106 = arith.extf %105 : vector<8x18x128xbf16> to vector<8x18x128xf32>
    %107 = vector.extract_strided_slice %106 {offsets = [0, 0, 0], sizes = [8, 16, 128], strides = [1, 1, 1]} : vector<8x18x128xf32> to vector<8x16x128xf32>
    %108 = vector.extract_strided_slice %85 {offsets = [3, 0], sizes = [1, 128], strides = [1, 1]} : vector<9x128xf32> to vector<1x128xf32>
    %109 = vector.shape_cast %108 : vector<1x128xf32> to vector<1x1x128xf32>
    %110 = vector.broadcast %109 : vector<1x1x128xf32> to vector<8x16x128xf32>
    %111 = arith.mulf %107, %110 : vector<8x16x128xf32>
    %112 = arith.addf %104, %111 : vector<8x16x128xf32>
    %113 = vector.extract_strided_slice %106 {offsets = [0, 1, 0], sizes = [8, 16, 128], strides = [1, 1, 1]} : vector<8x18x128xf32> to vector<8x16x128xf32>
    %114 = vector.extract_strided_slice %85 {offsets = [4, 0], sizes = [1, 128], strides = [1, 1]} : vector<9x128xf32> to vector<1x128xf32>
    %115 = vector.shape_cast %114 : vector<1x128xf32> to vector<1x1x128xf32>
    %116 = vector.broadcast %115 : vector<1x1x128xf32> to vector<8x16x128xf32>
    %117 = arith.mulf %113, %116 : vector<8x16x128xf32>
    %118 = arith.addf %112, %117 : vector<8x16x128xf32>
    %119 = vector.extract_strided_slice %106 {offsets = [0, 2, 0], sizes = [8, 16, 128], strides = [1, 1, 1]} : vector<8x18x128xf32> to vector<8x16x128xf32>
    %120 = vector.extract_strided_slice %85 {offsets = [5, 0], sizes = [1, 128], strides = [1, 1]} : vector<9x128xf32> to vector<1x128xf32>
    %121 = vector.shape_cast %120 : vector<1x128xf32> to vector<1x1x128xf32>
    %122 = vector.broadcast %121 : vector<1x1x128xf32> to vector<8x16x128xf32>
    %123 = arith.mulf %119, %122 : vector<8x16x128xf32>
    %124 = arith.addf %118, %123 : vector<8x16x128xf32>
    %c2_41 = arith.constant 2 : index
    %c0_42 = arith.constant 0 : index
    %c0_43 = arith.constant 0 : index
    %125 = vector.load %arg12[%c2_41, %c0_42, %c0_43] : memref<10x18x128xbf16, #tpu.memory_space<vmem>>, vector<8x18x128xbf16>
    %126 = arith.extf %125 : vector<8x18x128xbf16> to vector<8x18x128xf32>
    %127 = vector.extract_strided_slice %126 {offsets = [0, 0, 0], sizes = [8, 16, 128], strides = [1, 1, 1]} : vector<8x18x128xf32> to vector<8x16x128xf32>
    %128 = vector.extract_strided_slice %85 {offsets = [6, 0], sizes = [1, 128], strides = [1, 1]} : vector<9x128xf32> to vector<1x128xf32>
    %129 = vector.shape_cast %128 : vector<1x128xf32> to vector<1x1x128xf32>
    %130 = vector.broadcast %129 : vector<1x1x128xf32> to vector<8x16x128xf32>
    %131 = arith.mulf %127, %130 : vector<8x16x128xf32>
    %132 = arith.addf %124, %131 : vector<8x16x128xf32>
    %133 = vector.extract_strided_slice %126 {offsets = [0, 1, 0], sizes = [8, 16, 128], strides = [1, 1, 1]} : vector<8x18x128xf32> to vector<8x16x128xf32>
    %134 = vector.extract_strided_slice %85 {offsets = [7, 0], sizes = [1, 128], strides = [1, 1]} : vector<9x128xf32> to vector<1x128xf32>
    %135 = vector.shape_cast %134 : vector<1x128xf32> to vector<1x1x128xf32>
    %136 = vector.broadcast %135 : vector<1x1x128xf32> to vector<8x16x128xf32>
    %137 = arith.mulf %133, %136 : vector<8x16x128xf32>
    %138 = arith.addf %132, %137 : vector<8x16x128xf32>
    %139 = vector.extract_strided_slice %126 {offsets = [0, 2, 0], sizes = [8, 16, 128], strides = [1, 1, 1]} : vector<8x18x128xf32> to vector<8x16x128xf32>
    %140 = vector.extract_strided_slice %85 {offsets = [8, 0], sizes = [1, 128], strides = [1, 1]} : vector<9x128xf32> to vector<1x128xf32>
    %141 = vector.shape_cast %140 : vector<1x128xf32> to vector<1x1x128xf32>
    %142 = vector.broadcast %141 : vector<1x1x128xf32> to vector<8x16x128xf32>
    %143 = arith.mulf %139, %142 : vector<8x16x128xf32>
    %144 = arith.addf %138, %143 : vector<8x16x128xf32>
    %145 = vector.shape_cast %144 : vector<8x16x128xf32> to vector<128x128xf32>
    %146 = arith.truncf %145 : vector<128x128xf32> to vector<128x128xbf16>
    %c0_44 = arith.constant 0 : index
    %c0_45 = arith.constant 0 : index
    %147 = vector.load %arg8[%c0_44, %c0_45] : memref<128x128xbf16, #tpu.memory_space<vmem>>, vector<128x128xbf16>
    %cst_46 = arith.constant dense<0.000000e+00> : vector<128x128xf32>
    %148 = tpu.matmul %146, %147, %cst_46 {dimension_numbers = #tpu.dot_dimension_numbers<[1], [0], [0], [1], [0, 0, 1, 1], [], []>} : vector<128x128xbf16>, vector<128x128xbf16>, vector<128x128xf32> -> vector<128x128xf32>
    %c0_47 = arith.constant 0 : index
    %c0_48 = arith.constant 0 : index
    %149 = vector.load %arg9[%c0_47, %c0_48] : memref<1x128xf32, #tpu.memory_space<vmem>>, vector<1x128xf32>
    %150 = vector.broadcast %149 : vector<1x128xf32> to vector<128x128xf32>
    %151 = arith.mulf %148, %150 : vector<128x128xf32>
    %c0_49 = arith.constant 0 : index
    %c0_50 = arith.constant 0 : index
    %152 = vector.load %arg10[%c0_49, %c0_50] : memref<1x128xf32, #tpu.memory_space<vmem>>, vector<1x128xf32>
    %153 = vector.broadcast %152 : vector<1x128xf32> to vector<128x128xf32>
    %154 = arith.addf %151, %153 : vector<128x128xf32>
    %c0_51 = arith.constant 0 : index
    %c0_52 = arith.constant 0 : index
    %c2_53 = arith.constant 2 : index
    %c1_54 = arith.constant 1 : index
    %c0_55 = arith.constant 0 : index
    %155 = vector.load %arg2[%c0_51, %c0_52, %c2_53, %c1_54, %c0_55] : memref<1x1x12x18x128xf32, #tpu.memory_space<vmem>>, vector<1x1x8x16x128xf32>
    %156 = vector.shape_cast %155 : vector<1x1x8x16x128xf32> to vector<8x16x128xf32>
    %157 = vector.shape_cast %156 : vector<8x16x128xf32> to vector<128x128xf32>
    %158 = arith.addf %154, %157 : vector<128x128xf32>
    %cst_56 = arith.constant 0.000000e+00 : f32
    %159 = vector.broadcast %cst_56 : f32 to vector<128x128xf32>
    %160 = arith.maximumf %158, %159 : vector<128x128xf32>
    %161 = vector.shape_cast %160 : vector<128x128xf32> to vector<8x16x128xf32>
    %c0_57 = arith.constant 0 : index
    %c0_58 = arith.constant 0 : index
    %c0_59 = arith.constant 0 : index
    %c0_60 = arith.constant 0 : index
    %162 = vector.load %arg11[%c0_57, %c0_58, %c0_59, %c0_60] : memref<1x8x16x128xf32, #tpu.memory_space<vmem>>, vector<1x8x16x128xf32>
    %163 = vector.shape_cast %162 : vector<1x8x16x128xf32> to vector<8x16x128xf32>
    %164 = vector.shape_cast %161 : vector<8x16x128xf32> to vector<1x8x16x128xf32>
    tpu.vector_store %arg11[%c0_57, %c0_58, %c0_59, %c0_60], %164 {strides = array<i32>} : memref<1x8x16x128xf32, #tpu.memory_space<vmem>>, vector<1x8x16x128xf32>,
    return
  }
  func.func @transform_0(%arg0: i32, %arg1: i32) -> (i32, i32, i32, i32, i32) {
    %c0_i32 = arith.constant 0 : i32
    %c0_i32_0 = arith.constant 0 : i32
    %c0_i32_1 = arith.constant 0 : i32
    %c0_i32_2 = arith.constant 0 : i32
    return %arg0, %arg1, %c0_i32, %c0_i32_0, %c0_i32_1 : i32, i32, i32, i32, i32
  }
  func.func @transform_1(%arg0: i32, %arg1: i32) -> (i32, i32) {
    %c0_i32 = arith.constant 0 : i32
    %c0_i32_0 = arith.constant 0 : i32
    %c0_i32_1 = arith.constant 0 : i32
    return %c0_i32, %c0_i32_0 : i32, i32
  }
  func.func @transform_2(%arg0: i32, %arg1: i32) -> (i32, i32) {
    %c0_i32 = arith.constant 0 : i32
    %c0_i32_0 = arith.constant 0 : i32
    %c0_i32_1 = arith.constant 0 : i32
    return %c0_i32, %c0_i32_0 : i32, i32
  }
  func.func @transform_3(%arg0: i32, %arg1: i32) -> (i32, i32) {
    %c0_i32 = arith.constant 0 : i32
    %c0_i32_0 = arith.constant 0 : i32
    %c0_i32_1 = arith.constant 0 : i32
    return %c0_i32, %c0_i32_0 : i32, i32
  }
  func.func @transform_4(%arg0: i32, %arg1: i32) -> (i32, i32) {
    %c0_i32 = arith.constant 0 : i32
    %c0_i32_0 = arith.constant 0 : i32
    %c0_i32_1 = arith.constant 0 : i32
    return %c0_i32, %c0_i32_0 : i32, i32
  }
  func.func @transform_5(%arg0: i32, %arg1: i32) -> (i32, i32) {
    %c0_i32 = arith.constant 0 : i32
    %c0_i32_0 = arith.constant 0 : i32
    %c0_i32_1 = arith.constant 0 : i32
    return %c0_i32, %c0_i32_0 : i32, i32
  }
  func.func @transform_6(%arg0: i32, %arg1: i32) -> (i32, i32) {
    %c0_i32 = arith.constant 0 : i32
    %c0_i32_0 = arith.constant 0 : i32
    %c0_i32_1 = arith.constant 0 : i32
    return %c0_i32, %c0_i32_0 : i32, i32
  }
  func.func @transform_7(%arg0: i32, %arg1: i32) -> (i32, i32) {
    %c0_i32 = arith.constant 0 : i32
    %c0_i32_0 = arith.constant 0 : i32
    %c0_i32_1 = arith.constant 0 : i32
    return %c0_i32, %c0_i32_0 : i32, i32
  }
  func.func @transform_8(%arg0: i32, %arg1: i32) -> (i32, i32) {
    %c0_i32 = arith.constant 0 : i32
    %c0_i32_0 = arith.constant 0 : i32
    %c0_i32_1 = arith.constant 0 : i32
    return %c0_i32, %c0_i32_0 : i32, i32
  }
  func.func @transform_9(%arg0: i32, %arg1: i32) -> (i32, i32, i32, i32) {
    %c0_i32 = arith.constant 0 : i32
    %c0_i32_0 = arith.constant 0 : i32
    %c0_i32_1 = arith.constant 0 : i32
    return %arg0, %arg1, %c0_i32, %c0_i32_0 : i32, i32, i32, i32
  }
}

</mosaic_0001>

<llo_original>
// kernel: _lambda_.1
$region0: #{_lambda_.1}
  #allocation0 [shape = 'u32[]', space=smem, size = 0x4, offset = 0x4, fixed_abs, tag = 'smem constant byte address 0x4 - core index']
  #allocation1 [shape = 'u32[144,128]{1,0:T(1,128)}', space=vmem, size = 0x12000, scoped, tag = 'internal scratch']
  #allocation2 [shape = 'bf16[10,18,128]{2,1,0:T(8,128)(2,1)}', space=vmem, size = 0xf000, scoped, tag = 'scratch operand']
  %s0 = inlined_call_operand.vmem [shape: f32[2,2,12,18,128], index: 0, kind: input, shape index: {}]
  %s1 = inlined_call_operand.vmem [shape: f32[9,128], index: 1, kind: input, shape index: {}]
  %s2 = inlined_call_operand.vmem [shape: bf16[128,128], index: 2, kind: input, shape index: {}]
  %s3 = inlined_call_operand.vmem [shape: f32[1,128], index: 3, kind: input, shape index: {}]
  %s4 = inlined_call_operand.vmem [shape: f32[1,128], index: 4, kind: input, shape index: {}]
  %s5 = inlined_call_operand.vmem [shape: f32[9,128], index: 5, kind: input, shape index: {}]
  %s6 = inlined_call_operand.vmem [shape: bf16[128,128], index: 6, kind: input, shape index: {}]
  %s7 = inlined_call_operand.vmem [shape: f32[1,128], index: 7, kind: input, shape index: {}]
  %s8 = inlined_call_operand.vmem [shape: f32[1,128], index: 8, kind: input, shape index: {}]
  %s9 = inlined_call_operand.vmem [shape: f32[2,16,16,128], index: 9, kind: output, shape index: {}]
  %s10 = sld [smem:[#allocation0]]
  $region77: #{_lambda_.1} parent=0
    _
  %s12 = ssub.s32 1, %s10
  %s13 = scalar_select 0, %s12, %s10
  loop: start=0, step=1, limit=6
  $region2: #{_lambda_.1} parent=0 // loop_pre_header
    _
  $region3: #{_lambda_.1} parent=0 // loop_header
    %s15 = sphi 0, %s19
    %p16 = scmp.ge.s32.totalorder %s15, 6
    %s22 = sphi 0, %s34
    %s23 = sphi 0, %s30
    %s24 = sphi 0, %s22
    %s25 = sphi 0, %s23
    %s26 = sphi 0, %s24
    %s27 = sphi 0, %s25
    %s39 = sphi 0, %s41
    %s42 = sphi 0, %s39
    %s43 = sphi 0, %s42
    %s59 = sphi 0, %s43
    %s63 = sphi 0, %s63
    %s65 = sphi 0, %s63
    %s66 = sphi 0, %s65
    %s80 = sphi 0, %s66
    %s84 = sphi 0, %s84
    %s86 = sphi 0, %s84
    %s87 = sphi 0, %s86
    %s101 = sphi 0, %s87
    %s105 = sphi 0, %s105
    %s107 = sphi 0, %s105
    %s108 = sphi 0, %s107
    %s122 = sphi 0, %s108
    %s126 = sphi 0, %s126
    %s128 = sphi 0, %s126
    %s129 = sphi 0, %s128
    %s143 = sphi 0, %s129
    %s147 = sphi 0, %s147
    %s149 = sphi 0, %s147
    %s150 = sphi 0, %s149
    %s164 = sphi 0, %s150
    %s168 = sphi 0, %s168
    %s170 = sphi 0, %s168
    %s171 = sphi 0, %s170
    %s185 = sphi 0, %s171
    %s189 = sphi 0, %s189
    %s191 = sphi 0, %s189
    %s192 = sphi 0, %s191
    %s206 = sphi 0, %s192
    %s210 = sphi 0, %s210
    %s212 = sphi 0, %s210
    %s213 = sphi 0, %s212
    %s227 = sphi 0, %s213
    %s235 = sphi 0, %s237
    %s238 = sphi 0, %s235
    %s239 = sphi 0, %s238
    %s255 = sphi 0, %s239
  $region4: #{_lambda_.1} parent=0 // loop_header_branch
    %18 = sbr.rel (%p16) target = $region8
  $region5: #{_lambda_.1} parent=0 // loop_body
    %s20 = ssub.s32 %s15, 1
    %s21 = ssub.s32 %s15, 2
    %s28 = sadd.s32 1, %s23
    %p29 = scmp.ge.s32.totalorder %s28, 2
    %s30 = scalar_select %p29, 0, %s28
    %s31 = sadd.s32 1, %s22
    %s32 = scalar_select %p29, %s31, %s22
    %p33 = scmp.ge.s32.totalorder %s32, 2
    %s34 = scalar_select %p33, 0, %s32
    %s35 = ssub.s32 %s22, %s34
    %s36 = ssub.s32 %s23, %s30
    %s37 = sor.u32 %s35, %s36
    %p38 = scmp.eq.s32.totalorder %s37, 0
    %s40 = sadd.s32 %s39, 1
    %s41 = scalar_select %p38, %s39, %s40
    %p44 = pneg %p38
    %p45 = scmp.eq.s32.totalorder %s15, 3
    %p46 = por %p44, %p45
    %p47 = scmp.ne.s32.totalorder %s39, %s42
    %p48 = scmp.eq.s32.totalorder %s15, 0
    %p49 = por %p47, %p48
    %p50 = scmp.ne.s32.totalorder %s39, %s42
    %p51 = scmp.eq.s32.totalorder %s20, 3
    %p52 = por %p50, %p51
    %p53 = scmp.ne.s32.totalorder %s42, %s43
    %p54 = scmp.eq.s32.totalorder %s20, 0
    %p55 = por %p53, %p54
    %p56 = scmp.ne.s32.totalorder %s42, %s43
    %p57 = scmp.eq.s32.totalorder %s21, 3
    %p58 = por %p56, %p57
    %p60 = scmp.ne.s32.totalorder %s43, %s59
    %p61 = scmp.eq.s32.totalorder %s21, 0
    %p62 = por %p60, %p61
    %s64 = sadd.s32 %s63, 1
    %p67 = scmp.eq.s32.totalorder %s15, 3
    %p68 = scmp.ne.s32.totalorder %s63, %s65
    %p69 = scmp.eq.s32.totalorder %s15, 0
    %p70 = por %p68, %p69
    %p71 = scmp.ne.s32.totalorder %s63, %s65
    %p72 = scmp.eq.s32.totalorder %s20, 3
    %p73 = por %p71, %p72
    %p74 = scmp.ne.s32.totalorder %s65, %s66
    %p75 = scmp.eq.s32.totalorder %s20, 0
    %p76 = por %p74, %p75
    %p77 = scmp.ne.s32.totalorder %s65, %s66
    %p78 = scmp.eq.s32.totalorder %s21, 3
    %p79 = por %p77, %p78
    %p81 = scmp.ne.s32.totalorder %s66, %s80
    %p82 = scmp.eq.s32.totalorder %s21, 0
    %p83 = por %p81, %p82
    %s85 = sadd.s32 %s84, 1
    %p88 = scmp.eq.s32.totalorder %s15, 3
    %p89 = scmp.ne.s32.totalorder %s84, %s86
    %p90 = scmp.eq.s32.totalorder %s15, 0
    %p91 = por %p89, %p90
    %p92 = scmp.ne.s32.totalorder %s84, %s86
    %p93 = scmp.eq.s32.totalorder %s20, 3
    %p94 = por %p92, %p93
    %p95 = scmp.ne.s32.totalorder %s86, %s87
    %p96 = scmp.eq.s32.totalorder %s20, 0
    %p97 = por %p95, %p96
    %p98 = scmp.ne.s32.totalorder %s86, %s87
    %p99 = scmp.eq.s32.totalorder %s21, 3
    %p100 = por %p98, %p99
    %p102 = scmp.ne.s32.totalorder %s87, %s101
    %p103 = scmp.eq.s32.totalorder %s21, 0
    %p104 = por %p102, %p103
    %s106 = sadd.s32 %s105, 1
    %p109 = scmp.eq.s32.totalorder %s15, 3
    %p110 = scmp.ne.s32.totalorder %s105, %s107
    %p111 = scmp.eq.s32.totalorder %s15, 0
    %p112 = por %p110, %p111
    %p113 = scmp.ne.s32.totalorder %s105, %s107
    %p114 = scmp.eq.s32.totalorder %s20, 3
    %p115 = por %p113, %p114
    %p116 = scmp.ne.s32.totalorder %s107, %s108
    %p117 = scmp.eq.s32.totalorder %s20, 0
    %p118 = por %p116, %p117
    %p119 = scmp.ne.s32.totalorder %s107, %s108
    %p120 = scmp.eq.s32.totalorder %s21, 3
    %p121 = por %p119, %p120
    %p123 = scmp.ne.s32.totalorder %s108, %s122
    %p124 = scmp.eq.s32.totalorder %s21, 0
    %p125 = por %p123, %p124
    %s127 = sadd.s32 %s126, 1
    %p130 = scmp.eq.s32.totalorder %s15, 3
    %p131 = scmp.ne.s32.totalorder %s126, %s128
    %p132 = scmp.eq.s32.totalorder %s15, 0
    %p133 = por %p131, %p132
    %p134 = scmp.ne.s32.totalorder %s126, %s128
    %p135 = scmp.eq.s32.totalorder %s20, 3
    %p136 = por %p134, %p135
    %p137 = scmp.ne.s32.totalorder %s128, %s129
    %p138 = scmp.eq.s32.totalorder %s20, 0
    %p139 = por %p137, %p138
    %p140 = scmp.ne.s32.totalorder %s128, %s129
    %p141 = scmp.eq.s32.totalorder %s21, 3
    %p142 = por %p140, %p141
    %p144 = scmp.ne.s32.totalorder %s129, %s143
    %p145 = scmp.eq.s32.totalorder %s21, 0
    %p146 = por %p144, %p145
    %s148 = sadd.s32 %s147, 1
    %p151 = scmp.eq.s32.totalorder %s15, 3
    %p152 = scmp.ne.s32.totalorder %s147, %s149
    %p153 = scmp.eq.s32.totalorder %s15, 0
    %p154 = por %p152, %p153
    %p155 = scmp.ne.s32.totalorder %s147, %s149
    %p156 = scmp.eq.s32.totalorder %s20, 3
    %p157 = por %p155, %p156
    %p158 = scmp.ne.s32.totalorder %s149, %s150
    %p159 = scmp.eq.s32.totalorder %s20, 0
    %p160 = por %p158, %p159
    %p161 = scmp.ne.s32.totalorder %s149, %s150
    %p162 = scmp.eq.s32.totalorder %s21, 3
    %p163 = por %p161, %p162
    %p165 = scmp.ne.s32.totalorder %s150, %s164
    %p166 = scmp.eq.s32.totalorder %s21, 0
    %p167 = por %p165, %p166
    %s169 = sadd.s32 %s168, 1
    %p172 = scmp.eq.s32.totalorder %s15, 3
    %p173 = scmp.ne.s32.totalorder %s168, %s170
    %p174 = scmp.eq.s32.totalorder %s15, 0
    %p175 = por %p173, %p174
    %p176 = scmp.ne.s32.totalorder %s168, %s170
    %p177 = scmp.eq.s32.totalorder %s20, 3
    %p178 = por %p176, %p177
    %p179 = scmp.ne.s32.totalorder %s170, %s171
    %p180 = scmp.eq.s32.totalorder %s20, 0
    %p181 = por %p179, %p180
    %p182 = scmp.ne.s32.totalorder %s170, %s171
    %p183 = scmp.eq.s32.totalorder %s21, 3
    %p184 = por %p182, %p183
    %p186 = scmp.ne.s32.totalorder %s171, %s185
    %p187 = scmp.eq.s32.totalorder %s21, 0
    %p188 = por %p186, %p187
    %s190 = sadd.s32 %s189, 1
    %p193 = scmp.eq.s32.totalorder %s15, 3
    %p194 = scmp.ne.s32.totalorder %s189, %s191
    %p195 = scmp.eq.s32.totalorder %s15, 0
    %p196 = por %p194, %p195
    %p197 = scmp.ne.s32.totalorder %s189, %s191
    %p198 = scmp.eq.s32.totalorder %s20, 3
    %p199 = por %p197, %p198
    %p200 = scmp.ne.s32.totalorder %s191, %s192
    %p201 = scmp.eq.s32.totalorder %s20, 0
    %p202 = por %p200, %p201
    %p203 = scmp.ne.s32.totalorder %s191, %s192
    %p204 = scmp.eq.s32.totalorder %s21, 3
    %p205 = por %p203, %p204
    %p207 = scmp.ne.s32.totalorder %s192, %s206
    %p208 = scmp.eq.s32.totalorder %s21, 0
    %p209 = por %p207, %p208
    %s211 = sadd.s32 %s210, 1
    %p214 = scmp.eq.s32.totalorder %s15, 3
    %p215 = scmp.ne.s32.totalorder %s210, %s212
    %p216 = scmp.eq.s32.totalorder %s15, 0
    %p217 = por %p215, %p216
    %p218 = scmp.ne.s32.totalorder %s210, %s212
    %p219 = scmp.eq.s32.totalorder %s20, 3
    %p220 = por %p218, %p219
    %p221 = scmp.ne.s32.totalorder %s212, %s213
    %p222 = scmp.eq.s32.totalorder %s20, 0
    %p223 = por %p221, %p222
    %p224 = scmp.ne.s32.totalorder %s212, %s213
    %p225 = scmp.eq.s32.totalorder %s21, 3
    %p226 = por %p224, %p225
    %p228 = scmp.ne.s32.totalorder %s213, %s227
    %p229 = scmp.eq.s32.totalorder %s21, 0
    %p230 = por %p228, %p229
    %s231 = ssub.s32 %s22, %s34
    %s232 = ssub.s32 %s23, %s30
    %s233 = sor.u32 %s231, %s232
    %p234 = scmp.eq.s32.totalorder %s233, 0
    %s236 = sadd.s32 %s235, 1
    %s237 = scalar_select %p234, %s235, %s236
    %p240 = pneg %p234
    %p241 = scmp.eq.s32.totalorder %s15, 3
    %p242 = por %p240, %p241
    %p243 = scmp.ne.s32.totalorder %s235, %s238
    %p244 = scmp.eq.s32.totalorder %s15, 0
    %p245 = por %p243, %p244
    %p246 = scmp.ne.s32.totalorder %s235, %s238
    %p247 = scmp.eq.s32.totalorder %s20, 3
    %p248 = por %p246, %p247
    %p249 = scmp.ne.s32.totalorder %s238, %s239
    %p250 = scmp.eq.s32.totalorder %s20, 0
    %p251 = por %p249, %p250
    %p252 = scmp.ne.s32.totalorder %s238, %s239
    %p253 = scmp.eq.s32.totalorder %s21, 3
    %p254 = por %p252, %p253
    %p256 = scmp.ne.s32.totalorder %s239, %s255
    %p257 = scmp.eq.s32.totalorder %s21, 0
    %p258 = por %p256, %p257
    %p259 = scmp.le.s32.totalorder 1, %s15
    %p260 = scmp.lt.s32.totalorder %s15, 5
    %p261 = pnand %p259, %p260
    %p262 = pneg %p261
    // Predicated region
    $region9: #{_lambda_.1} parent=5 // pred_check
      _
    $region10: #{_lambda_.1} parent=5 // pred_check_branch
      %264 = sbr.rel (%p261) target = $region12
    $region11: #{_lambda_.1} parent=5 // pred_region
      %s265 = ssub.s32 %s15, 1
      // Predicated region
      $region13: #{_lambda_.1} parent=11 // pred_check
        %p266 = pneg %p76
      $region14: #{_lambda_.1} parent=11 // pred_check_branch
        %268 = sbr.rel (%p266) target = $region16
      $region15: #{_lambda_.1} parent=11 // pred_region
        _
      $region16: #{_lambda_.1} parent=11 // pred_fallthru
        _
      // Predicated region
      $region17: #{_lambda_.1} parent=11 // pred_check
        %p269 = pneg %p97
      $region18: #{_lambda_.1} parent=11 // pred_check_branch
        %271 = sbr.rel (%p269) target = $region20
      $region19: #{_lambda_.1} parent=11 // pred_region
        _
      $region20: #{_lambda_.1} parent=11 // pred_fallthru
        _
      // Predicated region
      $region21: #{_lambda_.1} parent=11 // pred_check
        %p272 = pneg %p118
      $region22: #{_lambda_.1} parent=11 // pred_check_branch
        %274 = sbr.rel (%p272) target = $region24
      $region23: #{_lambda_.1} parent=11 // pred_region
        _
      $region24: #{_lambda_.1} parent=11 // pred_fallthru
        _
      // Predicated region
      $region25: #{_lambda_.1} parent=11 // pred_check
        %p275 = pneg %p139
      $region26: #{_lambda_.1} parent=11 // pred_check_branch
        %277 = sbr.rel (%p275) target = $region28
      $region27: #{_lambda_.1} parent=11 // pred_region
        _
      $region28: #{_lambda_.1} parent=11 // pred_fallthru
        _
      // Predicated region
      $region29: #{_lambda_.1} parent=11 // pred_check
        %p278 = pneg %p160
      $region30: #{_lambda_.1} parent=11 // pred_check_branch
        %280 = sbr.rel (%p278) target = $region32
      $region31: #{_lambda_.1} parent=11 // pred_region
        _
      $region32: #{_lambda_.1} parent=11 // pred_fallthru
        _
      // Predicated region
      $region33: #{_lambda_.1} parent=11 // pred_check
        %p281 = pneg %p181
      $region34: #{_lambda_.1} parent=11 // pred_check_branch
        %283 = sbr.rel (%p281) target = $region36
      $region35: #{_lambda_.1} parent=11 // pred_region
        _
      $region36: #{_lambda_.1} parent=11 // pred_fallthru
        _
      // Predicated region
      $region37: #{_lambda_.1} parent=11 // pred_check
        %p284 = pneg %p202
      $region38: #{_lambda_.1} parent=11 // pred_check_branch
        %286 = sbr.rel (%p284) target = $region40
      $region39: #{_lambda_.1} parent=11 // pred_region
        _
      $region40: #{_lambda_.1} parent=11 // pred_fallthru
        _
      // Predicated region
      $region41: #{_lambda_.1} parent=11 // pred_check
        %p287 = pneg %p223
      $region42: #{_lambda_.1} parent=11 // pred_check_branch
        %289 = sbr.rel (%p287) target = $region44
      $region43: #{_lambda_.1} parent=11 // pred_region
        _
      $region44: #{_lambda_.1} parent=11 // pred_fallthru
        _
    $region12: #{_lambda_.1} parent=5 // pred_fallthru
      _
    %p290 = scmp.lt.s32.totalorder %s15, 4
    // Predicated region
    $region45: #{_lambda_.1} parent=5 // pred_check
      %p291 = pneg %p290
    $region46: #{_lambda_.1} parent=5 // pred_check_branch
      %293 = sbr.rel (%p291) target = $region48
    $region47: #{_lambda_.1} parent=5 // pred_region
      // Predicated region
      $region49: #{_lambda_.1} parent=47 // pred_check
        %p294 = pneg %p49
      $region50: #{_lambda_.1} parent=47 // pred_check_branch
        %296 = sbr.rel (%p294) target = $region52
      $region51: #{_lambda_.1} parent=47 // pred_region
        %p297 = scmp.lt.s32.totalorder %s22, 1
        %s298 = scalar_select %p297, %s22, 1
        %p299 = scmp.lt.s32.totalorder %s23, 1
        %s300 = scalar_select %p299, %s23, 1
        %s301 = smul.addr %s300, 36
        %s302 = smul.addr %s298, 72
        %s303 = sadd.s32 %s301, %s302
        %s304 = smul.addr %s303, 8
        %s305 = scalar_lea.vmem %s0, %s304
      $region52: #{_lambda_.1} parent=47 // pred_fallthru
        _
    $region48: #{_lambda_.1} parent=5 // pred_fallthru
      _
    %p306 = scmp.le.s32.totalorder 1, %s15
    %p307 = scmp.lt.s32.totalorder %s15, 5
    %p308 = pnand %p306, %p307
    %p309 = pneg %p308
    // Predicated region
    $region53: #{_lambda_.1} parent=5 // pred_check
      _
    $region54: #{_lambda_.1} parent=5 // pred_check_branch
      %311 = sbr.rel (%p308) target = $region56
    $region55: #{_lambda_.1} parent=5 // pred_region
      %s312 = ssub.s32 %s15, 1
      %p313 = scmp.lt.s32.totalorder %s24, 1
      %s314 = scalar_select %p313, %s24, 1
      %p315 = scmp.lt.s32.totalorder %s25, 1
      %s316 = scalar_select %p315, %s25, 1
      %s317 = smul.addr %s316, 36
      %s318 = smul.addr %s314, 72
      %s319 = sadd.s32 %s317, %s318
      %s320 = smul.addr %s319, 8
      %s321 = scalar_lea.vmem %s0, %s320
      %p322 = pneg %p55
      %p323 = pneg %p52
      %p324 = pneg %p76
      %p325 = pneg %p73
      %p326 = pneg %p97
      %p327 = pneg %p94
      %p328 = pneg %p118
      %p329 = pneg %p115
      %p330 = pneg %p139
      %p331 = pneg %p136
      %p332 = pneg %p160
      %p333 = pneg %p157
      %p334 = pneg %p181
      %p335 = pneg %p178
      %p336 = pneg %p202
      %p337 = pneg %p199
      %p338 = pneg %p223
      %p339 = pneg %p220
      %p340 = pneg %p251
      %p341 = pneg %p248
      %s342 = smul.u32 8, %s25
      %p343 = scmp.lt.s32.totalorder %s24, 1
      %s344 = scalar_select %p343, %s24, 1
      %p345 = scmp.lt.s32.totalorder %s342, 15
      %s346 = scalar_select %p345, %s342, 15
      %s347 = smul.addr %s346, 2
      %s348 = smul.addr %s344, 32
      %s349 = sadd.s32 %s347, %s348
      %s350 = smul.addr %s349, 8
      %s351 = scalar_lea.vmem %s9, %s350
      %p352 = scmp.lt.s32.totalorder %s24, 1
      %s353 = scalar_select %p352, %s24, 1
      %p354 = scmp.lt.s32.totalorder %s25, 1
      %s355 = scalar_select %p354, %s25, 1
      %s356 = smul.addr %s355, 36
      %s357 = smul.addr %s353, 72
      %s358 = sadd.s32 %s356, %s357
      %s359 = smul.addr %s358, 8
      %s360 = scalar_lea.vmem %s0, %s359
      %s361 = smul.u32 8, %s25
      %p362 = scmp.lt.s32.totalorder %s24, 1
      %s363 = scalar_select %p362, %s24, 1
      %p364 = scmp.lt.s32.totalorder %s361, 15
      %s365 = scalar_select %p364, %s361, 15
      %s366 = smul.addr %s365, 2
      %s367 = smul.addr %s363, 32
      %s368 = sadd.s32 %s366, %s367
      %s369 = smul.addr %s368, 8
      %s370 = scalar_lea.vmem %s9, %s369
      %s371 = smul.u32 8, %s25
      %v373 = vld [vmem:[%s1] sm:$0xff]
      %v374 = vld [vmem:[%s1 + $0x8] sm:$0x1]
      %v375 = vld [vmem:[%s360] sm:$0xff]
      %v376 = vld [vmem:[%s360 + $0x8] sm:$0xff]
      %v377 = vld [vmem:[%s360 + $0x10] sm:$0x3]
      %v378 = vld [vmem:[%s360 + $0x18] sm:$0xff]
      %v379 = vld [vmem:[%s360 + $0x20] sm:$0xff]
      %v380 = vld [vmem:[%s360 + $0x28] sm:$0x3]
      %v381 = vld [vmem:[%s360 + $0x30] sm:$0xff]
      %v382 = vld [vmem:[%s360 + $0x38] sm:$0xff]
      %v383 = vld [vmem:[%s360 + $0x40] sm:$0x3]
      %v384 = vld [vmem:[%s360 + $0x48] sm:$0xff]
      %v385 = vld [vmem:[%s360 + $0x50] sm:$0xff]
      %v386 = vld [vmem:[%s360 + $0x58] sm:$0x3]
      %v387 = vld [vmem:[%s360 + $0x60] sm:$0xff]
      %v388 = vld [vmem:[%s360 + $0x68] sm:$0xff]
      %v389 = vld [vmem:[%s360 + $0x70] sm:$0x3]
      %v390 = vld [vmem:[%s360 + $0x78] sm:$0xff]
      %v391 = vld [vmem:[%s360 + $0x80] sm:$0xff]
      %v392 = vld [vmem:[%s360 + $0x88] sm:$0x3]
      %v393 = vld [vmem:[%s360 + $0x90] sm:$0xff]
      %v394 = vld [vmem:[%s360 + $0x98] sm:$0xff]
      %v395 = vld [vmem:[%s360 + $0xa0] sm:$0x3]
      %v396 = vld [vmem:[%s360 + $0xa8] sm:$0xff]
      %v397 = vld [vmem:[%s360 + $0xb0] sm:$0xff]
      %v398 = vld [vmem:[%s360 + $0xb8] sm:$0x3]
      %v399 = vld [vmem:[%s360 + $0xc0] sm:$0xff]
      %v400 = vld [vmem:[%s360 + $0xc8] sm:$0xff]
      %v401 = vld [vmem:[%s360 + $0xd0] sm:$0x3]
      %v402 = vld [vmem:[%s360 + $0xd8] sm:$0xff]
      %v403 = vld [vmem:[%s360 + $0xe0] sm:$0xff]
      %v404 = vld [vmem:[%s360 + $0xe8] sm:$0x3]
      %v405 = vlaneseq
      %v406 = vshrl.u32 %v405, 7
      %v407 = vsub.s32 0, %v406
      %v408 = vrot.slane %v373, %v407
      %v409 = vmul.f32 %v375, %v408
      %v410 = vmul.f32 %v376, %v408
      %v411 = vmul.f32 %v378, %v408
      %v412 = vmul.f32 %v379, %v408
      %v413 = vmul.f32 %v381, %v408
      %v414 = vmul.f32 %v382, %v408
      %v415 = vmul.f32 %v384, %v408
      %v416 = vmul.f32 %v385, %v408
      %v417 = vmul.f32 %v387, %v408
      %v418 = vmul.f32 %v388, %v408
      %v419 = vmul.f32 %v390, %v408
      %v420 = vmul.f32 %v391, %v408
      %v421 = vmul.f32 %v393, %v408
      %v422 = vmul.f32 %v394, %v408
      %v423 = vmul.f32 %v396, %v408
      %v424 = vmul.f32 %v397, %v408
      %v425 = vmul.f32 %v399, %v408
      %v426 = vmul.f32 %v400, %v408
      %v427 = vmul.f32 %v402, %v408
      %v428 = vmul.f32 %v403, %v408
      %v429 = vlaneseq
      %v430 = vshrl.u32 %v429, 7
      %v431 = vsub.s32 1, %v430
      %v432 = vrot.slane %v373, %v431
      %v433 = vmul.f32 %v375, %v432
      %v434 = vmul.f32 %v376, %v432
      %v435 = vmul.f32 %v377, %v432
      %v436 = vmul.f32 %v378, %v432
      %v437 = vmul.f32 %v379, %v432
      %v438 = vmul.f32 %v380, %v432
      %v439 = vmul.f32 %v381, %v432
      %v440 = vmul.f32 %v382, %v432
      %v441 = vmul.f32 %v383, %v432
      %v442 = vmul.f32 %v384, %v432
      %v443 = vmul.f32 %v385, %v432
      %v444 = vmul.f32 %v386, %v432
      %v445 = vmul.f32 %v387, %v432
      %v446 = vmul.f32 %v388, %v432
      %v447 = vmul.f32 %v389, %v432
      %v448 = vmul.f32 %v390, %v432
      %v449 = vmul.f32 %v391, %v432
      %v450 = vmul.f32 %v392, %v432
      %v451 = vmul.f32 %v393, %v432
      %v452 = vmul.f32 %v394, %v432
      %v453 = vmul.f32 %v395, %v432
      %v454 = vmul.f32 %v396, %v432
      %v455 = vmul.f32 %v397, %v432
      %v456 = vmul.f32 %v398, %v432
      %v457 = vmul.f32 %v399, %v432
      %v458 = vmul.f32 %v400, %v432
      %v459 = vmul.f32 %v401, %v432
      %v460 = vmul.f32 %v402, %v432
      %v461 = vmul.f32 %v403, %v432
      %v462 = vmul.f32 %v404, %v432
      %vm493 = vcmask 1046528
      %v494 = vrot.slane %v433, 1
      %v495 = vrot.slane %v434, 1
      %v496 = vsel %vm493, %v494, %v495
      %v497 = vrot.slane %v435, 1
      %v498 = vsel %vm493, %v495, %v497
      %v499 = vrot.slane %v436, 1
      %v500 = vrot.slane %v437, 1
      %v501 = vsel %vm493, %v499, %v500
      %v502 = vrot.slane %v438, 1
      %v503 = vsel %vm493, %v500, %v502
      %v504 = vrot.slane %v439, 1
      %v505 = vrot.slane %v440, 1
      %v506 = vsel %vm493, %v504, %v505
      %v507 = vrot.slane %v441, 1
      %v508 = vsel %vm493, %v505, %v507
      %v509 = vrot.slane %v442, 1
      %v510 = vrot.slane %v443, 1
      %v511 = vsel %vm493, %v509, %v510
      %v512 = vrot.slane %v444, 1
      %v513 = vsel %vm493, %v510, %v512
      %v514 = vrot.slane %v445, 1
      %v515 = vrot.slane %v446, 1
      %v516 = vsel %vm493, %v514, %v515
      %v517 = vrot.slane %v447, 1
      %v518 = vsel %vm493, %v515, %v517
      %v519 = vrot.slane %v448, 1
      %v520 = vrot.slane %v449, 1
      %v521 = vsel %vm493, %v519, %v520
      %v522 = vrot.slane %v450, 1
      %v523 = vsel %vm493, %v520, %v522
      %v524 = vrot.slane %v451, 1
      %v525 = vrot.slane %v452, 1
      %v526 = vsel %vm493, %v524, %v525
      %v527 = vrot.slane %v453, 1
      %v528 = vsel %vm493, %v525, %v527
      %v529 = vrot.slane %v454, 1
      %v530 = vrot.slane %v455, 1
      %v531 = vsel %vm493, %v529, %v530
      %v532 = vrot.slane %v456, 1
      %v533 = vsel %vm493, %v530, %v532
      %v534 = vrot.slane %v457, 1
      %v535 = vrot.slane %v458, 1
      %v536 = vsel %vm493, %v534, %v535
      %v537 = vrot.slane %v459, 1
      %v538 = vsel %vm493, %v535, %v537
      %v539 = vrot.slane %v460, 1
      %v540 = vrot.slane %v461, 1
      %v541 = vsel %vm493, %v539, %v540
      %v542 = vrot.slane %v462, 1
      %v543 = vsel %vm493, %v540, %v542
      %v564 = vadd.f32 %v409, %v496
      %v565 = vadd.f32 %v410, %v498
      %v566 = vadd.f32 %v411, %v501
      %v567 = vadd.f32 %v412, %v503
      %v568 = vadd.f32 %v413, %v506
      %v569 = vadd.f32 %v414, %v508
      %v570 = vadd.f32 %v415, %v511
      %v571 = vadd.f32 %v416, %v513
      %v572 = vadd.f32 %v417, %v516
      %v573 = vadd.f32 %v418, %v518
      %v574 = vadd.f32 %v419, %v521
      %v575 = vadd.f32 %v420, %v523
      %v576 = vadd.f32 %v421, %v526
      %v577 = vadd.f32 %v422, %v528
      %v578 = vadd.f32 %v423, %v531
      %v579 = vadd.f32 %v424, %v533
      %v580 = vadd.f32 %v425, %v536
      %v581 = vadd.f32 %v426, %v538
      %v582 = vadd.f32 %v427, %v541
      %v583 = vadd.f32 %v428, %v543
      %v584 = vlaneseq
      %v585 = vshrl.u32 %v584, 7
      %v586 = vsub.s32 2, %v585
      %v587 = vrot.slane %v373, %v586
      %v588 = vmul.f32 %v375, %v587
      %v589 = vmul.f32 %v376, %v587
      %v590 = vmul.f32 %v377, %v587
      %v591 = vmul.f32 %v378, %v587
      %v592 = vmul.f32 %v379, %v587
      %v593 = vmul.f32 %v380, %v587
      %v594 = vmul.f32 %v381, %v587
      %v595 = vmul.f32 %v382, %v587
      %v596 = vmul.f32 %v383, %v587
      %v597 = vmul.f32 %v384, %v587
      %v598 = vmul.f32 %v385, %v587
      %v599 = vmul.f32 %v386, %v587
      %v600 = vmul.f32 %v387, %v587
      %v601 = vmul.f32 %v388, %v587
      %v602 = vmul.f32 %v389, %v587
      %v603 = vmul.f32 %v390, %v587
      %v604 = vmul.f32 %v391, %v587
      %v605 = vmul.f32 %v392, %v587
      %v606 = vmul.f32 %v393, %v587
      %v607 = vmul.f32 %v394, %v587
      %v608 = vmul.f32 %v395, %v587
      %v609 = vmul.f32 %v396, %v587
      %v610 = vmul.f32 %v397, %v587
      %v611 = vmul.f32 %v398, %v587
      %v612 = vmul.f32 %v399, %v587
      %v613 = vmul.f32 %v400, %v587
      %v614 = vmul.f32 %v401, %v587
      %v615 = vmul.f32 %v402, %v587
      %v616 = vmul.f32 %v403, %v587
      %v617 = vmul.f32 %v404, %v587
      %vm648 = vcmask 1045504
      %v649 = vrot.slane %v588, 2
      %v650 = vrot.slane %v589, 2
      %v651 = vsel %vm648, %v649, %v650
      %v652 = vrot.slane %v590, 2
      %v653 = vsel %vm648, %v650, %v652
      %v654 = vrot.slane %v591, 2
      %v655 = vrot.slane %v592, 2
      %v656 = vsel %vm648, %v654, %v655
      %v657 = vrot.slane %v593, 2
      %v658 = vsel %vm648, %v655, %v657
      %v659 = vrot.slane %v594, 2
      %v660 = vrot.slane %v595, 2
      %v661 = vsel %vm648, %v659, %v660
      %v662 = vrot.slane %v596, 2
      %v663 = vsel %vm648, %v660, %v662
      %v664 = vrot.slane %v597, 2
      %v665 = vrot.slane %v598, 2
      %v666 = vsel %vm648, %v664, %v665
      %v667 = vrot.slane %v599, 2
      %v668 = vsel %vm648, %v665, %v667
      %v669 = vrot.slane %v600, 2
      %v670 = vrot.slane %v601, 2
      %v671 = vsel %vm648, %v669, %v670
      %v672 = vrot.slane %v602, 2
      %v673 = vsel %vm648, %v670, %v672
      %v674 = vrot.slane %v603, 2
      %v675 = vrot.slane %v604, 2
      %v676 = vsel %vm648, %v674, %v675
      %v677 = vrot.slane %v605, 2
      %v678 = vsel %vm648, %v675, %v677
      %v679 = vrot.slane %v606, 2
      %v680 = vrot.slane %v607, 2
      %v681 = vsel %vm648, %v679, %v680
      %v682 = vrot.slane %v608, 2
      %v683 = vsel %vm648, %v680, %v682
      %v684 = vrot.slane %v609, 2
      %v685 = vrot.slane %v610, 2
      %v686 = vsel %vm648, %v684, %v685
      %v687 = vrot.slane %v611, 2
      %v688 = vsel %vm648, %v685, %v687
      %v689 = vrot.slane %v612, 2
      %v690 = vrot.slane %v613, 2
      %v691 = vsel %vm648, %v689, %v690
      %v692 = vrot.slane %v614, 2
      %v693 = vsel %vm648, %v690, %v692
      %v694 = vrot.slane %v615, 2
      %v695 = vrot.slane %v616, 2
      %v696 = vsel %vm648, %v694, %v695
      %v697 = vrot.slane %v617, 2
      %v698 = vsel %vm648, %v695, %v697
      %v719 = vadd.f32 %v564, %v651
      %v720 = vadd.f32 %v565, %v653
      %v721 = vadd.f32 %v566, %v656
      %v722 = vadd.f32 %v567, %v658
      %v723 = vadd.f32 %v568, %v661
      %v724 = vadd.f32 %v569, %v663
      %v725 = vadd.f32 %v570, %v666
      %v726 = vadd.f32 %v571, %v668
      %v727 = vadd.f32 %v572, %v671
      %v728 = vadd.f32 %v573, %v673
      %v729 = vadd.f32 %v574, %v676
      %v730 = vadd.f32 %v575, %v678
      %v731 = vadd.f32 %v576, %v681
      %v732 = vadd.f32 %v577, %v683
      %v733 = vadd.f32 %v578, %v686
      %v734 = vadd.f32 %v579, %v688
      %v735 = vadd.f32 %v580, %v691
      %v736 = vadd.f32 %v581, %v693
      %v737 = vadd.f32 %v582, %v696
      %v738 = vadd.f32 %v583, %v698
      %s739 = scalar_lea.vmem %s360, 24
      %v740 = vld [vmem:[%s739] sm:$0xff]
      %v741 = vld [vmem:[%s739 + $0x8] sm:$0xff]
      %v742 = vld [vmem:[%s739 + $0x10] sm:$0x3]
      %v743 = vld [vmem:[%s739 + $0x18] sm:$0xff]
      %v744 = vld [vmem:[%s739 + $0x20] sm:$0xff]
      %v745 = vld [vmem:[%s739 + $0x28] sm:$0x3]
      %v746 = vld [vmem:[%s739 + $0x30] sm:$0xff]
      %v747 = vld [vmem:[%s739 + $0x38] sm:$0xff]
      %v748 = vld [vmem:[%s739 + $0x40] sm:$0x3]
      %v749 = vld [vmem:[%s739 + $0x48] sm:$0xff]
      %v750 = vld [vmem:[%s739 + $0x50] sm:$0xff]
      %v751 = vld [vmem:[%s739 + $0x58] sm:$0x3]
      %v752 = vld [vmem:[%s739 + $0x60] sm:$0xff]
      %v753 = vld [vmem:[%s739 + $0x68] sm:$0xff]
      %v754 = vld [vmem:[%s739 + $0x70] sm:$0x3]
      %v755 = vld [vmem:[%s739 + $0x78] sm:$0xff]
      %v756 = vld [vmem:[%s739 + $0x80] sm:$0xff]
      %v757 = vld [vmem:[%s739 + $0x88] sm:$0x3]
      %v758 = vld [vmem:[%s739 + $0x90] sm:$0xff]
      %v759 = vld [vmem:[%s739 + $0x98] sm:$0xff]
      %v760 = vld [vmem:[%s739 + $0xa0] sm:$0x3]
      %v761 = vld [vmem:[%s739 + $0xa8] sm:$0xff]
      %v762 = vld [vmem:[%s739 + $0xb0] sm:$0xff]
      %v763 = vld [vmem:[%s739 + $0xb8] sm:$0x3]
      %v764 = vld [vmem:[%s739 + $0xc0] sm:$0xff]
      %v765 = vld [vmem:[%s739 + $0xc8] sm:$0xff]
      %v766 = vld [vmem:[%s739 + $0xd0] sm:$0x3]
      %v767 = vld [vmem:[%s739 + $0xd8] sm:$0xff]
      %v768 = vld [vmem:[%s739 + $0xe0] sm:$0xff]
      %v769 = vld [vmem:[%s739 + $0xe8] sm:$0x3]
      %v770 = vlaneseq
      %v771 = vshrl.u32 %v770, 7
      %v772 = vsub.s32 3, %v771
      %v773 = vrot.slane %v373, %v772
      %v774 = vmul.f32 %v740, %v773
      %v775 = vmul.f32 %v741, %v773
      %v776 = vmul.f32 %v743, %v773
      %v777 = vmul.f32 %v744, %v773
      %v778 = vmul.f32 %v746, %v773
      %v779 = vmul.f32 %v747, %v773
      %v780 = vmul.f32 %v749, %v773
      %v781 = vmul.f32 %v750, %v773
      %v782 = vmul.f32 %v752, %v773
      %v783 = vmul.f32 %v753, %v773
      %v784 = vmul.f32 %v755, %v773
      %v785 = vmul.f32 %v756, %v773
      %v786 = vmul.f32 %v758, %v773
      %v787 = vmul.f32 %v759, %v773
      %v788 = vmul.f32 %v761, %v773
      %v789 = vmul.f32 %v762, %v773
      %v790 = vmul.f32 %v764, %v773
      %v791 = vmul.f32 %v765, %v773
      %v792 = vmul.f32 %v767, %v773
      %v793 = vmul.f32 %v768, %v773
      %v794 = vadd.f32 %v719, %v774
      %v795 = vadd.f32 %v720, %v775
      %v796 = vadd.f32 %v721, %v776
      %v797 = vadd.f32 %v722, %v777
      %v798 = vadd.f32 %v723, %v778
      %v799 = vadd.f32 %v724, %v779
      %v800 = vadd.f32 %v725, %v780
      %v801 = vadd.f32 %v726, %v781
      %v802 = vadd.f32 %v727, %v782
      %v803 = vadd.f32 %v728, %v783
      %v804 = vadd.f32 %v729, %v784
      %v805 = vadd.f32 %v730, %v785
      %v806 = vadd.f32 %v731, %v786
      %v807 = vadd.f32 %v732, %v787
      %v808 = vadd.f32 %v733, %v788
      %v809 = vadd.f32 %v734, %v789
      %v810 = vadd.f32 %v735, %v790
      %v811 = vadd.f32 %v736, %v791
      %v812 = vadd.f32 %v737, %v792
      %v813 = vadd.f32 %v738, %v793
      %v814 = vlaneseq
      %v815 = vshrl.u32 %v814, 7
      %v816 = vsub.s32 4, %v815
      %v817 = vrot.slane %v373, %v816
      %v818 = vmul.f32 %v740, %v817
      %v819 = vmul.f32 %v741, %v817
      %v820 = vmul.f32 %v742, %v817
      %v821 = vmul.f32 %v743, %v817
      %v822 = vmul.f32 %v744, %v817
      %v823 = vmul.f32 %v745, %v817
      %v824 = vmul.f32 %v746, %v817
      %v825 = vmul.f32 %v747, %v817
      %v826 = vmul.f32 %v748, %v817
      %v827 = vmul.f32 %v749, %v817
      %v828 = vmul.f32 %v750, %v817
      %v829 = vmul.f32 %v751, %v817
      %v830 = vmul.f32 %v752, %v817
      %v831 = vmul.f32 %v753, %v817
      %v832 = vmul.f32 %v754, %v817
      %v833 = vmul.f32 %v755, %v817
      %v834 = vmul.f32 %v756, %v817
      %v835 = vmul.f32 %v757, %v817
      %v836 = vmul.f32 %v758, %v817
      %v837 = vmul.f32 %v759, %v817
      %v838 = vmul.f32 %v760, %v817
      %v839 = vmul.f32 %v761, %v817
      %v840 = vmul.f32 %v762, %v817
      %v841 = vmul.f32 %v763, %v817
      %v842 = vmul.f32 %v764, %v817
      %v843 = vmul.f32 %v765, %v817
      %v844 = vmul.f32 %v766, %v817
      %v845 = vmul.f32 %v767, %v817
      %v846 = vmul.f32 %v768, %v817
      %v847 = vmul.f32 %v769, %v817
      %v878 = vrot.slane %v818, 1
      %v879 = vrot.slane %v819, 1
      %v880 = vsel %vm493, %v878, %v879
      %v881 = vrot.slane %v820, 1
      %v882 = vsel %vm493, %v879, %v881
      %v883 = vrot.slane %v821, 1
      %v884 = vrot.slane %v822, 1
      %v885 = vsel %vm493, %v883, %v884
      %v886 = vrot.slane %v823, 1
      %v887 = vsel %vm493, %v884, %v886
      %v888 = vrot.slane %v824, 1
      %v889 = vrot.slane %v825, 1
      %v890 = vsel %vm493, %v888, %v889
      %v891 = vrot.slane %v826, 1
      %v892 = vsel %vm493, %v889, %v891
      %v893 = vrot.slane %v827, 1
      %v894 = vrot.slane %v828, 1
      %v895 = vsel %vm493, %v893, %v894
      %v896 = vrot.slane %v829, 1
      %v897 = vsel %vm493, %v894, %v896
      %v898 = vrot.slane %v830, 1
      %v899 = vrot.slane %v831, 1
      %v900 = vsel %vm493, %v898, %v899
      %v901 = vrot.slane %v832, 1
      %v902 = vsel %vm493, %v899, %v901
      %v903 = vrot.slane %v833, 1
      %v904 = vrot.slane %v834, 1
      %v905 = vsel %vm493, %v903, %v904
      %v906 = vrot.slane %v835, 1
      %v907 = vsel %vm493, %v904, %v906
      %v908 = vrot.slane %v836, 1
      %v909 = vrot.slane %v837, 1
      %v910 = vsel %vm493, %v908, %v909
      %v911 = vrot.slane %v838, 1
      %v912 = vsel %vm493, %v909, %v911
      %v913 = vrot.slane %v839, 1
      %v914 = vrot.slane %v840, 1
      %v915 = vsel %vm493, %v913, %v914
      %v916 = vrot.slane %v841, 1
      %v917 = vsel %vm493, %v914, %v916
      %v918 = vrot.slane %v842, 1
      %v919 = vrot.slane %v843, 1
      %v920 = vsel %vm493, %v918, %v919
      %v921 = vrot.slane %v844, 1
      %v922 = vsel %vm493, %v919, %v921
      %v923 = vrot.slane %v845, 1
      %v924 = vrot.slane %v846, 1
      %v925 = vsel %vm493, %v923, %v924
      %v926 = vrot.slane %v847, 1
      %v927 = vsel %vm493, %v924, %v926
      %v948 = vadd.f32 %v794, %v880
      %v949 = vadd.f32 %v795, %v882
      %v950 = vadd.f32 %v796, %v885
      %v951 = vadd.f32 %v797, %v887
      %v952 = vadd.f32 %v798, %v890
      %v953 = vadd.f32 %v799, %v892
      %v954 = vadd.f32 %v800, %v895
      %v955 = vadd.f32 %v801, %v897
      %v956 = vadd.f32 %v802, %v900
      %v957 = vadd.f32 %v803, %v902
      %v958 = vadd.f32 %v804, %v905
      %v959 = vadd.f32 %v805, %v907
      %v960 = vadd.f32 %v806, %v910
      %v961 = vadd.f32 %v807, %v912
      %v962 = vadd.f32 %v808, %v915
      %v963 = vadd.f32 %v809, %v917
      %v964 = vadd.f32 %v810, %v920
      %v965 = vadd.f32 %v811, %v922
      %v966 = vadd.f32 %v812, %v925
      %v967 = vadd.f32 %v813, %v927
      %v968 = vlaneseq
      %v969 = vshrl.u32 %v968, 7
      %v970 = vsub.s32 5, %v969
      %v971 = vrot.slane %v373, %v970
      %v972 = vmul.f32 %v740, %v971
      %v973 = vmul.f32 %v741, %v971
      %v974 = vmul.f32 %v742, %v971
      %v975 = vmul.f32 %v743, %v971
      %v976 = vmul.f32 %v744, %v971
      %v977 = vmul.f32 %v745, %v971
      %v978 = vmul.f32 %v746, %v971
      %v979 = vmul.f32 %v747, %v971
      %v980 = vmul.f32 %v748, %v971
      %v981 = vmul.f32 %v749, %v971
      %v982 = vmul.f32 %v750, %v971
      %v983 = vmul.f32 %v751, %v971
      %v984 = vmul.f32 %v752, %v971
      %v985 = vmul.f32 %v753, %v971
      %v986 = vmul.f32 %v754, %v971
      %v987 = vmul.f32 %v755, %v971
      %v988 = vmul.f32 %v756, %v971
      %v989 = vmul.f32 %v757, %v971
      %v990 = vmul.f32 %v758, %v971
      %v991 = vmul.f32 %v759, %v971
      %v992 = vmul.f32 %v760, %v971
      %v993 = vmul.f32 %v761, %v971
      %v994 = vmul.f32 %v762, %v971
      %v995 = vmul.f32 %v763, %v971
      %v996 = vmul.f32 %v764, %v971
      %v997 = vmul.f32 %v765, %v971
      %v998 = vmul.f32 %v766, %v971
      %v999 = vmul.f32 %v767, %v971
      %v1000 = vmul.f32 %v768, %v971
      %v1001 = vmul.f32 %v769, %v971
      %v1032 = vrot.slane %v972, 2
      %v1033 = vrot.slane %v973, 2
      %v1034 = vsel %vm648, %v1032, %v1033
      %v1035 = vrot.slane %v974, 2
      %v1036 = vsel %vm648, %v1033, %v1035
      %v1037 = vrot.slane %v975, 2
      %v1038 = vrot.slane %v976, 2
      %v1039 = vsel %vm648, %v1037, %v1038
      %v1040 = vrot.slane %v977, 2
      %v1041 = vsel %vm648, %v1038, %v1040
      %v1042 = vrot.slane %v978, 2
      %v1043 = vrot.slane %v979, 2
      %v1044 = vsel %vm648, %v1042, %v1043
      %v1045 = vrot.slane %v980, 2
      %v1046 = vsel %vm648, %v1043, %v1045
      %v1047 = vrot.slane %v981, 2
      %v1048 = vrot.slane %v982, 2
      %v1049 = vsel %vm648, %v1047, %v1048
      %v1050 = vrot.slane %v983, 2
      %v1051 = vsel %vm648, %v1048, %v1050
      %v1052 = vrot.slane %v984, 2
      %v1053 = vrot.slane %v985, 2
      %v1054 = vsel %vm648, %v1052, %v1053
      %v1055 = vrot.slane %v986, 2
      %v1056 = vsel %vm648, %v1053, %v1055
      %v1057 = vrot.slane %v987, 2
      %v1058 = vrot.slane %v988, 2
      %v1059 = vsel %vm648, %v1057, %v1058
      %v1060 = vrot.slane %v989, 2
      %v1061 = vsel %vm648, %v1058, %v1060
      %v1062 = vrot.slane %v990, 2
      %v1063 = vrot.slane %v991, 2
      %v1064 = vsel %vm648, %v1062, %v1063
      %v1065 = vrot.slane %v992, 2
      %v1066 = vsel %vm648, %v1063, %v1065
      %v1067 = vrot.slane %v993, 2
      %v1068 = vrot.slane %v994, 2
      %v1069 = vsel %vm648, %v1067, %v1068
      %v1070 = vrot.slane %v995, 2
      %v1071 = vsel %vm648, %v1068, %v1070
      %v1072 = vrot.slane %v996, 2
      %v1073 = vrot.slane %v997, 2
      %v1074 = vsel %vm648, %v1072, %v1073
      %v1075 = vrot.slane %v998, 2
      %v1076 = vsel %vm648, %v1073, %v1075
      %v1077 = vrot.slane %v999, 2
      %v1078 = vrot.slane %v1000, 2
      %v1079 = vsel %vm648, %v1077, %v1078
      %v1080 = vrot.slane %v1001, 2
      %v1081 = vsel %vm648, %v1078, %v1080
      %v1102 = vadd.f32 %v948, %v1034
      %v1103 = vadd.f32 %v949, %v1036
      %v1104 = vadd.f32 %v950, %v1039
      %v1105 = vadd.f32 %v951, %v1041
      %v1106 = vadd.f32 %v952, %v1044
      %v1107 = vadd.f32 %v953, %v1046
      %v1108 = vadd.f32 %v954, %v1049
      %v1109 = vadd.f32 %v955, %v1051
      %v1110 = vadd.f32 %v956, %v1054
      %v1111 = vadd.f32 %v957, %v1056
      %v1112 = vadd.f32 %v958, %v1059
      %v1113 = vadd.f32 %v959, %v1061
      %v1114 = vadd.f32 %v960, %v1064
      %v1115 = vadd.f32 %v961, %v1066
      %v1116 = vadd.f32 %v962, %v1069
      %v1117 = vadd.f32 %v963, %v1071
      %v1118 = vadd.f32 %v964, %v1074
      %v1119 = vadd.f32 %v965, %v1076
      %v1120 = vadd.f32 %v966, %v1079
      %v1121 = vadd.f32 %v967, %v1081
      %s1122 = scalar_lea.vmem %s360, 48
      %v1123 = vld [vmem:[%s1122] sm:$0xff]
      %v1124 = vld [vmem:[%s1122 + $0x8] sm:$0xff]
      %v1125 = vld [vmem:[%s1122 + $0x10] sm:$0x3]
      %v1126 = vld [vmem:[%s1122 + $0x18] sm:$0xff]
      %v1127 = vld [vmem:[%s1122 + $0x20] sm:$0xff]
      %v1128 = vld [vmem:[%s1122 + $0x28] sm:$0x3]
      %v1129 = vld [vmem:[%s1122 + $0x30] sm:$0xff]
      %v1130 = vld [vmem:[%s1122 + $0x38] sm:$0xff]
      %v1131 = vld [vmem:[%s1122 + $0x40] sm:$0x3]
      %v1132 = vld [vmem:[%s1122 + $0x48] sm:$0xff]
      %v1133 = vld [vmem:[%s1122 + $0x50] sm:$0xff]
      %v1134 = vld [vmem:[%s1122 + $0x58] sm:$0x3]
      %v1135 = vld [vmem:[%s1122 + $0x60] sm:$0xff]
      %v1136 = vld [vmem:[%s1122 + $0x68] sm:$0xff]
      %v1137 = vld [vmem:[%s1122 + $0x70] sm:$0x3]
      %v1138 = vld [vmem:[%s1122 + $0x78] sm:$0xff]
      %v1139 = vld [vmem:[%s1122 + $0x80] sm:$0xff]
      %v1140 = vld [vmem:[%s1122 + $0x88] sm:$0x3]
      %v1141 = vld [vmem:[%s1122 + $0x90] sm:$0xff]
      %v1142 = vld [vmem:[%s1122 + $0x98] sm:$0xff]
      %v1143 = vld [vmem:[%s1122 + $0xa0] sm:$0x3]
      %v1144 = vld [vmem:[%s1122 + $0xa8] sm:$0xff]
      %v1145 = vld [vmem:[%s1122 + $0xb0] sm:$0xff]
      %v1146 = vld [vmem:[%s1122 + $0xb8] sm:$0x3]
      %v1147 = vld [vmem:[%s1122 + $0xc0] sm:$0xff]
      %v1148 = vld [vmem:[%s1122 + $0xc8] sm:$0xff]
      %v1149 = vld [vmem:[%s1122 + $0xd0] sm:$0x3]
      %v1150 = vld [vmem:[%s1122 + $0xd8] sm:$0xff]
      %v1151 = vld [vmem:[%s1122 + $0xe0] sm:$0xff]
      %v1152 = vld [vmem:[%s1122 + $0xe8] sm:$0x3]
      %v1153 = vlaneseq
      %v1154 = vshrl.u32 %v1153, 7
      %v1155 = vsub.s32 6, %v1154
      %v1156 = vrot.slane %v373, %v1155
      %v1157 = vmul.f32 %v1123, %v1156
      %v1158 = vmul.f32 %v1124, %v1156
      %v1159 = vmul.f32 %v1126, %v1156
      %v1160 = vmul.f32 %v1127, %v1156
      %v1161 = vmul.f32 %v1129, %v1156
      %v1162 = vmul.f32 %v1130, %v1156
      %v1163 = vmul.f32 %v1132, %v1156
      %v1164 = vmul.f32 %v1133, %v1156
      %v1165 = vmul.f32 %v1135, %v1156
      %v1166 = vmul.f32 %v1136, %v1156
      %v1167 = vmul.f32 %v1138, %v1156
      %v1168 = vmul.f32 %v1139, %v1156
      %v1169 = vmul.f32 %v1141, %v1156
      %v1170 = vmul.f32 %v1142, %v1156
      %v1171 = vmul.f32 %v1144, %v1156
      %v1172 = vmul.f32 %v1145, %v1156
      %v1173 = vmul.f32 %v1147, %v1156
      %v1174 = vmul.f32 %v1148, %v1156
      %v1175 = vmul.f32 %v1150, %v1156
      %v1176 = vmul.f32 %v1151, %v1156
      %v1177 = vadd.f32 %v1102, %v1157
      %v1178 = vadd.f32 %v1103, %v1158
      %v1179 = vadd.f32 %v1104, %v1159
      %v1180 = vadd.f32 %v1105, %v1160
      %v1181 = vadd.f32 %v1106, %v1161
      %v1182 = vadd.f32 %v1107, %v1162
      %v1183 = vadd.f32 %v1108, %v1163
      %v1184 = vadd.f32 %v1109, %v1164
      %v1185 = vadd.f32 %v1110, %v1165
      %v1186 = vadd.f32 %v1111, %v1166
      %v1187 = vadd.f32 %v1112, %v1167
      %v1188 = vadd.f32 %v1113, %v1168
      %v1189 = vadd.f32 %v1114, %v1169
      %v1190 = vadd.f32 %v1115, %v1170
      %v1191 = vadd.f32 %v1116, %v1171
      %v1192 = vadd.f32 %v1117, %v1172
      %v1193 = vadd.f32 %v1118, %v1173
      %v1194 = vadd.f32 %v1119, %v1174
      %v1195 = vadd.f32 %v1120, %v1175
      %v1196 = vadd.f32 %v1121, %v1176
      %v1197 = vlaneseq
      %v1198 = vshrl.u32 %v1197, 7
      %v1199 = vsub.s32 7, %v1198
      %v1200 = vrot.slane %v373, %v1199
      %v1201 = vmul.f32 %v1123, %v1200
      %v1202 = vmul.f32 %v1124, %v1200
      %v1203 = vmul.f32 %v1125, %v1200
      %v1204 = vmul.f32 %v1126, %v1200
      %v1205 = vmul.f32 %v1127, %v1200
      %v1206 = vmul.f32 %v1128, %v1200
      %v1207 = vmul.f32 %v1129, %v1200
      %v1208 = vmul.f32 %v1130, %v1200
      %v1209 = vmul.f32 %v1131, %v1200
      %v1210 = vmul.f32 %v1132, %v1200
      %v1211 = vmul.f32 %v1133, %v1200
      %v1212 = vmul.f32 %v1134, %v1200
      %v1213 = vmul.f32 %v1135, %v1200
      %v1214 = vmul.f32 %v1136, %v1200
      %v1215 = vmul.f32 %v1137, %v1200
      %v1216 = vmul.f32 %v1138, %v1200
      %v1217 = vmul.f32 %v1139, %v1200
      %v1218 = vmul.f32 %v1140, %v1200
      %v1219 = vmul.f32 %v1141, %v1200
      %v1220 = vmul.f32 %v1142, %v1200
      %v1221 = vmul.f32 %v1143, %v1200
      %v1222 = vmul.f32 %v1144, %v1200
      %v1223 = vmul.f32 %v1145, %v1200
      %v1224 = vmul.f32 %v1146, %v1200
      %v1225 = vmul.f32 %v1147, %v1200
      %v1226 = vmul.f32 %v1148, %v1200
      %v1227 = vmul.f32 %v1149, %v1200
      %v1228 = vmul.f32 %v1150, %v1200
      %v1229 = vmul.f32 %v1151, %v1200
      %v1230 = vmul.f32 %v1152, %v1200
      %v1261 = vrot.slane %v1201, 1
      %v1262 = vrot.slane %v1202, 1
      %v1263 = vsel %vm493, %v1261, %v1262
      %v1264 = vrot.slane %v1203, 1
      %v1265 = vsel %vm493, %v1262, %v1264
      %v1266 = vrot.slane %v1204, 1
      %v1267 = vrot.slane %v1205, 1
      %v1268 = vsel %vm493, %v1266, %v1267
      %v1269 = vrot.slane %v1206, 1
      %v1270 = vsel %vm493, %v1267, %v1269
      %v1271 = vrot.slane %v1207, 1
      %v1272 = vrot.slane %v1208, 1
      %v1273 = vsel %vm493, %v1271, %v1272
      %v1274 = vrot.slane %v1209, 1
      %v1275 = vsel %vm493, %v1272, %v1274
      %v1276 = vrot.slane %v1210, 1
      %v1277 = vrot.slane %v1211, 1
      %v1278 = vsel %vm493, %v1276, %v1277
      %v1279 = vrot.slane %v1212, 1
      %v1280 = vsel %vm493, %v1277, %v1279
      %v1281 = vrot.slane %v1213, 1
      %v1282 = vrot.slane %v1214, 1
      %v1283 = vsel %vm493, %v1281, %v1282
      %v1284 = vrot.slane %v1215, 1
      %v1285 = vsel %vm493, %v1282, %v1284
      %v1286 = vrot.slane %v1216, 1
      %v1287 = vrot.slane %v1217, 1
      %v1288 = vsel %vm493, %v1286, %v1287
      %v1289 = vrot.slane %v1218, 1
      %v1290 = vsel %vm493, %v1287, %v1289
      %v1291 = vrot.slane %v1219, 1
      %v1292 = vrot.slane %v1220, 1
      %v1293 = vsel %vm493, %v1291, %v1292
      %v1294 = vrot.slane %v1221, 1
      %v1295 = vsel %vm493, %v1292, %v1294
      %v1296 = vrot.slane %v1222, 1
      %v1297 = vrot.slane %v1223, 1
      %v1298 = vsel %vm493, %v1296, %v1297
      %v1299 = vrot.slane %v1224, 1
      %v1300 = vsel %vm493, %v1297, %v1299
      %v1301 = vrot.slane %v1225, 1
      %v1302 = vrot.slane %v1226, 1
      %v1303 = vsel %vm493, %v1301, %v1302
      %v1304 = vrot.slane %v1227, 1
      %v1305 = vsel %vm493, %v1302, %v1304
      %v1306 = vrot.slane %v1228, 1
      %v1307 = vrot.slane %v1229, 1
      %v1308 = vsel %vm493, %v1306, %v1307
      %v1309 = vrot.slane %v1230, 1
      %v1310 = vsel %vm493, %v1307, %v1309
      %v1331 = vadd.f32 %v1177, %v1263
      %v1332 = vadd.f32 %v1178, %v1265
      %v1333 = vadd.f32 %v1179, %v1268
      %v1334 = vadd.f32 %v1180, %v1270
      %v1335 = vadd.f32 %v1181, %v1273
      %v1336 = vadd.f32 %v1182, %v1275
      %v1337 = vadd.f32 %v1183, %v1278
      %v1338 = vadd.f32 %v1184, %v1280
      %v1339 = vadd.f32 %v1185, %v1283
      %v1340 = vadd.f32 %v1186, %v1285
      %v1341 = vadd.f32 %v1187, %v1288
      %v1342 = vadd.f32 %v1188, %v1290
      %v1343 = vadd.f32 %v1189, %v1293
      %v1344 = vadd.f32 %v1190, %v1295
      %v1345 = vadd.f32 %v1191, %v1298
      %v1346 = vadd.f32 %v1192, %v1300
      %v1347 = vadd.f32 %v1193, %v1303
      %v1348 = vadd.f32 %v1194, %v1305
      %v1349 = vadd.f32 %v1195, %v1308
      %v1350 = vadd.f32 %v1196, %v1310
      %v1351 = vlaneseq
      %v1352 = vshrl.u32 %v1351, 7
      %v1353 = vsub.s32 0, %v1352
      %v1354 = vrot.slane %v374, %v1353
      %v1355 = vmul.f32 %v1123, %v1354
      %v1356 = vmul.f32 %v1124, %v1354
      %v1357 = vmul.f32 %v1125, %v1354
      %v1358 = vmul.f32 %v1126, %v1354
      %v1359 = vmul.f32 %v1127, %v1354
      %v1360 = vmul.f32 %v1128, %v1354
      %v1361 = vmul.f32 %v1129, %v1354
      %v1362 = vmul.f32 %v1130, %v1354
      %v1363 = vmul.f32 %v1131, %v1354
      %v1364 = vmul.f32 %v1132, %v1354
      %v1365 = vmul.f32 %v1133, %v1354
      %v1366 = vmul.f32 %v1134, %v1354
      %v1367 = vmul.f32 %v1135, %v1354
      %v1368 = vmul.f32 %v1136, %v1354
      %v1369 = vmul.f32 %v1137, %v1354
      %v1370 = vmul.f32 %v1138, %v1354
      %v1371 = vmul.f32 %v1139, %v1354
      %v1372 = vmul.f32 %v1140, %v1354
      %v1373 = vmul.f32 %v1141, %v1354
      %v1374 = vmul.f32 %v1142, %v1354
      %v1375 = vmul.f32 %v1143, %v1354
      %v1376 = vmul.f32 %v1144, %v1354
      %v1377 = vmul.f32 %v1145, %v1354
      %v1378 = vmul.f32 %v1146, %v1354
      %v1379 = vmul.f32 %v1147, %v1354
      %v1380 = vmul.f32 %v1148, %v1354
      %v1381 = vmul.f32 %v1149, %v1354
      %v1382 = vmul.f32 %v1150, %v1354
      %v1383 = vmul.f32 %v1151, %v1354
      %v1384 = vmul.f32 %v1152, %v1354
      %v1415 = vrot.slane %v1355, 2
      %v1416 = vrot.slane %v1356, 2
      %v1417 = vsel %vm648, %v1415, %v1416
      %v1418 = vrot.slane %v1357, 2
      %v1419 = vsel %vm648, %v1416, %v1418
      %v1420 = vrot.slane %v1358, 2
      %v1421 = vrot.slane %v1359, 2
      %v1422 = vsel %vm648, %v1420, %v1421
      %v1423 = vrot.slane %v1360, 2
      %v1424 = vsel %vm648, %v1421, %v1423
      %v1425 = vrot.slane %v1361, 2
      %v1426 = vrot.slane %v1362, 2
      %v1427 = vsel %vm648, %v1425, %v1426
      %v1428 = vrot.slane %v1363, 2
      %v1429 = vsel %vm648, %v1426, %v1428
      %v1430 = vrot.slane %v1364, 2
      %v1431 = vrot.slane %v1365, 2
      %v1432 = vsel %vm648, %v1430, %v1431
      %v1433 = vrot.slane %v1366, 2
      %v1434 = vsel %vm648, %v1431, %v1433
      %v1435 = vrot.slane %v1367, 2
      %v1436 = vrot.slane %v1368, 2
      %v1437 = vsel %vm648, %v1435, %v1436
      %v1438 = vrot.slane %v1369, 2
      %v1439 = vsel %vm648, %v1436, %v1438
      %v1440 = vrot.slane %v1370, 2
      %v1441 = vrot.slane %v1371, 2
      %v1442 = vsel %vm648, %v1440, %v1441
      %v1443 = vrot.slane %v1372, 2
      %v1444 = vsel %vm648, %v1441, %v1443
      %v1445 = vrot.slane %v1373, 2
      %v1446 = vrot.slane %v1374, 2
      %v1447 = vsel %vm648, %v1445, %v1446
      %v1448 = vrot.slane %v1375, 2
      %v1449 = vsel %vm648, %v1446, %v1448
      %v1450 = vrot.slane %v1376, 2
      %v1451 = vrot.slane %v1377, 2
      %v1452 = vsel %vm648, %v1450, %v1451
      %v1453 = vrot.slane %v1378, 2
      %v1454 = vsel %vm648, %v1451, %v1453
      %v1455 = vrot.slane %v1379, 2
      %v1456 = vrot.slane %v1380, 2
      %v1457 = vsel %vm648, %v1455, %v1456
      %v1458 = vrot.slane %v1381, 2
      %v1459 = vsel %vm648, %v1456, %v1458
      %v1460 = vrot.slane %v1382, 2
      %v1461 = vrot.slane %v1383, 2
      %v1462 = vsel %vm648, %v1460, %v1461
      %v1463 = vrot.slane %v1384, 2
      %v1464 = vsel %vm648, %v1461, %v1463
      %v1485 = vadd.f32 %v1331, %v1417
      %v1486 = vadd.f32 %v1332, %v1419
      %v1487 = vadd.f32 %v1333, %v1422
      %v1488 = vadd.f32 %v1334, %v1424
      %v1489 = vadd.f32 %v1335, %v1427
      %v1490 = vadd.f32 %v1336, %v1429
      %v1491 = vadd.f32 %v1337, %v1432
      %v1492 = vadd.f32 %v1338, %v1434
      %v1493 = vadd.f32 %v1339, %v1437
      %v1494 = vadd.f32 %v1340, %v1439
      %v1495 = vadd.f32 %v1341, %v1442
      %v1496 = vadd.f32 %v1342, %v1444
      %v1497 = vadd.f32 %v1343, %v1447
      %v1498 = vadd.f32 %v1344, %v1449
      %v1499 = vadd.f32 %v1345, %v1452
      %v1500 = vadd.f32 %v1346, %v1454
      %v1501 = vadd.f32 %v1347, %v1457
      %v1502 = vadd.f32 %v1348, %v1459
      %v1503 = vadd.f32 %v1349, %v1462
      %v1504 = vadd.f32 %v1350, %v1464
      %v1505 = vpack.c.bf16 %v1486, %v1485
      %v1506 = vpack.c.bf16 %v1488, %v1487
      %v1507 = vpack.c.bf16 %v1490, %v1489
      %v1508 = vpack.c.bf16 %v1492, %v1491
      %v1509 = vpack.c.bf16 %v1494, %v1493
      %v1510 = vpack.c.bf16 %v1496, %v1495
      %v1511 = vpack.c.bf16 %v1498, %v1497
      %v1512 = vpack.c.bf16 %v1500, %v1499
      %v1513 = vpack.c.bf16 %v1502, %v1501
      %v1514 = vpack.c.bf16 %v1504, %v1503
      %v1515 = vld [vmem:[%s2] sm:$0xf]
      %v1516 = vld [vmem:[%s2 + $0x4] sm:$0xf]
      %v1517 = vld [vmem:[%s2 + $0x8] sm:$0xf]
      %v1518 = vld [vmem:[%s2 + $0xc] sm:$0xf]
      %v1519 = vld [vmem:[%s2 + $0x10] sm:$0xf]
      %v1520 = vld [vmem:[%s2 + $0x14] sm:$0xf]
      %v1521 = vld [vmem:[%s2 + $0x18] sm:$0xf]
      %v1522 = vld [vmem:[%s2 + $0x1c] sm:$0xf]
      %v1523 = vld [vmem:[%s2 + $0x20] sm:$0xf]
      %v1524 = vld [vmem:[%s2 + $0x24] sm:$0xf]
      %v1525 = vld [vmem:[%s2 + $0x28] sm:$0xf]
      %v1526 = vld [vmem:[%s2 + $0x2c] sm:$0xf]
      %v1527 = vld [vmem:[%s2 + $0x30] sm:$0xf]
      %v1528 = vld [vmem:[%s2 + $0x34] sm:$0xf]
      %v1529 = vld [vmem:[%s2 + $0x38] sm:$0xf]
      %v1530 = vld [vmem:[%s2 + $0x3c] sm:$0xf]
      %v1547 = vunpack.c.l.b16 %v1515
      %v1548 = vunpack.c.l.b16 %v1516
      %v1549 = vunpack.c.l.b16 %v1517
      %v1550 = vunpack.c.l.b16 %v1518
      %v1551 = vunpack.c.l.b16 %v1519
      %v1552 = vunpack.c.l.b16 %v1520
      %v1553 = vunpack.c.l.b16 %v1521
      %v1554 = vunpack.c.l.b16 %v1522
      %v1555 = vunpack.c.l.b16 %v1523
      %v1556 = vunpack.c.l.b16 %v1524
      %v1557 = vunpack.c.l.b16 %v1525
      %v1558 = vunpack.c.l.b16 %v1526
      %v1559 = vunpack.c.l.b16 %v1527
      %v1560 = vunpack.c.l.b16 %v1528
      %v1561 = vunpack.c.l.b16 %v1529
      %v1562 = vunpack.c.l.b16 %v1530
      %v1563 = vpack.c.b16 %v1548, %v1547
      %v1564 = vpack.c.b16 %v1550, %v1549
      %v1565 = vpack.c.b16 %v1552, %v1551
      %v1566 = vpack.c.b16 %v1554, %v1553
      %v1567 = vpack.c.b16 %v1556, %v1555
      %v1568 = vpack.c.b16 %v1558, %v1557
      %v1569 = vpack.c.b16 %v1560, %v1559
      %v1570 = vpack.c.b16 %v1562, %v1561
      %1579 = vmatprep.subr.bf16.mxu0 0
      %1580 = vmatpush1.bf16.msra.mxu0 %v1563
      %1581 = vmatprep.subr.bf16.mxu0 0
      %1582 = vmatpush1.bf16.msra.mxu0 %v1564
      %1583 = vmatprep.subr.bf16.mxu0 0
      %1584 = vmatpush1.bf16.msra.mxu0 %v1565
      %1585 = vmatprep.subr.bf16.mxu0 0
      %1586 = vmatpush1.bf16.msra.mxu0 %v1566
      %1587 = vmatprep.subr.bf16.mxu0 0
      %1588 = vmatpush1.bf16.msra.mxu0 %v1567
      %1589 = vmatprep.subr.bf16.mxu0 0
      %1590 = vmatpush1.bf16.msra.mxu0 %v1568
      %1591 = vmatprep.subr.bf16.mxu0 0
      %1592 = vmatpush1.bf16.msra.mxu0 %v1569
      %1593 = vmatprep.subr.bf16.mxu0 0
      %1594 = vmatpush1.bf16.msra.mxu0 %v1570
      %1595 = vmatprep.subr.bf16.mxu0 0
      %1596 = vmatpush1.bf16.msra.mxu0 0
      %1597 = vmatprep.subr.bf16.mxu0 0
      %1598 = vmatpush1.bf16.msra.mxu0 0
      %1599 = vmatprep.subr.bf16.mxu0 0
      %1600 = vmatpush1.bf16.msra.mxu0 0
      %1601 = vmatprep.subr.bf16.mxu0 0
      %1602 = vmatpush1.bf16.msra.mxu0 0
      %1603 = vmatprep.subr.bf16.mxu0 0
      %1604 = vmatpush1.bf16.msra.mxu0 0
      %1605 = vmatprep.subr.bf16.mxu0 0
      %1606 = vmatpush1.bf16.msra.mxu0 0
      %1607 = vmatprep.subr.bf16.mxu0 0
      %1608 = vmatpush1.bf16.msra.mxu0 0
      %1609 = vmatprep.subr.bf16.mxu0 0
      %1610 = vmatpush1.bf16.msra.mxu0 0
      %1611 = vmatprep.mubr.bf16.mxu0 0
      %1612 = vmatmul.mubr.bf16.gmra.mrb[0].mxu0 %v1505
      %v1613 = vpop.f32.mrb[0].mxu0
      %v1614 = vadd.f32 0.0, %v1613
      %v1615 = vpop.f32.mrb[0].mxu0
      %v1616 = vpop.f32.mrb[0].mxu0
      %v1617 = vadd.f32 0.0, %v1616
      %v1618 = vpop.f32.mrb[0].mxu0
      %1619 = vmatprep.mubr.bf16.mxu0 0
      %1620 = vmatmul.mubr.bf16.gmra.mrb[0].mxu0 %v1506
      %v1621 = vpop.f32.mrb[0].mxu0
      %v1622 = vadd.f32 0.0, %v1621
      %v1623 = vpop.f32.mrb[0].mxu0
      %v1624 = vpop.f32.mrb[0].mxu0
      %v1625 = vadd.f32 0.0, %v1624
      %v1626 = vpop.f32.mrb[0].mxu0
      %1627 = vmatprep.mubr.bf16.mxu0 0
      %1628 = vmatmul.mubr.bf16.gmra.mrb[0].mxu0 %v1507
      %v1629 = vpop.f32.mrb[0].mxu0
      %v1630 = vadd.f32 0.0, %v1629
      %v1631 = vpop.f32.mrb[0].mxu0
      %v1632 = vpop.f32.mrb[0].mxu0
      %v1633 = vadd.f32 0.0, %v1632
      %v1634 = vpop.f32.mrb[0].mxu0
      %1635 = vmatprep.mubr.bf16.mxu0 0
      %1636 = vmatmul.mubr.bf16.gmra.mrb[0].mxu0 %v1508
      %v1637 = vpop.f32.mrb[0].mxu0
      %v1638 = vadd.f32 0.0, %v1637
      %v1639 = vpop.f32.mrb[0].mxu0
      %v1640 = vpop.f32.mrb[0].mxu0
      %v1641 = vadd.f32 0.0, %v1640
      %v1642 = vpop.f32.mrb[0].mxu0
      %1643 = vmatprep.mubr.bf16.mxu0 0
      %1644 = vmatmul.mubr.bf16.gmra.mrb[0].mxu0 %v1509
      %v1645 = vpop.f32.mrb[0].mxu0
      %v1646 = vadd.f32 0.0, %v1645
      %v1647 = vpop.f32.mrb[0].mxu0
      %v1648 = vpop.f32.mrb[0].mxu0
      %v1649 = vadd.f32 0.0, %v1648
      %v1650 = vpop.f32.mrb[0].mxu0
      %1651 = vmatprep.mubr.bf16.mxu0 0
      %1652 = vmatmul.mubr.bf16.gmra.mrb[0].mxu0 %v1510
      %v1653 = vpop.f32.mrb[0].mxu0
      %v1654 = vadd.f32 0.0, %v1653
      %v1655 = vpop.f32.mrb[0].mxu0
      %v1656 = vpop.f32.mrb[0].mxu0
      %v1657 = vadd.f32 0.0, %v1656
      %v1658 = vpop.f32.mrb[0].mxu0
      %1659 = vmatprep.mubr.bf16.mxu0 0
      %1660 = vmatmul.mubr.bf16.gmra.mrb[0].mxu0 %v1511
      %v1661 = vpop.f32.mrb[0].mxu0
      %v1662 = vadd.f32 0.0, %v1661
      %v1663 = vpop.f32.mrb[0].mxu0
      %v1664 = vpop.f32.mrb[0].mxu0
      %v1665 = vadd.f32 0.0, %v1664
      %v1666 = vpop.f32.mrb[0].mxu0
      %1667 = vmatprep.mubr.bf16.mxu0 0
      %1668 = vmatmul.mubr.bf16.gmra.mrb[0].mxu0 %v1512
      %v1669 = vpop.f32.mrb[0].mxu0
      %v1670 = vadd.f32 0.0, %v1669
      %v1671 = vpop.f32.mrb[0].mxu0
      %v1672 = vpop.f32.mrb[0].mxu0
      %v1673 = vadd.f32 0.0, %v1672
      %v1674 = vpop.f32.mrb[0].mxu0
      %1675 = vmatprep.mubr.bf16.mxu0 0
      %1676 = vmatmul.mubr.bf16.gmra.mrb[0].mxu0 %v1513
      %v1677 = vpop.f32.mrb[0].mxu0
      %v1678 = vadd.f32 0.0, %v1677
      %v1679 = vpop.f32.mrb[0].mxu0
      %v1680 = vpop.f32.mrb[0].mxu0
      %v1681 = vadd.f32 0.0, %v1680
      %v1682 = vpop.f32.mrb[0].mxu0
      %1683 = vmatprep.mubr.bf16.mxu0 0
      %1684 = vmatmul.mubr.bf16.gmra.mrb[0].mxu0 %v1514
      %v1685 = vpop.f32.mrb[0].mxu0
      %v1686 = vadd.f32 0.0, %v1685
      %v1687 = vpop.f32.mrb[0].mxu0
      %v1688 = vpop.f32.mrb[0].mxu0
      %v1689 = vadd.f32 0.0, %v1688
      %v1690 = vpop.f32.mrb[0].mxu0
      %1691 = vdwg.mxu0
      %v1692 = vld [vmem:[%s3] sm:$0x1]
      %v1694 = vlaneseq
      %v1695 = vshrl.u32 %v1694, 7
      %v1696 = vsub.s32 0, %v1695
      %v1697 = vrot.slane %v1692, %v1696
      %v1699 = vmul.f32 %v1614, %v1697
      %v1700 = vmul.f32 %v1617, %v1697
      %v1701 = vmul.f32 %v1622, %v1697
      %v1702 = vmul.f32 %v1625, %v1697
      %v1703 = vmul.f32 %v1630, %v1697
      %v1704 = vmul.f32 %v1633, %v1697
      %v1705 = vmul.f32 %v1638, %v1697
      %v1706 = vmul.f32 %v1641, %v1697
      %v1707 = vmul.f32 %v1646, %v1697
      %v1708 = vmul.f32 %v1649, %v1697
      %v1709 = vmul.f32 %v1654, %v1697
      %v1710 = vmul.f32 %v1657, %v1697
      %v1711 = vmul.f32 %v1662, %v1697
      %v1712 = vmul.f32 %v1665, %v1697
      %v1713 = vmul.f32 %v1670, %v1697
      %v1714 = vmul.f32 %v1673, %v1697
      %v1715 = vmul.f32 %v1678, %v1697
      %v1716 = vmul.f32 %v1681, %v1697
      %v1717 = vmul.f32 %v1686, %v1697
      %v1718 = vmul.f32 %v1689, %v1697
      %v1719 = vld [vmem:[%s4] sm:$0x1]
      %v1721 = vlaneseq
      %v1722 = vshrl.u32 %v1721, 7
      %v1723 = vsub.s32 0, %v1722
      %v1724 = vrot.slane %v1719, %v1723
      %v1726 = vadd.f32 %v1699, %v1724
      %v1727 = vadd.f32 %v1700, %v1724
      %v1728 = vadd.f32 %v1701, %v1724
      %v1729 = vadd.f32 %v1702, %v1724
      %v1730 = vadd.f32 %v1703, %v1724
      %v1731 = vadd.f32 %v1704, %v1724
      %v1732 = vadd.f32 %v1705, %v1724
      %v1733 = vadd.f32 %v1706, %v1724
      %v1734 = vadd.f32 %v1707, %v1724
      %v1735 = vadd.f32 %v1708, %v1724
      %v1736 = vadd.f32 %v1709, %v1724
      %v1737 = vadd.f32 %v1710, %v1724
      %v1738 = vadd.f32 %v1711, %v1724
      %v1739 = vadd.f32 %v1712, %v1724
      %v1740 = vadd.f32 %v1713, %v1724
      %v1741 = vadd.f32 %v1714, %v1724
      %v1742 = vadd.f32 %v1715, %v1724
      %v1743 = vadd.f32 %v1716, %v1724
      %v1744 = vadd.f32 %v1717, %v1724
      %v1745 = vadd.f32 %v1718, %v1724
      %v1746 = vmax.f32 %v1726, 0.0
      %v1747 = vmax.f32 %v1727, 0.0
      %v1748 = vmax.f32 %v1728, 0.0
      %v1749 = vmax.f32 %v1729, 0.0
      %v1750 = vmax.f32 %v1730, 0.0
      %v1751 = vmax.f32 %v1731, 0.0
      %v1752 = vmax.f32 %v1732, 0.0
      %v1753 = vmax.f32 %v1733, 0.0
      %v1754 = vmax.f32 %v1734, 0.0
      %v1755 = vmax.f32 %v1735, 0.0
      %v1756 = vmax.f32 %v1736, 0.0
      %v1757 = vmax.f32 %v1737, 0.0
      %v1758 = vmax.f32 %v1738, 0.0
      %v1759 = vmax.f32 %v1739, 0.0
      %v1760 = vmax.f32 %v1740, 0.0
      %v1761 = vmax.f32 %v1741, 0.0
      %v1762 = vmax.f32 %v1742, 0.0
      %v1763 = vmax.f32 %v1743, 0.0
      %v1764 = vmax.f32 %v1744, 0.0
      %v1765 = vmax.f32 %v1745, 0.0
      %v1766 = vpack.c.bf16 %v1747, %v1746
      %v1767 = vpack.c.bf16 %v1749, %v1748
      %v1768 = vpack.c.bf16 %v1751, %v1750
      %v1769 = vpack.c.bf16 %v1753, %v1752
      %v1770 = vpack.c.bf16 %v1755, %v1754
      %v1771 = vpack.c.bf16 %v1757, %v1756
      %v1772 = vpack.c.bf16 %v1759, %v1758
      %v1773 = vpack.c.bf16 %v1761, %v1760
      %v1774 = vpack.c.bf16 %v1763, %v1762
      %v1775 = vpack.c.bf16 %v1765, %v1764
      %v1786 = vunpack.c.l.b16 %v1766
      %v1787 = vunpack.c.h.b16 %v1766
      %v1788 = vunpack.c.l.b16 %v1767
      %v1789 = vunpack.c.h.b16 %v1767
      %v1790 = vunpack.c.l.b16 %v1768
      %v1791 = vunpack.c.h.b16 %v1768
      %v1792 = vunpack.c.l.b16 %v1769
      %v1793 = vunpack.c.h.b16 %v1769
      %v1794 = vunpack.c.l.b16 %v1770
      %v1795 = vunpack.c.h.b16 %v1770
      %v1796 = vunpack.c.l.b16 %v1771
      %v1797 = vunpack.c.h.b16 %v1771
      %v1798 = vunpack.c.l.b16 %v1772
      %v1799 = vunpack.c.h.b16 %v1772
      %v1800 = vunpack.c.l.b16 %v1773
      %v1801 = vunpack.c.h.b16 %v1773
      %v1802 = vunpack.c.l.b16 %v1774
      %v1803 = vunpack.c.h.b16 %v1774
      %v1804 = vunpack.c.l.b16 %v1775
      %v1805 = vunpack.c.h.b16 %v1775
      %v1806 = vpack.c.b16 %v1786, %v1786
      %v1807 = vpack.c.b16 %v1787, %v1787
      %v1808 = vpack.c.b16 %v1788, %v1788
      %v1809 = vpack.c.b16 %v1789, %v1789
      %v1810 = vpack.c.b16 %v1790, %v1790
      %v1811 = vpack.c.b16 %v1791, %v1791
      %v1812 = vpack.c.b16 %v1792, %v1792
      %v1813 = vpack.c.b16 %v1793, %v1793
      %v1814 = vpack.c.b16 %v1794, %v1794
      %v1815 = vpack.c.b16 %v1795, %v1795
      %v1816 = vpack.c.b16 %v1796, %v1796
      %v1817 = vpack.c.b16 %v1797, %v1797
      %v1818 = vpack.c.b16 %v1798, %v1798
      %v1819 = vpack.c.b16 %v1799, %v1799
      %v1820 = vpack.c.b16 %v1800, %v1800
      %v1821 = vpack.c.b16 %v1801, %v1801
      %v1822 = vpack.c.b16 %v1802, %v1802
      %v1823 = vpack.c.b16 %v1803, %v1803
      %v1824 = vpack.c.b16 %v1804, %v1804
      %v1825 = vpack.c.b16 %v1805, %v1805
      %vm1826 = vsmask.f32 256
      %vm1827 = vsmask.f32 4368
      %vm1828 = vmor %vm1826, %vm1827
      %v1830 = vshrl.u32 %v1806, 16
      %v1832 = vrot.slane %v1830, 7
      %v1833 = vshll.u32 %v1806, 16
      %v1835 = vor.u32 %v1832, %v1833
      %v1836 = vrot.slane %v1832, 4
      %v1838 = vshrl.u32 %v1807, 16
      %v1840 = vrot.slane %v1838, 7
      %v1841 = vshll.u32 %v1807, 16
      %v1843 = vor.u32 %v1840, %v1841
      %v1844 = vsel %vm1828, %v1836, %v1843
      %v1845 = vrot.slane %v1840, 4
      %v1847 = vshrl.u32 %v1808, 16
      %v1849 = vrot.slane %v1847, 7
      %v1850 = vshll.u32 %v1808, 16
      %v1852 = vor.u32 %v1849, %v1850
      %v1853 = vrot.slane %v1849, 4
      %v1855 = vshrl.u32 %v1809, 16
      %v1857 = vrot.slane %v1855, 7
      %v1858 = vshll.u32 %v1809, 16
      %v1860 = vor.u32 %v1857, %v1858
      %v1861 = vsel %vm1828, %v1853, %v1860
      %v1862 = vrot.slane %v1857, 4
      %v1864 = vshrl.u32 %v1810, 16
      %v1866 = vrot.slane %v1864, 7
      %v1867 = vshll.u32 %v1810, 16
      %v1869 = vor.u32 %v1866, %v1867
      %v1870 = vrot.slane %v1866, 4
      %v1872 = vshrl.u32 %v1811, 16
      %v1874 = vrot.slane %v1872, 7
      %v1875 = vshll.u32 %v1811, 16
      %v1877 = vor.u32 %v1874, %v1875
      %v1878 = vsel %vm1828, %v1870, %v1877
      %v1879 = vrot.slane %v1874, 4
      %v1881 = vshrl.u32 %v1812, 16
      %v1883 = vrot.slane %v1881, 7
      %v1884 = vshll.u32 %v1812, 16
      %v1886 = vor.u32 %v1883, %v1884
      %v1887 = vrot.slane %v1883, 4
      %v1889 = vshrl.u32 %v1813, 16
      %v1891 = vrot.slane %v1889, 7
      %v1892 = vshll.u32 %v1813, 16
      %v1894 = vor.u32 %v1891, %v1892
      %v1895 = vsel %vm1828, %v1887, %v1894
      %v1896 = vrot.slane %v1891, 4
      %v1898 = vshrl.u32 %v1814, 16
      %v1900 = vrot.slane %v1898, 7
      %v1901 = vshll.u32 %v1814, 16
      %v1903 = vor.u32 %v1900, %v1901
      %v1904 = vrot.slane %v1900, 4
      %v1906 = vshrl.u32 %v1815, 16
      %v1908 = vrot.slane %v1906, 7
      %v1909 = vshll.u32 %v1815, 16
      %v1911 = vor.u32 %v1908, %v1909
      %v1912 = vsel %vm1828, %v1904, %v1911
      %v1913 = vrot.slane %v1908, 4
      %v1915 = vshrl.u32 %v1816, 16
      %v1917 = vrot.slane %v1915, 7
      %v1918 = vshll.u32 %v1816, 16
      %v1920 = vor.u32 %v1917, %v1918
      %v1921 = vrot.slane %v1917, 4
      %v1923 = vshrl.u32 %v1817, 16
      %v1925 = vrot.slane %v1923, 7
      %v1926 = vshll.u32 %v1817, 16
      %v1928 = vor.u32 %v1925, %v1926
      %v1929 = vsel %vm1828, %v1921, %v1928
      %v1930 = vrot.slane %v1925, 4
      %v1932 = vshrl.u32 %v1818, 16
      %v1934 = vrot.slane %v1932, 7
      %v1935 = vshll.u32 %v1818, 16
      %v1937 = vor.u32 %v1934, %v1935
      %v1938 = vrot.slane %v1934, 4
      %v1940 = vshrl.u32 %v1819, 16
      %v1942 = vrot.slane %v1940, 7
      %v1943 = vshll.u32 %v1819, 16
      %v1945 = vor.u32 %v1942, %v1943
      %v1946 = vsel %vm1828, %v1938, %v1945
      %v1947 = vrot.slane %v1942, 4
      %v1949 = vshrl.u32 %v1820, 16
      %v1951 = vrot.slane %v1949, 7
      %v1952 = vshll.u32 %v1820, 16
      %v1954 = vor.u32 %v1951, %v1952
      %v1955 = vrot.slane %v1951, 4
      %v1957 = vshrl.u32 %v1821, 16
      %v1959 = vrot.slane %v1957, 7
      %v1960 = vshll.u32 %v1821, 16
      %v1962 = vor.u32 %v1959, %v1960
      %v1963 = vsel %vm1828, %v1955, %v1962
      %v1964 = vrot.slane %v1959, 4
      %v1966 = vshrl.u32 %v1822, 16
      %v1968 = vrot.slane %v1966, 7
      %v1969 = vshll.u32 %v1822, 16
      %v1971 = vor.u32 %v1968, %v1969
      %v1972 = vrot.slane %v1968, 4
      %v1974 = vshrl.u32 %v1823, 16
      %v1976 = vrot.slane %v1974, 7
      %v1977 = vshll.u32 %v1823, 16
      %v1979 = vor.u32 %v1976, %v1977
      %v1980 = vsel %vm1828, %v1972, %v1979
      %v1981 = vrot.slane %v1976, 4
      %v1983 = vshrl.u32 %v1824, 16
      %v1985 = vrot.slane %v1983, 7
      %v1986 = vshll.u32 %v1824, 16
      %v1988 = vor.u32 %v1985, %v1986
      %v1989 = vrot.slane %v1985, 4
      %v1991 = vshrl.u32 %v1825, 16
      %v1993 = vrot.slane %v1991, 7
      %v1994 = vshll.u32 %v1825, 16
      %v1996 = vor.u32 %v1993, %v1994
      %v1997 = vsel %vm1828, %v1989, %v1996
      %v1998 = vrot.slane %v1993, 4
      %vm2029 = vcmask 1043456
      %vm2030 = vsmask.f32 7938
      %vm2031 = vmand %vm2029, %vm2030
      %v2032 = vld [vmem:[#allocation2] sm:$0xf]
      %v2033 = vsel %vm2031, %v1835, %v2032
      %2034 = vst [vmem:[#allocation2] sm:$0xf] %v2033
      %2035 = vst [vmem:[#allocation2 + $0x4] sm:$0xf] %v1844
      %vm2036 = vcmask 1040384
      %vm2037 = vmand %vm2036, %vm1826
      %v2038 = vld [vmem:[#allocation2 + $0x8] sm:$0x1]
      %v2039 = vsel %vm2037, %v1845, %v2038
      %2040 = vst [vmem:[#allocation2 + $0x8] sm:$0x1] %v2039
      %v2041 = vld [vmem:[#allocation2 + $0xc] sm:$0xf]
      %v2042 = vsel %vm2031, %v1852, %v2041
      %2043 = vst [vmem:[#allocation2 + $0xc] sm:$0xf] %v2042
      %2044 = vst [vmem:[#allocation2 + $0x10] sm:$0xf] %v1861
      %v2045 = vld [vmem:[#allocation2 + $0x14] sm:$0x1]
      %v2046 = vsel %vm2037, %v1862, %v2045
      %2047 = vst [vmem:[#allocation2 + $0x14] sm:$0x1] %v2046
      %v2048 = vld [vmem:[#allocation2 + $0x18] sm:$0xf]
      %v2049 = vsel %vm2031, %v1869, %v2048
      %2050 = vst [vmem:[#allocation2 + $0x18] sm:$0xf] %v2049
      %2051 = vst [vmem:[#allocation2 + $0x1c] sm:$0xf] %v1878
      %v2052 = vld [vmem:[#allocation2 + $0x20] sm:$0x1]
      %v2053 = vsel %vm2037, %v1879, %v2052
      %2054 = vst [vmem:[#allocation2 + $0x20] sm:$0x1] %v2053
      %v2055 = vld [vmem:[#allocation2 + $0x24] sm:$0xf]
      %v2056 = vsel %vm2031, %v1886, %v2055
      %2057 = vst [vmem:[#allocation2 + $0x24] sm:$0xf] %v2056
      %2058 = vst [vmem:[#allocation2 + $0x28] sm:$0xf] %v1895
      %v2059 = vld [vmem:[#allocation2 + $0x2c] sm:$0x1]
      %v2060 = vsel %vm2037, %v1896, %v2059
      %2061 = vst [vmem:[#allocation2 + $0x2c] sm:$0x1] %v2060
      %v2062 = vld [vmem:[#allocation2 + $0x30] sm:$0xf]
      %v2063 = vsel %vm2031, %v1903, %v2062
      %2064 = vst [vmem:[#allocation2 + $0x30] sm:$0xf] %v2063
      %2065 = vst [vmem:[#allocation2 + $0x34] sm:$0xf] %v1912
      %v2066 = vld [vmem:[#allocation2 + $0x38] sm:$0x1]
      %v2067 = vsel %vm2037, %v1913, %v2066
      %2068 = vst [vmem:[#allocation2 + $0x38] sm:$0x1] %v2067
      %v2069 = vld [vmem:[#allocation2 + $0x3c] sm:$0xf]
      %v2070 = vsel %vm2031, %v1920, %v2069
      %2071 = vst [vmem:[#allocation2 + $0x3c] sm:$0xf] %v2070
      %2072 = vst [vmem:[#allocation2 + $0x40] sm:$0xf] %v1929
      %v2073 = vld [vmem:[#allocation2 + $0x44] sm:$0x1]
      %v2074 = vsel %vm2037, %v1930, %v2073
      %2075 = vst [vmem:[#allocation2 + $0x44] sm:$0x1] %v2074
      %v2076 = vld [vmem:[#allocation2 + $0x48] sm:$0xf]
      %v2077 = vsel %vm2031, %v1937, %v2076
      %2078 = vst [vmem:[#allocation2 + $0x48] sm:$0xf] %v2077
      %2079 = vst [vmem:[#allocation2 + $0x4c] sm:$0xf] %v1946
      %v2080 = vld [vmem:[#allocation2 + $0x50] sm:$0x1]
      %v2081 = vsel %vm2037, %v1947, %v2080
      %2082 = vst [vmem:[#allocation2 + $0x50] sm:$0x1] %v2081
      %v2083 = vld [vmem:[#allocation2 + $0x54] sm:$0xf]
      %v2084 = vsel %vm2031, %v1954, %v2083
      %2085 = vst [vmem:[#allocation2 + $0x54] sm:$0xf] %v2084
      %2086 = vst [vmem:[#allocation2 + $0x58] sm:$0xf] %v1963
      %v2087 = vld [vmem:[#allocation2 + $0x5c] sm:$0x1]
      %v2088 = vsel %vm2037, %v1964, %v2087
      %2089 = vst [vmem:[#allocation2 + $0x5c] sm:$0x1] %v2088
      %v2090 = vld [vmem:[#allocation2 + $0x60] sm:$0xf]
      %v2091 = vsel %vm2031, %v1971, %v2090
      %2092 = vst [vmem:[#allocation2 + $0x60] sm:$0xf] %v2091
      %2093 = vst [vmem:[#allocation2 + $0x64] sm:$0xf] %v1980
      %v2094 = vld [vmem:[#allocation2 + $0x68] sm:$0x1]
      %v2095 = vsel %vm2037, %v1981, %v2094
      %2096 = vst [vmem:[#allocation2 + $0x68] sm:$0x1] %v2095
      %v2097 = vld [vmem:[#allocation2 + $0x6c] sm:$0xf]
      %v2098 = vsel %vm2031, %v1988, %v2097
      %2099 = vst [vmem:[#allocation2 + $0x6c] sm:$0xf] %v2098
      %2100 = vst [vmem:[#allocation2 + $0x70] sm:$0xf] %v1997
      %v2101 = vld [vmem:[#allocation2 + $0x74] sm:$0x1]
      %v2102 = vsel %vm2037, %v1998, %v2101
      %2103 = vst [vmem:[#allocation2 + $0x74] sm:$0x1] %v2102
      %v2104 = vld [vmem:[#allocation2] sm:$0x1]
      %v2105 = vsel %vm2037, 0, %v2104
      %2106 = vst [vmem:[#allocation2] sm:$0x1] %v2105
      %v2107 = vld [vmem:[#allocation2 + $0xc] sm:$0x1]
      %v2108 = vsel %vm2037, 0, %v2107
      %2109 = vst [vmem:[#allocation2 + $0xc] sm:$0x1] %v2108
      %v2110 = vld [vmem:[#allocation2 + $0x18] sm:$0x1]
      %v2111 = vsel %vm2037, 0, %v2110
      %2112 = vst [vmem:[#allocation2 + $0x18] sm:$0x1] %v2111
      %v2113 = vld [vmem:[#allocation2 + $0x24] sm:$0x1]
      %v2114 = vsel %vm2037, 0, %v2113
      %2115 = vst [vmem:[#allocation2 + $0x24] sm:$0x1] %v2114
      %v2116 = vld [vmem:[#allocation2 + $0x30] sm:$0x1]
      %v2117 = vsel %vm2037, 0, %v2116
      %2118 = vst [vmem:[#allocation2 + $0x30] sm:$0x1] %v2117
      %v2119 = vld [vmem:[#allocation2 + $0x3c] sm:$0x1]
      %v2120 = vsel %vm2037, 0, %v2119
      %2121 = vst [vmem:[#allocation2 + $0x3c] sm:$0x1] %v2120
      %v2122 = vld [vmem:[#allocation2 + $0x48] sm:$0x1]
      %v2123 = vsel %vm2037, 0, %v2122
      %2124 = vst [vmem:[#allocation2 + $0x48] sm:$0x1] %v2123
      %v2125 = vld [vmem:[#allocation2 + $0x54] sm:$0x1]
      %v2126 = vsel %vm2037, 0, %v2125
      %2127 = vst [vmem:[#allocation2 + $0x54] sm:$0x1] %v2126
      %v2128 = vld [vmem:[#allocation2 + $0x60] sm:$0x1]
      %v2129 = vsel %vm2037, 0, %v2128
      %2130 = vst [vmem:[#allocation2 + $0x60] sm:$0x1] %v2129
      %v2131 = vld [vmem:[#allocation2 + $0x6c] sm:$0x1]
      %v2132 = vsel %vm2037, 0, %v2131
      %2133 = vst [vmem:[#allocation2 + $0x6c] sm:$0x1] %v2132
      %vm2134 = vmand %vm2036, %vm2030
      %v2135 = vld [vmem:[#allocation2 + $0x8] sm:$0x1]
      %v2136 = vsel %vm2134, 0, %v2135
      %2137 = vst [vmem:[#allocation2 + $0x8] sm:$0x1] %v2136
      %v2138 = vld [vmem:[#allocation2 + $0x14] sm:$0x1]
      %v2139 = vsel %vm2134, 0, %v2138
      %2140 = vst [vmem:[#allocation2 + $0x14] sm:$0x1] %v2139
      %v2141 = vld [vmem:[#allocation2 + $0x20] sm:$0x1]
      %v2142 = vsel %vm2134, 0, %v2141
      %2143 = vst [vmem:[#allocation2 + $0x20] sm:$0x1] %v2142
      %v2144 = vld [vmem:[#allocation2 + $0x2c] sm:$0x1]
      %v2145 = vsel %vm2134, 0, %v2144
      %2146 = vst [vmem:[#allocation2 + $0x2c] sm:$0x1] %v2145
      %v2147 = vld [vmem:[#allocation2 + $0x38] sm:$0x1]
      %v2148 = vsel %vm2134, 0, %v2147
      %2149 = vst [vmem:[#allocation2 + $0x38] sm:$0x1] %v2148
      %v2150 = vld [vmem:[#allocation2 + $0x44] sm:$0x1]
      %v2151 = vsel %vm2134, 0, %v2150
      %2152 = vst [vmem:[#allocation2 + $0x44] sm:$0x1] %v2151
      %v2153 = vld [vmem:[#allocation2 + $0x50] sm:$0x1]
      %v2154 = vsel %vm2134, 0, %v2153
      %2155 = vst [vmem:[#allocation2 + $0x50] sm:$0x1] %v2154
      %v2156 = vld [vmem:[#allocation2 + $0x5c] sm:$0x1]
      %v2157 = vsel %vm2134, 0, %v2156
      %2158 = vst [vmem:[#allocation2 + $0x5c] sm:$0x1] %v2157
      %v2159 = vld [vmem:[#allocation2 + $0x68] sm:$0x1]
      %v2160 = vsel %vm2134, 0, %v2159
      %2161 = vst [vmem:[#allocation2 + $0x68] sm:$0x1] %v2160
      %v2162 = vld [vmem:[#allocation2 + $0x74] sm:$0x1]
      %v2163 = vsel %vm2134, 0, %v2162
      %2164 = vst [vmem:[#allocation2 + $0x74] sm:$0x1] %v2163
      %p2165 = scmp.eq.s32.totalorder %s25, 0
      // Predicated region
      $region57: #{_lambda_.1} parent=55 // pred_check
        %p2166 = pneg %p2165
      $region58: #{_lambda_.1} parent=55 // pred_check_branch
        %2168 = sbr.rel (%p2166) target = $region60
      $region59: #{_lambda_.1} parent=55 // pred_region
        %2169 = vst [vmem:[#allocation2] sm:$0xf] 0
        %2170 = vst [vmem:[#allocation2 + $0x4] sm:$0xf] 0
        %2171 = vst [vmem:[#allocation2 + $0x8] sm:$0x1] 0
      $region60: #{_lambda_.1} parent=55 // pred_fallthru
        _
      %p2172 = scmp.eq.s32.totalorder %s25, 1
      // Predicated region
      $region61: #{_lambda_.1} parent=55 // pred_check
        %p2173 = pneg %p2172
      $region62: #{_lambda_.1} parent=55 // pred_check_branch
        %2175 = sbr.rel (%p2173) target = $region64
      $region63: #{_lambda_.1} parent=55 // pred_region
        %s2176 = scalar_lea.vmem [#allocation2], 108
        %2177 = vst [vmem:[%s2176] sm:$0xf] 0
        %2178 = vst [vmem:[%s2176 + $0x4] sm:$0xf] 0
        %2179 = vst [vmem:[%s2176 + $0x8] sm:$0x1] 0
      $region64: #{_lambda_.1} parent=55 // pred_fallthru
        _
      %v2180 = vld [vmem:[%s5] sm:$0xff]
      %v2181 = vld [vmem:[%s5 + $0x8] sm:$0x1]
      %v2182 = vld [vmem:[#allocation2] sm:$0xf]
      %v2183 = vld [vmem:[#allocation2 + $0x4] sm:$0xf]
      %v2184 = vld [vmem:[#allocation2 + $0x8] sm:$0x1]
      %v2185 = vld [vmem:[#allocation2 + $0xc] sm:$0xf]
      %v2186 = vld [vmem:[#allocation2 + $0x10] sm:$0xf]
      %v2187 = vld [vmem:[#allocation2 + $0x14] sm:$0x1]
      %v2188 = vld [vmem:[#allocation2 + $0x18] sm:$0xf]
      %v2189 = vld [vmem:[#allocation2 + $0x1c] sm:$0xf]
      %v2190 = vld [vmem:[#allocation2 + $0x20] sm:$0x1]
      %v2191 = vld [vmem:[#allocation2 + $0x24] sm:$0xf]
      %v2192 = vld [vmem:[#allocation2 + $0x28] sm:$0xf]
      %v2193 = vld [vmem:[#allocation2 + $0x2c] sm:$0x1]
      %v2194 = vld [vmem:[#allocation2 + $0x30] sm:$0xf]
      %v2195 = vld [vmem:[#allocation2 + $0x34] sm:$0xf]
      %v2196 = vld [vmem:[#allocation2 + $0x38] sm:$0x1]
      %v2197 = vld [vmem:[#allocation2 + $0x3c] sm:$0xf]
      %v2198 = vld [vmem:[#allocation2 + $0x40] sm:$0xf]
      %v2199 = vld [vmem:[#allocation2 + $0x44] sm:$0x1]
      %v2200 = vld [vmem:[#allocation2 + $0x48] sm:$0xf]
      %v2201 = vld [vmem:[#allocation2 + $0x4c] sm:$0xf]
      %v2202 = vld [vmem:[#allocation2 + $0x50] sm:$0x1]
      %v2203 = vld [vmem:[#allocation2 + $0x54] sm:$0xf]
      %v2204 = vld [vmem:[#allocation2 + $0x58] sm:$0xf]
      %v2205 = vld [vmem:[#allocation2 + $0x5c] sm:$0x1]
      %v2206 = vunpack.c.l.bf16 %v2182
      %v2207 = vunpack.c.l.bf16 %v2183
      %v2208 = vunpack.c.l.bf16 %v2184
      %v2209 = vunpack.c.l.bf16 %v2185
      %v2210 = vunpack.c.l.bf16 %v2186
      %v2211 = vunpack.c.l.bf16 %v2187
      %v2212 = vunpack.c.l.bf16 %v2188
      %v2213 = vunpack.c.l.bf16 %v2189
      %v2214 = vunpack.c.l.bf16 %v2190
      %v2215 = vunpack.c.l.bf16 %v2191
      %v2216 = vunpack.c.l.bf16 %v2192
      %v2217 = vunpack.c.l.bf16 %v2193
      %v2218 = vunpack.c.l.bf16 %v2194
      %v2219 = vunpack.c.l.bf16 %v2195
      %v2220 = vunpack.c.l.bf16 %v2196
      %v2221 = vunpack.c.l.bf16 %v2197
      %v2222 = vunpack.c.l.bf16 %v2198
      %v2223 = vunpack.c.l.bf16 %v2199
      %v2224 = vunpack.c.l.bf16 %v2200
      %v2225 = vunpack.c.l.bf16 %v2201
      %v2226 = vunpack.c.l.bf16 %v2202
      %v2227 = vunpack.c.l.bf16 %v2203
      %v2228 = vunpack.c.l.bf16 %v2204
      %v2229 = vunpack.c.l.bf16 %v2205
      %v2230 = vlaneseq
      %v2231 = vshrl.u32 %v2230, 7
      %v2232 = vsub.s32 0, %v2231
      %v2233 = vrot.slane %v2180, %v2232
      %v2234 = vmul.f32 %v2206, %v2233
      %v2235 = vmul.f32 %v2207, %v2233
      %v2236 = vmul.f32 %v2209, %v2233
      %v2237 = vmul.f32 %v2210, %v2233
      %v2238 = vmul.f32 %v2212, %v2233
      %v2239 = vmul.f32 %v2213, %v2233
      %v2240 = vmul.f32 %v2215, %v2233
      %v2241 = vmul.f32 %v2216, %v2233
      %v2242 = vmul.f32 %v2218, %v2233
      %v2243 = vmul.f32 %v2219, %v2233
      %v2244 = vmul.f32 %v2221, %v2233
      %v2245 = vmul.f32 %v2222, %v2233
      %v2246 = vmul.f32 %v2224, %v2233
      %v2247 = vmul.f32 %v2225, %v2233
      %v2248 = vmul.f32 %v2227, %v2233
      %v2249 = vmul.f32 %v2228, %v2233
      %v2250 = vlaneseq
      %v2251 = vshrl.u32 %v2250, 7
      %v2252 = vsub.s32 1, %v2251
      %v2253 = vrot.slane %v2180, %v2252
      %v2254 = vmul.f32 %v2206, %v2253
      %v2255 = vmul.f32 %v2207, %v2253
      %v2256 = vmul.f32 %v2208, %v2253
      %v2257 = vmul.f32 %v2209, %v2253
      %v2258 = vmul.f32 %v2210, %v2253
      %v2259 = vmul.f32 %v2211, %v2253
      %v2260 = vmul.f32 %v2212, %v2253
      %v2261 = vmul.f32 %v2213, %v2253
      %v2262 = vmul.f32 %v2214, %v2253
      %v2263 = vmul.f32 %v2215, %v2253
      %v2264 = vmul.f32 %v2216, %v2253
      %v2265 = vmul.f32 %v2217, %v2253
      %v2266 = vmul.f32 %v2218, %v2253
      %v2267 = vmul.f32 %v2219, %v2253
      %v2268 = vmul.f32 %v2220, %v2253
      %v2269 = vmul.f32 %v2221, %v2253
      %v2270 = vmul.f32 %v2222, %v2253
      %v2271 = vmul.f32 %v2223, %v2253
      %v2272 = vmul.f32 %v2224, %v2253
      %v2273 = vmul.f32 %v2225, %v2253
      %v2274 = vmul.f32 %v2226, %v2253
      %v2275 = vmul.f32 %v2227, %v2253
      %v2276 = vmul.f32 %v2228, %v2253
      %v2277 = vmul.f32 %v2229, %v2253
      %v2302 = vrot.slane %v2254, 1
      %v2303 = vrot.slane %v2255, 1
      %v2304 = vsel %vm493, %v2302, %v2303
      %v2305 = vrot.slane %v2256, 1
      %v2306 = vsel %vm493, %v2303, %v2305
      %v2307 = vrot.slane %v2257, 1
      %v2308 = vrot.slane %v2258, 1
      %v2309 = vsel %vm493, %v2307, %v2308
      %v2310 = vrot.slane %v2259, 1
      %v2311 = vsel %vm493, %v2308, %v2310
      %v2312 = vrot.slane %v2260, 1
      %v2313 = vrot.slane %v2261, 1
      %v2314 = vsel %vm493, %v2312, %v2313
      %v2315 = vrot.slane %v2262, 1
      %v2316 = vsel %vm493, %v2313, %v2315
      %v2317 = vrot.slane %v2263, 1
      %v2318 = vrot.slane %v2264, 1
      %v2319 = vsel %vm493, %v2317, %v2318
      %v2320 = vrot.slane %v2265, 1
      %v2321 = vsel %vm493, %v2318, %v2320
      %v2322 = vrot.slane %v2266, 1
      %v2323 = vrot.slane %v2267, 1
      %v2324 = vsel %vm493, %v2322, %v2323
      %v2325 = vrot.slane %v2268, 1
      %v2326 = vsel %vm493, %v2323, %v2325
      %v2327 = vrot.slane %v2269, 1
      %v2328 = vrot.slane %v2270, 1
      %v2329 = vsel %vm493, %v2327, %v2328
      %v2330 = vrot.slane %v2271, 1
      %v2331 = vsel %vm493, %v2328, %v2330
      %v2332 = vrot.slane %v2272, 1
      %v2333 = vrot.slane %v2273, 1
      %v2334 = vsel %vm493, %v2332, %v2333
      %v2335 = vrot.slane %v2274, 1
      %v2336 = vsel %vm493, %v2333, %v2335
      %v2337 = vrot.slane %v2275, 1
      %v2338 = vrot.slane %v2276, 1
      %v2339 = vsel %vm493, %v2337, %v2338
      %v2340 = vrot.slane %v2277, 1
      %v2341 = vsel %vm493, %v2338, %v2340
      %v2358 = vadd.f32 %v2234, %v2304
      %v2359 = vadd.f32 %v2235, %v2306
      %v2360 = vadd.f32 %v2236, %v2309
      %v2361 = vadd.f32 %v2237, %v2311
      %v2362 = vadd.f32 %v2238, %v2314
      %v2363 = vadd.f32 %v2239, %v2316
      %v2364 = vadd.f32 %v2240, %v2319
      %v2365 = vadd.f32 %v2241, %v2321
      %v2366 = vadd.f32 %v2242, %v2324
      %v2367 = vadd.f32 %v2243, %v2326
      %v2368 = vadd.f32 %v2244, %v2329
      %v2369 = vadd.f32 %v2245, %v2331
      %v2370 = vadd.f32 %v2246, %v2334
      %v2371 = vadd.f32 %v2247, %v2336
      %v2372 = vadd.f32 %v2248, %v2339
      %v2373 = vadd.f32 %v2249, %v2341
      %v2374 = vlaneseq
      %v2375 = vshrl.u32 %v2374, 7
      %v2376 = vsub.s32 2, %v2375
      %v2377 = vrot.slane %v2180, %v2376
      %v2378 = vmul.f32 %v2206, %v2377
      %v2379 = vmul.f32 %v2207, %v2377
      %v2380 = vmul.f32 %v2208, %v2377
      %v2381 = vmul.f32 %v2209, %v2377
      %v2382 = vmul.f32 %v2210, %v2377
      %v2383 = vmul.f32 %v2211, %v2377
      %v2384 = vmul.f32 %v2212, %v2377
      %v2385 = vmul.f32 %v2213, %v2377
      %v2386 = vmul.f32 %v2214, %v2377
      %v2387 = vmul.f32 %v2215, %v2377
      %v2388 = vmul.f32 %v2216, %v2377
      %v2389 = vmul.f32 %v2217, %v2377
      %v2390 = vmul.f32 %v2218, %v2377
      %v2391 = vmul.f32 %v2219, %v2377
      %v2392 = vmul.f32 %v2220, %v2377
      %v2393 = vmul.f32 %v2221, %v2377
      %v2394 = vmul.f32 %v2222, %v2377
      %v2395 = vmul.f32 %v2223, %v2377
      %v2396 = vmul.f32 %v2224, %v2377
      %v2397 = vmul.f32 %v2225, %v2377
      %v2398 = vmul.f32 %v2226, %v2377
      %v2399 = vmul.f32 %v2227, %v2377
      %v2400 = vmul.f32 %v2228, %v2377
      %v2401 = vmul.f32 %v2229, %v2377
      %v2426 = vrot.slane %v2378, 2
      %v2427 = vrot.slane %v2379, 2
      %v2428 = vsel %vm648, %v2426, %v2427
      %v2429 = vrot.slane %v2380, 2
      %v2430 = vsel %vm648, %v2427, %v2429
      %v2431 = vrot.slane %v2381, 2
      %v2432 = vrot.slane %v2382, 2
      %v2433 = vsel %vm648, %v2431, %v2432
      %v2434 = vrot.slane %v2383, 2
      %v2435 = vsel %vm648, %v2432, %v2434
      %v2436 = vrot.slane %v2384, 2
      %v2437 = vrot.slane %v2385, 2
      %v2438 = vsel %vm648, %v2436, %v2437
      %v2439 = vrot.slane %v2386, 2
      %v2440 = vsel %vm648, %v2437, %v2439
      %v2441 = vrot.slane %v2387, 2
      %v2442 = vrot.slane %v2388, 2
      %v2443 = vsel %vm648, %v2441, %v2442
      %v2444 = vrot.slane %v2389, 2
      %v2445 = vsel %vm648, %v2442, %v2444
      %v2446 = vrot.slane %v2390, 2
      %v2447 = vrot.slane %v2391, 2
      %v2448 = vsel %vm648, %v2446, %v2447
      %v2449 = vrot.slane %v2392, 2
      %v2450 = vsel %vm648, %v2447, %v2449
      %v2451 = vrot.slane %v2393, 2
      %v2452 = vrot.slane %v2394, 2
      %v2453 = vsel %vm648, %v2451, %v2452
      %v2454 = vrot.slane %v2395, 2
      %v2455 = vsel %vm648, %v2452, %v2454
      %v2456 = vrot.slane %v2396, 2
      %v2457 = vrot.slane %v2397, 2
      %v2458 = vsel %vm648, %v2456, %v2457
      %v2459 = vrot.slane %v2398, 2
      %v2460 = vsel %vm648, %v2457, %v2459
      %v2461 = vrot.slane %v2399, 2
      %v2462 = vrot.slane %v2400, 2
      %v2463 = vsel %vm648, %v2461, %v2462
      %v2464 = vrot.slane %v2401, 2
      %v2465 = vsel %vm648, %v2462, %v2464
      %v2482 = vadd.f32 %v2358, %v2428
      %v2483 = vadd.f32 %v2359, %v2430
      %v2484 = vadd.f32 %v2360, %v2433
      %v2485 = vadd.f32 %v2361, %v2435
      %v2486 = vadd.f32 %v2362, %v2438
      %v2487 = vadd.f32 %v2363, %v2440
      %v2488 = vadd.f32 %v2364, %v2443
      %v2489 = vadd.f32 %v2365, %v2445
      %v2490 = vadd.f32 %v2366, %v2448
      %v2491 = vadd.f32 %v2367, %v2450
      %v2492 = vadd.f32 %v2368, %v2453
      %v2493 = vadd.f32 %v2369, %v2455
      %v2494 = vadd.f32 %v2370, %v2458
      %v2495 = vadd.f32 %v2371, %v2460
      %v2496 = vadd.f32 %v2372, %v2463
      %v2497 = vadd.f32 %v2373, %v2465
      %s2498 = scalar_lea.vmem [#allocation2], 12
      %v2499 = vld [vmem:[%s2498] sm:$0xf]
      %v2500 = vld [vmem:[%s2498 + $0x4] sm:$0xf]
      %v2501 = vld [vmem:[%s2498 + $0x8] sm:$0x1]
      %v2502 = vld [vmem:[%s2498 + $0xc] sm:$0xf]
      %v2503 = vld [vmem:[%s2498 + $0x10] sm:$0xf]
      %v2504 = vld [vmem:[%s2498 + $0x14] sm:$0x1]
      %v2505 = vld [vmem:[%s2498 + $0x18] sm:$0xf]
      %v2506 = vld [vmem:[%s2498 + $0x1c] sm:$0xf]
      %v2507 = vld [vmem:[%s2498 + $0x20] sm:$0x1]
      %v2508 = vld [vmem:[%s2498 + $0x24] sm:$0xf]
      %v2509 = vld [vmem:[%s2498 + $0x28] sm:$0xf]
      %v2510 = vld [vmem:[%s2498 + $0x2c] sm:$0x1]
      %v2511 = vld [vmem:[%s2498 + $0x30] sm:$0xf]
      %v2512 = vld [vmem:[%s2498 + $0x34] sm:$0xf]
      %v2513 = vld [vmem:[%s2498 + $0x38] sm:$0x1]
      %v2514 = vld [vmem:[%s2498 + $0x3c] sm:$0xf]
      %v2515 = vld [vmem:[%s2498 + $0x40] sm:$0xf]
      %v2516 = vld [vmem:[%s2498 + $0x44] sm:$0x1]
      %v2517 = vld [vmem:[%s2498 + $0x48] sm:$0xf]
      %v2518 = vld [vmem:[%s2498 + $0x4c] sm:$0xf]
      %v2519 = vld [vmem:[%s2498 + $0x50] sm:$0x1]
      %v2520 = vld [vmem:[%s2498 + $0x54] sm:$0xf]
      %v2521 = vld [vmem:[%s2498 + $0x58] sm:$0xf]
      %v2522 = vld [vmem:[%s2498 + $0x5c] sm:$0x1]
      %v2523 = vunpack.c.l.bf16 %v2499
      %v2524 = vunpack.c.l.bf16 %v2500
      %v2525 = vunpack.c.l.bf16 %v2501
      %v2526 = vunpack.c.l.bf16 %v2502
      %v2527 = vunpack.c.l.bf16 %v2503
      %v2528 = vunpack.c.l.bf16 %v2504
      %v2529 = vunpack.c.l.bf16 %v2505
      %v2530 = vunpack.c.l.bf16 %v2506
      %v2531 = vunpack.c.l.bf16 %v2507
      %v2532 = vunpack.c.l.bf16 %v2508
      %v2533 = vunpack.c.l.bf16 %v2509
      %v2534 = vunpack.c.l.bf16 %v2510
      %v2535 = vunpack.c.l.bf16 %v2511
      %v2536 = vunpack.c.l.bf16 %v2512
      %v2537 = vunpack.c.l.bf16 %v2513
      %v2538 = vunpack.c.l.bf16 %v2514
      %v2539 = vunpack.c.l.bf16 %v2515
      %v2540 = vunpack.c.l.bf16 %v2516
      %v2541 = vunpack.c.l.bf16 %v2517
      %v2542 = vunpack.c.l.bf16 %v2518
      %v2543 = vunpack.c.l.bf16 %v2519
      %v2544 = vunpack.c.l.bf16 %v2520
      %v2545 = vunpack.c.l.bf16 %v2521
      %v2546 = vunpack.c.l.bf16 %v2522
      %v2547 = vlaneseq
      %v2548 = vshrl.u32 %v2547, 7
      %v2549 = vsub.s32 3, %v2548
      %v2550 = vrot.slane %v2180, %v2549
      %v2551 = vmul.f32 %v2523, %v2550
      %v2552 = vmul.f32 %v2524, %v2550
      %v2553 = vmul.f32 %v2526, %v2550
      %v2554 = vmul.f32 %v2527, %v2550
      %v2555 = vmul.f32 %v2529, %v2550
      %v2556 = vmul.f32 %v2530, %v2550
      %v2557 = vmul.f32 %v2532, %v2550
      %v2558 = vmul.f32 %v2533, %v2550
      %v2559 = vmul.f32 %v2535, %v2550
      %v2560 = vmul.f32 %v2536, %v2550
      %v2561 = vmul.f32 %v2538, %v2550
      %v2562 = vmul.f32 %v2539, %v2550
      %v2563 = vmul.f32 %v2541, %v2550
      %v2564 = vmul.f32 %v2542, %v2550
      %v2565 = vmul.f32 %v2544, %v2550
      %v2566 = vmul.f32 %v2545, %v2550
      %v2567 = vadd.f32 %v2482, %v2551
      %v2568 = vadd.f32 %v2483, %v2552
      %v2569 = vadd.f32 %v2484, %v2553
      %v2570 = vadd.f32 %v2485, %v2554
      %v2571 = vadd.f32 %v2486, %v2555
      %v2572 = vadd.f32 %v2487, %v2556
      %v2573 = vadd.f32 %v2488, %v2557
      %v2574 = vadd.f32 %v2489, %v2558
      %v2575 = vadd.f32 %v2490, %v2559
      %v2576 = vadd.f32 %v2491, %v2560
      %v2577 = vadd.f32 %v2492, %v2561
      %v2578 = vadd.f32 %v2493, %v2562
      %v2579 = vadd.f32 %v2494, %v2563
      %v2580 = vadd.f32 %v2495, %v2564
      %v2581 = vadd.f32 %v2496, %v2565
      %v2582 = vadd.f32 %v2497, %v2566
      %v2583 = vlaneseq
      %v2584 = vshrl.u32 %v2583, 7
      %v2585 = vsub.s32 4, %v2584
      %v2586 = vrot.slane %v2180, %v2585
      %v2587 = vmul.f32 %v2523, %v2586
      %v2588 = vmul.f32 %v2524, %v2586
      %v2589 = vmul.f32 %v2525, %v2586
      %v2590 = vmul.f32 %v2526, %v2586
      %v2591 = vmul.f32 %v2527, %v2586
      %v2592 = vmul.f32 %v2528, %v2586
      %v2593 = vmul.f32 %v2529, %v2586
      %v2594 = vmul.f32 %v2530, %v2586
      %v2595 = vmul.f32 %v2531, %v2586
      %v2596 = vmul.f32 %v2532, %v2586
      %v2597 = vmul.f32 %v2533, %v2586
      %v2598 = vmul.f32 %v2534, %v2586
      %v2599 = vmul.f32 %v2535, %v2586
      %v2600 = vmul.f32 %v2536, %v2586
      %v2601 = vmul.f32 %v2537, %v2586
      %v2602 = vmul.f32 %v2538, %v2586
      %v2603 = vmul.f32 %v2539, %v2586
      %v2604 = vmul.f32 %v2540, %v2586
      %v2605 = vmul.f32 %v2541, %v2586
      %v2606 = vmul.f32 %v2542, %v2586
      %v2607 = vmul.f32 %v2543, %v2586
      %v2608 = vmul.f32 %v2544, %v2586
      %v2609 = vmul.f32 %v2545, %v2586
      %v2610 = vmul.f32 %v2546, %v2586
      %v2635 = vrot.slane %v2587, 1
      %v2636 = vrot.slane %v2588, 1
      %v2637 = vsel %vm493, %v2635, %v2636
      %v2638 = vrot.slane %v2589, 1
      %v2639 = vsel %vm493, %v2636, %v2638
      %v2640 = vrot.slane %v2590, 1
      %v2641 = vrot.slane %v2591, 1
      %v2642 = vsel %vm493, %v2640, %v2641
      %v2643 = vrot.slane %v2592, 1
      %v2644 = vsel %vm493, %v2641, %v2643
      %v2645 = vrot.slane %v2593, 1
      %v2646 = vrot.slane %v2594, 1
      %v2647 = vsel %vm493, %v2645, %v2646
      %v2648 = vrot.slane %v2595, 1
      %v2649 = vsel %vm493, %v2646, %v2648
      %v2650 = vrot.slane %v2596, 1
      %v2651 = vrot.slane %v2597, 1
      %v2652 = vsel %vm493, %v2650, %v2651
      %v2653 = vrot.slane %v2598, 1
      %v2654 = vsel %vm493, %v2651, %v2653
      %v2655 = vrot.slane %v2599, 1
      %v2656 = vrot.slane %v2600, 1
      %v2657 = vsel %vm493, %v2655, %v2656
      %v2658 = vrot.slane %v2601, 1
      %v2659 = vsel %vm493, %v2656, %v2658
      %v2660 = vrot.slane %v2602, 1
      %v2661 = vrot.slane %v2603, 1
      %v2662 = vsel %vm493, %v2660, %v2661
      %v2663 = vrot.slane %v2604, 1
      %v2664 = vsel %vm493, %v2661, %v2663
      %v2665 = vrot.slane %v2605, 1
      %v2666 = vrot.slane %v2606, 1
      %v2667 = vsel %vm493, %v2665, %v2666
      %v2668 = vrot.slane %v2607, 1
      %v2669 = vsel %vm493, %v2666, %v2668
      %v2670 = vrot.slane %v2608, 1
      %v2671 = vrot.slane %v2609, 1
      %v2672 = vsel %vm493, %v2670, %v2671
      %v2673 = vrot.slane %v2610, 1
      %v2674 = vsel %vm493, %v2671, %v2673
      %v2691 = vadd.f32 %v2567, %v2637
      %v2692 = vadd.f32 %v2568, %v2639
      %v2693 = vadd.f32 %v2569, %v2642
      %v2694 = vadd.f32 %v2570, %v2644
      %v2695 = vadd.f32 %v2571, %v2647
      %v2696 = vadd.f32 %v2572, %v2649
      %v2697 = vadd.f32 %v2573, %v2652
      %v2698 = vadd.f32 %v2574, %v2654
      %v2699 = vadd.f32 %v2575, %v2657
      %v2700 = vadd.f32 %v2576, %v2659
      %v2701 = vadd.f32 %v2577, %v2662
      %v2702 = vadd.f32 %v2578, %v2664
      %v2703 = vadd.f32 %v2579, %v2667
      %v2704 = vadd.f32 %v2580, %v2669
      %v2705 = vadd.f32 %v2581, %v2672
      %v2706 = vadd.f32 %v2582, %v2674
      %v2707 = vlaneseq
      %v2708 = vshrl.u32 %v2707, 7
      %v2709 = vsub.s32 5, %v2708
      %v2710 = vrot.slane %v2180, %v2709
      %v2711 = vmul.f32 %v2523, %v2710
      %v2712 = vmul.f32 %v2524, %v2710
      %v2713 = vmul.f32 %v2525, %v2710
      %v2714 = vmul.f32 %v2526, %v2710
      %v2715 = vmul.f32 %v2527, %v2710
      %v2716 = vmul.f32 %v2528, %v2710
      %v2717 = vmul.f32 %v2529, %v2710
      %v2718 = vmul.f32 %v2530, %v2710
      %v2719 = vmul.f32 %v2531, %v2710
      %v2720 = vmul.f32 %v2532, %v2710
      %v2721 = vmul.f32 %v2533, %v2710
      %v2722 = vmul.f32 %v2534, %v2710
      %v2723 = vmul.f32 %v2535, %v2710
      %v2724 = vmul.f32 %v2536, %v2710
      %v2725 = vmul.f32 %v2537, %v2710
      %v2726 = vmul.f32 %v2538, %v2710
      %v2727 = vmul.f32 %v2539, %v2710
      %v2728 = vmul.f32 %v2540, %v2710
      %v2729 = vmul.f32 %v2541, %v2710
      %v2730 = vmul.f32 %v2542, %v2710
      %v2731 = vmul.f32 %v2543, %v2710
      %v2732 = vmul.f32 %v2544, %v2710
      %v2733 = vmul.f32 %v2545, %v2710
      %v2734 = vmul.f32 %v2546, %v2710
      %v2759 = vrot.slane %v2711, 2
      %v2760 = vrot.slane %v2712, 2
      %v2761 = vsel %vm648, %v2759, %v2760
      %v2762 = vrot.slane %v2713, 2
      %v2763 = vsel %vm648, %v2760, %v2762
      %v2764 = vrot.slane %v2714, 2
      %v2765 = vrot.slane %v2715, 2
      %v2766 = vsel %vm648, %v2764, %v2765
      %v2767 = vrot.slane %v2716, 2
      %v2768 = vsel %vm648, %v2765, %v2767
      %v2769 = vrot.slane %v2717, 2
      %v2770 = vrot.slane %v2718, 2
      %v2771 = vsel %vm648, %v2769, %v2770
      %v2772 = vrot.slane %v2719, 2
      %v2773 = vsel %vm648, %v2770, %v2772
      %v2774 = vrot.slane %v2720, 2
      %v2775 = vrot.slane %v2721, 2
      %v2776 = vsel %vm648, %v2774, %v2775
      %v2777 = vrot.slane %v2722, 2
      %v2778 = vsel %vm648, %v2775, %v2777
      %v2779 = vrot.slane %v2723, 2
      %v2780 = vrot.slane %v2724, 2
      %v2781 = vsel %vm648, %v2779, %v2780
      %v2782 = vrot.slane %v2725, 2
      %v2783 = vsel %vm648, %v2780, %v2782
      %v2784 = vrot.slane %v2726, 2
      %v2785 = vrot.slane %v2727, 2
      %v2786 = vsel %vm648, %v2784, %v2785
      %v2787 = vrot.slane %v2728, 2
      %v2788 = vsel %vm648, %v2785, %v2787
      %v2789 = vrot.slane %v2729, 2
      %v2790 = vrot.slane %v2730, 2
      %v2791 = vsel %vm648, %v2789, %v2790
      %v2792 = vrot.slane %v2731, 2
      %v2793 = vsel %vm648, %v2790, %v2792
      %v2794 = vrot.slane %v2732, 2
      %v2795 = vrot.slane %v2733, 2
      %v2796 = vsel %vm648, %v2794, %v2795
      %v2797 = vrot.slane %v2734, 2
      %v2798 = vsel %vm648, %v2795, %v2797
      %v2815 = vadd.f32 %v2691, %v2761
      %v2816 = vadd.f32 %v2692, %v2763
      %v2817 = vadd.f32 %v2693, %v2766
      %v2818 = vadd.f32 %v2694, %v2768
      %v2819 = vadd.f32 %v2695, %v2771
      %v2820 = vadd.f32 %v2696, %v2773
      %v2821 = vadd.f32 %v2697, %v2776
      %v2822 = vadd.f32 %v2698, %v2778
      %v2823 = vadd.f32 %v2699, %v2781
      %v2824 = vadd.f32 %v2700, %v2783
      %v2825 = vadd.f32 %v2701, %v2786
      %v2826 = vadd.f32 %v2702, %v2788
      %v2827 = vadd.f32 %v2703, %v2791
      %v2828 = vadd.f32 %v2704, %v2793
      %v2829 = vadd.f32 %v2705, %v2796
      %v2830 = vadd.f32 %v2706, %v2798
      %s2831 = scalar_lea.vmem [#allocation2], 24
      %v2832 = vld [vmem:[%s2831] sm:$0xf]
      %v2833 = vld [vmem:[%s2831 + $0x4] sm:$0xf]
      %v2834 = vld [vmem:[%s2831 + $0x8] sm:$0x1]
      %v2835 = vld [vmem:[%s2831 + $0xc] sm:$0xf]
      %v2836 = vld [vmem:[%s2831 + $0x10] sm:$0xf]
      %v2837 = vld [vmem:[%s2831 + $0x14] sm:$0x1]
      %v2838 = vld [vmem:[%s2831 + $0x18] sm:$0xf]
      %v2839 = vld [vmem:[%s2831 + $0x1c] sm:$0xf]
      %v2840 = vld [vmem:[%s2831 + $0x20] sm:$0x1]
      %v2841 = vld [vmem:[%s2831 + $0x24] sm:$0xf]
      %v2842 = vld [vmem:[%s2831 + $0x28] sm:$0xf]
      %v2843 = vld [vmem:[%s2831 + $0x2c] sm:$0x1]
      %v2844 = vld [vmem:[%s2831 + $0x30] sm:$0xf]
      %v2845 = vld [vmem:[%s2831 + $0x34] sm:$0xf]
      %v2846 = vld [vmem:[%s2831 + $0x38] sm:$0x1]
      %v2847 = vld [vmem:[%s2831 + $0x3c] sm:$0xf]
      %v2848 = vld [vmem:[%s2831 + $0x40] sm:$0xf]
      %v2849 = vld [vmem:[%s2831 + $0x44] sm:$0x1]
      %v2850 = vld [vmem:[%s2831 + $0x48] sm:$0xf]
      %v2851 = vld [vmem:[%s2831 + $0x4c] sm:$0xf]
      %v2852 = vld [vmem:[%s2831 + $0x50] sm:$0x1]
      %v2853 = vld [vmem:[%s2831 + $0x54] sm:$0xf]
      %v2854 = vld [vmem:[%s2831 + $0x58] sm:$0xf]
      %v2855 = vld [vmem:[%s2831 + $0x5c] sm:$0x1]
      %v2856 = vunpack.c.l.bf16 %v2832
      %v2857 = vunpack.c.l.bf16 %v2833
      %v2858 = vunpack.c.l.bf16 %v2834
      %v2859 = vunpack.c.l.bf16 %v2835
      %v2860 = vunpack.c.l.bf16 %v2836
      %v2861 = vunpack.c.l.bf16 %v2837
      %v2862 = vunpack.c.l.bf16 %v2838
      %v2863 = vunpack.c.l.bf16 %v2839
      %v2864 = vunpack.c.l.bf16 %v2840
      %v2865 = vunpack.c.l.bf16 %v2841
      %v2866 = vunpack.c.l.bf16 %v2842
      %v2867 = vunpack.c.l.bf16 %v2843
      %v2868 = vunpack.c.l.bf16 %v2844
      %v2869 = vunpack.c.l.bf16 %v2845
      %v2870 = vunpack.c.l.bf16 %v2846
      %v2871 = vunpack.c.l.bf16 %v2847
      %v2872 = vunpack.c.l.bf16 %v2848
      %v2873 = vunpack.c.l.bf16 %v2849
      %v2874 = vunpack.c.l.bf16 %v2850
      %v2875 = vunpack.c.l.bf16 %v2851
      %v2876 = vunpack.c.l.bf16 %v2852
      %v2877 = vunpack.c.l.bf16 %v2853
      %v2878 = vunpack.c.l.bf16 %v2854
      %v2879 = vunpack.c.l.bf16 %v2855
      %v2880 = vlaneseq
      %v2881 = vshrl.u32 %v2880, 7
      %v2882 = vsub.s32 6, %v2881
      %v2883 = vrot.slane %v2180, %v2882
      %v2884 = vmul.f32 %v2856, %v2883
      %v2885 = vmul.f32 %v2857, %v2883
      %v2886 = vmul.f32 %v2859, %v2883
      %v2887 = vmul.f32 %v2860, %v2883
      %v2888 = vmul.f32 %v2862, %v2883
      %v2889 = vmul.f32 %v2863, %v2883
      %v2890 = vmul.f32 %v2865, %v2883
      %v2891 = vmul.f32 %v2866, %v2883
      %v2892 = vmul.f32 %v2868, %v2883
      %v2893 = vmul.f32 %v2869, %v2883
      %v2894 = vmul.f32 %v2871, %v2883
      %v2895 = vmul.f32 %v2872, %v2883
      %v2896 = vmul.f32 %v2874, %v2883
      %v2897 = vmul.f32 %v2875, %v2883
      %v2898 = vmul.f32 %v2877, %v2883
      %v2899 = vmul.f32 %v2878, %v2883
      %v2900 = vadd.f32 %v2815, %v2884
      %v2901 = vadd.f32 %v2816, %v2885
      %v2902 = vadd.f32 %v2817, %v2886
      %v2903 = vadd.f32 %v2818, %v2887
      %v2904 = vadd.f32 %v2819, %v2888
      %v2905 = vadd.f32 %v2820, %v2889
      %v2906 = vadd.f32 %v2821, %v2890
      %v2907 = vadd.f32 %v2822, %v2891
      %v2908 = vadd.f32 %v2823, %v2892
      %v2909 = vadd.f32 %v2824, %v2893
      %v2910 = vadd.f32 %v2825, %v2894
      %v2911 = vadd.f32 %v2826, %v2895
      %v2912 = vadd.f32 %v2827, %v2896
      %v2913 = vadd.f32 %v2828, %v2897
      %v2914 = vadd.f32 %v2829, %v2898
      %v2915 = vadd.f32 %v2830, %v2899
      %v2916 = vlaneseq
      %v2917 = vshrl.u32 %v2916, 7
      %v2918 = vsub.s32 7, %v2917
      %v2919 = vrot.slane %v2180, %v2918
      %v2920 = vmul.f32 %v2856, %v2919
      %v2921 = vmul.f32 %v2857, %v2919
      %v2922 = vmul.f32 %v2858, %v2919
      %v2923 = vmul.f32 %v2859, %v2919
      %v2924 = vmul.f32 %v2860, %v2919
      %v2925 = vmul.f32 %v2861, %v2919
      %v2926 = vmul.f32 %v2862, %v2919
      %v2927 = vmul.f32 %v2863, %v2919
      %v2928 = vmul.f32 %v2864, %v2919
      %v2929 = vmul.f32 %v2865, %v2919
      %v2930 = vmul.f32 %v2866, %v2919
      %v2931 = vmul.f32 %v2867, %v2919
      %v2932 = vmul.f32 %v2868, %v2919
      %v2933 = vmul.f32 %v2869, %v2919
      %v2934 = vmul.f32 %v2870, %v2919
      %v2935 = vmul.f32 %v2871, %v2919
      %v2936 = vmul.f32 %v2872, %v2919
      %v2937 = vmul.f32 %v2873, %v2919
      %v2938 = vmul.f32 %v2874, %v2919
      %v2939 = vmul.f32 %v2875, %v2919
      %v2940 = vmul.f32 %v2876, %v2919
      %v2941 = vmul.f32 %v2877, %v2919
      %v2942 = vmul.f32 %v2878, %v2919
      %v2943 = vmul.f32 %v2879, %v2919
      %v2968 = vrot.slane %v2920, 1
      %v2969 = vrot.slane %v2921, 1
      %v2970 = vsel %vm493, %v2968, %v2969
      %v2971 = vrot.slane %v2922, 1
      %v2972 = vsel %vm493, %v2969, %v2971
      %v2973 = vrot.slane %v2923, 1
      %v2974 = vrot.slane %v2924, 1
      %v2975 = vsel %vm493, %v2973, %v2974
      %v2976 = vrot.slane %v2925, 1
      %v2977 = vsel %vm493, %v2974, %v2976
      %v2978 = vrot.slane %v2926, 1
      %v2979 = vrot.slane %v2927, 1
      %v2980 = vsel %vm493, %v2978, %v2979
      %v2981 = vrot.slane %v2928, 1
      %v2982 = vsel %vm493, %v2979, %v2981
      %v2983 = vrot.slane %v2929, 1
      %v2984 = vrot.slane %v2930, 1
      %v2985 = vsel %vm493, %v2983, %v2984
      %v2986 = vrot.slane %v2931, 1
      %v2987 = vsel %vm493, %v2984, %v2986
      %v2988 = vrot.slane %v2932, 1
      %v2989 = vrot.slane %v2933, 1
      %v2990 = vsel %vm493, %v2988, %v2989
      %v2991 = vrot.slane %v2934, 1
      %v2992 = vsel %vm493, %v2989, %v2991
      %v2993 = vrot.slane %v2935, 1
      %v2994 = vrot.slane %v2936, 1
      %v2995 = vsel %vm493, %v2993, %v2994
      %v2996 = vrot.slane %v2937, 1
      %v2997 = vsel %vm493, %v2994, %v2996
      %v2998 = vrot.slane %v2938, 1
      %v2999 = vrot.slane %v2939, 1
      %v3000 = vsel %vm493, %v2998, %v2999
      %v3001 = vrot.slane %v2940, 1
      %v3002 = vsel %vm493, %v2999, %v3001
      %v3003 = vrot.slane %v2941, 1
      %v3004 = vrot.slane %v2942, 1
      %v3005 = vsel %vm493, %v3003, %v3004
      %v3006 = vrot.slane %v2943, 1
      %v3007 = vsel %vm493, %v3004, %v3006
      %v3024 = vadd.f32 %v2900, %v2970
      %v3025 = vadd.f32 %v2901, %v2972
      %v3026 = vadd.f32 %v2902, %v2975
      %v3027 = vadd.f32 %v2903, %v2977
      %v3028 = vadd.f32 %v2904, %v2980
      %v3029 = vadd.f32 %v2905, %v2982
      %v3030 = vadd.f32 %v2906, %v2985
      %v3031 = vadd.f32 %v2907, %v2987
      %v3032 = vadd.f32 %v2908, %v2990
      %v3033 = vadd.f32 %v2909, %v2992
      %v3034 = vadd.f32 %v2910, %v2995
      %v3035 = vadd.f32 %v2911, %v2997
      %v3036 = vadd.f32 %v2912, %v3000
      %v3037 = vadd.f32 %v2913, %v3002
      %v3038 = vadd.f32 %v2914, %v3005
      %v3039 = vadd.f32 %v2915, %v3007
      %v3040 = vlaneseq
      %v3041 = vshrl.u32 %v3040, 7
      %v3042 = vsub.s32 0, %v3041
      %v3043 = vrot.slane %v2181, %v3042
      %v3044 = vmul.f32 %v2856, %v3043
      %v3045 = vmul.f32 %v2857, %v3043
      %v3046 = vmul.f32 %v2858, %v3043
      %v3047 = vmul.f32 %v2859, %v3043
      %v3048 = vmul.f32 %v2860, %v3043
      %v3049 = vmul.f32 %v2861, %v3043
      %v3050 = vmul.f32 %v2862, %v3043
      %v3051 = vmul.f32 %v2863, %v3043
      %v3052 = vmul.f32 %v2864, %v3043
      %v3053 = vmul.f32 %v2865, %v3043
      %v3054 = vmul.f32 %v2866, %v3043
      %v3055 = vmul.f32 %v2867, %v3043
      %v3056 = vmul.f32 %v2868, %v3043
      %v3057 = vmul.f32 %v2869, %v3043
      %v3058 = vmul.f32 %v2870, %v3043
      %v3059 = vmul.f32 %v2871, %v3043
      %v3060 = vmul.f32 %v2872, %v3043
      %v3061 = vmul.f32 %v2873, %v3043
      %v3062 = vmul.f32 %v2874, %v3043
      %v3063 = vmul.f32 %v2875, %v3043
      %v3064 = vmul.f32 %v2876, %v3043
      %v3065 = vmul.f32 %v2877, %v3043
      %v3066 = vmul.f32 %v2878, %v3043
      %v3067 = vmul.f32 %v2879, %v3043
      %v3092 = vrot.slane %v3044, 2
      %v3093 = vrot.slane %v3045, 2
      %v3094 = vsel %vm648, %v3092, %v3093
      %v3095 = vrot.slane %v3046, 2
      %v3096 = vsel %vm648, %v3093, %v3095
      %v3097 = vrot.slane %v3047, 2
      %v3098 = vrot.slane %v3048, 2
      %v3099 = vsel %vm648, %v3097, %v3098
      %v3100 = vrot.slane %v3049, 2
      %v3101 = vsel %vm648, %v3098, %v3100
      %v3102 = vrot.slane %v3050, 2
      %v3103 = vrot.slane %v3051, 2
      %v3104 = vsel %vm648, %v3102, %v3103
      %v3105 = vrot.slane %v3052, 2
      %v3106 = vsel %vm648, %v3103, %v3105
      %v3107 = vrot.slane %v3053, 2
      %v3108 = vrot.slane %v3054, 2
      %v3109 = vsel %vm648, %v3107, %v3108
      %v3110 = vrot.slane %v3055, 2
      %v3111 = vsel %vm648, %v3108, %v3110
      %v3112 = vrot.slane %v3056, 2
      %v3113 = vrot.slane %v3057, 2
      %v3114 = vsel %vm648, %v3112, %v3113
      %v3115 = vrot.slane %v3058, 2
      %v3116 = vsel %vm648, %v3113, %v3115
      %v3117 = vrot.slane %v3059, 2
      %v3118 = vrot.slane %v3060, 2
      %v3119 = vsel %vm648, %v3117, %v3118
      %v3120 = vrot.slane %v3061, 2
      %v3121 = vsel %vm648, %v3118, %v3120
      %v3122 = vrot.slane %v3062, 2
      %v3123 = vrot.slane %v3063, 2
      %v3124 = vsel %vm648, %v3122, %v3123
      %v3125 = vrot.slane %v3064, 2
      %v3126 = vsel %vm648, %v3123, %v3125
      %v3127 = vrot.slane %v3065, 2
      %v3128 = vrot.slane %v3066, 2
      %v3129 = vsel %vm648, %v3127, %v3128
      %v3130 = vrot.slane %v3067, 2
      %v3131 = vsel %vm648, %v3128, %v3130
      %v3148 = vadd.f32 %v3024, %v3094
      %v3149 = vadd.f32 %v3025, %v3096
      %v3150 = vadd.f32 %v3026, %v3099
      %v3151 = vadd.f32 %v3027, %v3101
      %v3152 = vadd.f32 %v3028, %v3104
      %v3153 = vadd.f32 %v3029, %v3106
      %v3154 = vadd.f32 %v3030, %v3109
      %v3155 = vadd.f32 %v3031, %v3111
      %v3156 = vadd.f32 %v3032, %v3114
      %v3157 = vadd.f32 %v3033, %v3116
      %v3158 = vadd.f32 %v3034, %v3119
      %v3159 = vadd.f32 %v3035, %v3121
      %v3160 = vadd.f32 %v3036, %v3124
      %v3161 = vadd.f32 %v3037, %v3126
      %v3162 = vadd.f32 %v3038, %v3129
      %v3163 = vadd.f32 %v3039, %v3131
      %v3164 = vpack.c.bf16 %v3149, %v3148
      %v3165 = vpack.c.bf16 %v3151, %v3150
      %v3166 = vpack.c.bf16 %v3153, %v3152
      %v3167 = vpack.c.bf16 %v3155, %v3154
      %v3168 = vpack.c.bf16 %v3157, %v3156
      %v3169 = vpack.c.bf16 %v3159, %v3158
      %v3170 = vpack.c.bf16 %v3161, %v3160
      %v3171 = vpack.c.bf16 %v3163, %v3162
      %v3172 = vld [vmem:[%s6] sm:$0xf]
      %v3173 = vld [vmem:[%s6 + $0x4] sm:$0xf]
      %v3174 = vld [vmem:[%s6 + $0x8] sm:$0xf]
      %v3175 = vld [vmem:[%s6 + $0xc] sm:$0xf]
      %v3176 = vld [vmem:[%s6 + $0x10] sm:$0xf]
      %v3177 = vld [vmem:[%s6 + $0x14] sm:$0xf]
      %v3178 = vld [vmem:[%s6 + $0x18] sm:$0xf]
      %v3179 = vld [vmem:[%s6 + $0x1c] sm:$0xf]
      %v3180 = vld [vmem:[%s6 + $0x20] sm:$0xf]
      %v3181 = vld [vmem:[%s6 + $0x24] sm:$0xf]
      %v3182 = vld [vmem:[%s6 + $0x28] sm:$0xf]
      %v3183 = vld [vmem:[%s6 + $0x2c] sm:$0xf]
      %v3184 = vld [vmem:[%s6 + $0x30] sm:$0xf]
      %v3185 = vld [vmem:[%s6 + $0x34] sm:$0xf]
      %v3186 = vld [vmem:[%s6 + $0x38] sm:$0xf]
      %v3187 = vld [vmem:[%s6 + $0x3c] sm:$0xf]
      %v3204 = vunpack.c.l.b16 %v3172
      %v3205 = vunpack.c.l.b16 %v3173
      %v3206 = vunpack.c.l.b16 %v3174
      %v3207 = vunpack.c.l.b16 %v3175
      %v3208 = vunpack.c.l.b16 %v3176
      %v3209 = vunpack.c.l.b16 %v3177
      %v3210 = vunpack.c.l.b16 %v3178
      %v3211 = vunpack.c.l.b16 %v3179
      %v3212 = vunpack.c.l.b16 %v3180
      %v3213 = vunpack.c.l.b16 %v3181
      %v3214 = vunpack.c.l.b16 %v3182
      %v3215 = vunpack.c.l.b16 %v3183
      %v3216 = vunpack.c.l.b16 %v3184
      %v3217 = vunpack.c.l.b16 %v3185
      %v3218 = vunpack.c.l.b16 %v3186
      %v3219 = vunpack.c.l.b16 %v3187
      %v3220 = vpack.c.b16 %v3205, %v3204
      %v3221 = vpack.c.b16 %v3207, %v3206
      %v3222 = vpack.c.b16 %v3209, %v3208
      %v3223 = vpack.c.b16 %v3211, %v3210
      %v3224 = vpack.c.b16 %v3213, %v3212
      %v3225 = vpack.c.b16 %v3215, %v3214
      %v3226 = vpack.c.b16 %v3217, %v3216
      %v3227 = vpack.c.b16 %v3219, %v3218
      %3236 = vmatprep.subr.bf16.mxu0 0
      %3237 = vmatpush1.bf16.msra.mxu0 %v3220
      %3238 = vmatprep.subr.bf16.mxu0 0
      %3239 = vmatpush1.bf16.msra.mxu0 %v3221
      %3240 = vmatprep.subr.bf16.mxu0 0
      %3241 = vmatpush1.bf16.msra.mxu0 %v3222
      %3242 = vmatprep.subr.bf16.mxu0 0
      %3243 = vmatpush1.bf16.msra.mxu0 %v3223
      %3244 = vmatprep.subr.bf16.mxu0 0
      %3245 = vmatpush1.bf16.msra.mxu0 %v3224
      %3246 = vmatprep.subr.bf16.mxu0 0
      %3247 = vmatpush1.bf16.msra.mxu0 %v3225
      %3248 = vmatprep.subr.bf16.mxu0 0
      %3249 = vmatpush1.bf16.msra.mxu0 %v3226
      %3250 = vmatprep.subr.bf16.mxu0 0
      %3251 = vmatpush1.bf16.msra.mxu0 %v3227
      %3252 = vmatprep.subr.bf16.mxu0 0
      %3253 = vmatpush1.bf16.msra.mxu0 0
      %3254 = vmatprep.subr.bf16.mxu0 0
      %3255 = vmatpush1.bf16.msra.mxu0 0
      %3256 = vmatprep.subr.bf16.mxu0 0
      %3257 = vmatpush1.bf16.msra.mxu0 0
      %3258 = vmatprep.subr.bf16.mxu0 0
      %3259 = vmatpush1.bf16.msra.mxu0 0
      %3260 = vmatprep.subr.bf16.mxu0 0
      %3261 = vmatpush1.bf16.msra.mxu0 0
      %3262 = vmatprep.subr.bf16.mxu0 0
      %3263 = vmatpush1.bf16.msra.mxu0 0
      %3264 = vmatprep.subr.bf16.mxu0 0
      %3265 = vmatpush1.bf16.msra.mxu0 0
      %3266 = vmatprep.subr.bf16.mxu0 0
      %3267 = vmatpush1.bf16.msra.mxu0 0
      %3268 = vmatprep.mubr.bf16.mxu0 0
      %3269 = vmatmul.mubr.bf16.gmra.mrb[0].mxu0 %v3164
      %v3270 = vpop.f32.mrb[0].mxu0
      %v3271 = vadd.f32 0.0, %v3270
      %v3272 = vpop.f32.mrb[0].mxu0
      %v3273 = vpop.f32.mrb[0].mxu0
      %v3274 = vadd.f32 0.0, %v3273
      %v3275 = vpop.f32.mrb[0].mxu0
      %3276 = vmatprep.mubr.bf16.mxu0 0
      %3277 = vmatmul.mubr.bf16.gmra.mrb[0].mxu0 %v3165
      %v3278 = vpop.f32.mrb[0].mxu0
      %v3279 = vadd.f32 0.0, %v3278
      %v3280 = vpop.f32.mrb[0].mxu0
      %v3281 = vpop.f32.mrb[0].mxu0
      %v3282 = vadd.f32 0.0, %v3281
      %v3283 = vpop.f32.mrb[0].mxu0
      %3284 = vmatprep.mubr.bf16.mxu0 0
      %3285 = vmatmul.mubr.bf16.gmra.mrb[0].mxu0 %v3166
      %v3286 = vpop.f32.mrb[0].mxu0
      %v3287 = vadd.f32 0.0, %v3286
      %v3288 = vpop.f32.mrb[0].mxu0
      %v3289 = vpop.f32.mrb[0].mxu0
      %v3290 = vadd.f32 0.0, %v3289
      %v3291 = vpop.f32.mrb[0].mxu0
      %3292 = vmatprep.mubr.bf16.mxu0 0
      %3293 = vmatmul.mubr.bf16.gmra.mrb[0].mxu0 %v3167
      %v3294 = vpop.f32.mrb[0].mxu0
      %v3295 = vadd.f32 0.0, %v3294
      %v3296 = vpop.f32.mrb[0].mxu0
      %v3297 = vpop.f32.mrb[0].mxu0
      %v3298 = vadd.f32 0.0, %v3297
      %v3299 = vpop.f32.mrb[0].mxu0
      %3300 = vmatprep.mubr.bf16.mxu0 0
      %3301 = vmatmul.mubr.bf16.gmra.mrb[0].mxu0 %v3168
      %v3302 = vpop.f32.mrb[0].mxu0
      %v3303 = vadd.f32 0.0, %v3302
      %v3304 = vpop.f32.mrb[0].mxu0
      %v3305 = vpop.f32.mrb[0].mxu0
      %v3306 = vadd.f32 0.0, %v3305
      %v3307 = vpop.f32.mrb[0].mxu0
      %3308 = vmatprep.mubr.bf16.mxu0 0
      %3309 = vmatmul.mubr.bf16.gmra.mrb[0].mxu0 %v3169
      %v3310 = vpop.f32.mrb[0].mxu0
      %v3311 = vadd.f32 0.0, %v3310
      %v3312 = vpop.f32.mrb[0].mxu0
      %v3313 = vpop.f32.mrb[0].mxu0
      %v3314 = vadd.f32 0.0, %v3313
      %v3315 = vpop.f32.mrb[0].mxu0
      %3316 = vmatprep.mubr.bf16.mxu0 0
      %3317 = vmatmul.mubr.bf16.gmra.mrb[0].mxu0 %v3170
      %v3318 = vpop.f32.mrb[0].mxu0
      %v3319 = vadd.f32 0.0, %v3318
      %v3320 = vpop.f32.mrb[0].mxu0
      %v3321 = vpop.f32.mrb[0].mxu0
      %v3322 = vadd.f32 0.0, %v3321
      %v3323 = vpop.f32.mrb[0].mxu0
      %3324 = vmatprep.mubr.bf16.mxu0 0
      %3325 = vmatmul.mubr.bf16.gmra.mrb[0].mxu0 %v3171
      %v3326 = vpop.f32.mrb[0].mxu0
      %v3327 = vadd.f32 0.0, %v3326
      %v3328 = vpop.f32.mrb[0].mxu0
      %v3329 = vpop.f32.mrb[0].mxu0
      %v3330 = vadd.f32 0.0, %v3329
      %v3331 = vpop.f32.mrb[0].mxu0
      %3332 = vdwg.mxu0
      %v3333 = vld [vmem:[%s7] sm:$0x1]
      %v3335 = vlaneseq
      %v3336 = vshrl.u32 %v3335, 7
      %v3337 = vsub.s32 0, %v3336
      %v3338 = vrot.slane %v3333, %v3337
      %v3340 = vmul.f32 %v3271, %v3338
      %v3341 = vmul.f32 %v3274, %v3338
      %v3342 = vmul.f32 %v3279, %v3338
      %v3343 = vmul.f32 %v3282, %v3338
      %v3344 = vmul.f32 %v3287, %v3338
      %v3345 = vmul.f32 %v3290, %v3338
      %v3346 = vmul.f32 %v3295, %v3338
      %v3347 = vmul.f32 %v3298, %v3338
      %v3348 = vmul.f32 %v3303, %v3338
      %v3349 = vmul.f32 %v3306, %v3338
      %v3350 = vmul.f32 %v3311, %v3338
      %v3351 = vmul.f32 %v3314, %v3338
      %v3352 = vmul.f32 %v3319, %v3338
      %v3353 = vmul.f32 %v3322, %v3338
      %v3354 = vmul.f32 %v3327, %v3338
      %v3355 = vmul.f32 %v3330, %v3338
      %v3356 = vld [vmem:[%s8] sm:$0x1]
      %v3358 = vlaneseq
      %v3359 = vshrl.u32 %v3358, 7
      %v3360 = vsub.s32 0, %v3359
      %v3361 = vrot.slane %v3356, %v3360
      %v3363 = vadd.f32 %v3340, %v3361
      %v3364 = vadd.f32 %v3341, %v3361
      %v3365 = vadd.f32 %v3342, %v3361
      %v3366 = vadd.f32 %v3343, %v3361
      %v3367 = vadd.f32 %v3344, %v3361
      %v3368 = vadd.f32 %v3345, %v3361
      %v3369 = vadd.f32 %v3346, %v3361
      %v3370 = vadd.f32 %v3347, %v3361
      %v3371 = vadd.f32 %v3348, %v3361
      %v3372 = vadd.f32 %v3349, %v3361
      %v3373 = vadd.f32 %v3350, %v3361
      %v3374 = vadd.f32 %v3351, %v3361
      %v3375 = vadd.f32 %v3352, %v3361
      %v3376 = vadd.f32 %v3353, %v3361
      %v3377 = vadd.f32 %v3354, %v3361
      %v3378 = vadd.f32 %v3355, %v3361
      %v3379 = vld [vmem:[%s1122 + $0x1] sm:$0xff]
      %v3380 = vld [vmem:[%s1122 + $0x9] sm:$0xff]
      %v3381 = vld [vmem:[%s1122 + $0x19] sm:$0xff]
      %v3382 = vld [vmem:[%s1122 + $0x21] sm:$0xff]
      %v3383 = vld [vmem:[%s1122 + $0x31] sm:$0xff]
      %v3384 = vld [vmem:[%s1122 + $0x39] sm:$0xff]
      %v3385 = vld [vmem:[%s1122 + $0x49] sm:$0xff]
      %v3386 = vld [vmem:[%s1122 + $0x51] sm:$0xff]
      %v3387 = vld [vmem:[%s1122 + $0x61] sm:$0xff]
      %v3388 = vld [vmem:[%s1122 + $0x69] sm:$0xff]
      %v3389 = vld [vmem:[%s1122 + $0x79] sm:$0xff]
      %v3390 = vld [vmem:[%s1122 + $0x81] sm:$0xff]
      %v3391 = vld [vmem:[%s1122 + $0x91] sm:$0xff]
      %v3392 = vld [vmem:[%s1122 + $0x99] sm:$0xff]
      %v3393 = vld [vmem:[%s1122 + $0xa9] sm:$0xff]
      %v3394 = vld [vmem:[%s1122 + $0xb1] sm:$0xff]
      %v3395 = vadd.f32 %v3363, %v3379
      %v3396 = vadd.f32 %v3364, %v3380
      %v3397 = vadd.f32 %v3365, %v3381
      %v3398 = vadd.f32 %v3366, %v3382
      %v3399 = vadd.f32 %v3367, %v3383
      %v3400 = vadd.f32 %v3368, %v3384
      %v3401 = vadd.f32 %v3369, %v3385
      %v3402 = vadd.f32 %v3370, %v3386
      %v3403 = vadd.f32 %v3371, %v3387
      %v3404 = vadd.f32 %v3372, %v3388
      %v3405 = vadd.f32 %v3373, %v3389
      %v3406 = vadd.f32 %v3374, %v3390
      %v3407 = vadd.f32 %v3375, %v3391
      %v3408 = vadd.f32 %v3376, %v3392
      %v3409 = vadd.f32 %v3377, %v3393
      %v3410 = vadd.f32 %v3378, %v3394
      %v3411 = vmax.f32 %v3395, 0.0
      %v3412 = vmax.f32 %v3396, 0.0
      %v3413 = vmax.f32 %v3397, 0.0
      %v3414 = vmax.f32 %v3398, 0.0
      %v3415 = vmax.f32 %v3399, 0.0
      %v3416 = vmax.f32 %v3400, 0.0
      %v3417 = vmax.f32 %v3401, 0.0
      %v3418 = vmax.f32 %v3402, 0.0
      %v3419 = vmax.f32 %v3403, 0.0
      %v3420 = vmax.f32 %v3404, 0.0
      %v3421 = vmax.f32 %v3405, 0.0
      %v3422 = vmax.f32 %v3406, 0.0
      %v3423 = vmax.f32 %v3407, 0.0
      %v3424 = vmax.f32 %v3408, 0.0
      %v3425 = vmax.f32 %v3409, 0.0
      %v3426 = vmax.f32 %v3410, 0.0
      %3427 = vst [vmem:[%s370] sm:$0xff] %v3411
      %3428 = vst [vmem:[%s370 + $0x8] sm:$0xff] %v3412
      %3429 = vst [vmem:[%s370 + $0x10] sm:$0xff] %v3413
      %3430 = vst [vmem:[%s370 + $0x18] sm:$0xff] %v3414
      %3431 = vst [vmem:[%s370 + $0x20] sm:$0xff] %v3415
      %3432 = vst [vmem:[%s370 + $0x28] sm:$0xff] %v3416
      %3433 = vst [vmem:[%s370 + $0x30] sm:$0xff] %v3417
      %3434 = vst [vmem:[%s370 + $0x38] sm:$0xff] %v3418
      %3435 = vst [vmem:[%s370 + $0x40] sm:$0xff] %v3419
      %3436 = vst [vmem:[%s370 + $0x48] sm:$0xff] %v3420
      %3437 = vst [vmem:[%s370 + $0x50] sm:$0xff] %v3421
      %3438 = vst [vmem:[%s370 + $0x58] sm:$0xff] %v3422
      %3439 = vst [vmem:[%s370 + $0x60] sm:$0xff] %v3423
      %3440 = vst [vmem:[%s370 + $0x68] sm:$0xff] %v3424
      %3441 = vst [vmem:[%s370 + $0x70] sm:$0xff] %v3425
      %3442 = vst [vmem:[%s370 + $0x78] sm:$0xff] %v3426
      %s3443 = smul.u32 8, %s25
      %p3444 = scmp.lt.s32.totalorder %s24, 1
      %s3445 = scalar_select %p3444, %s24, 1
      %p3446 = scmp.lt.s32.totalorder %s3443, 15
      %s3447 = scalar_select %p3446, %s3443, 15
      %s3448 = smul.addr %s3447, 2
      %s3449 = smul.addr %s3445, 32
      %s3450 = sadd.s32 %s3448, %s3449
      %s3451 = smul.addr %s3450, 8
      %s3452 = scalar_lea.vmem %s9, %s3451
      // Predicated region
      $region65: #{_lambda_.1} parent=55 // pred_check
        %p3453 = pneg %p248
      $region66: #{_lambda_.1} parent=55 // pred_check_branch
        %3455 = sbr.rel (%p3453) target = $region68
      $region67: #{_lambda_.1} parent=55 // pred_region
        %s3456 = smul.u32 8, %s25
      $region68: #{_lambda_.1} parent=55 // pred_fallthru
        _
    $region56: #{_lambda_.1} parent=5 // pred_fallthru
      _
    %p3457 = scmp.le.s32.totalorder 2, %s15
    // Predicated region
    $region69: #{_lambda_.1} parent=5 // pred_check
      %p3458 = pneg %p3457
    $region70: #{_lambda_.1} parent=5 // pred_check_branch
      %3460 = sbr.rel (%p3458) target = $region72
    $region71: #{_lambda_.1} parent=5 // pred_region
      %s3461 = ssub.s32 %s15, 2
      // Predicated region
      $region73: #{_lambda_.1} parent=71 // pred_check
        %p3462 = pneg %p254
      $region74: #{_lambda_.1} parent=71 // pred_check_branch
        %3464 = sbr.rel (%p3462) target = $region76
      $region75: #{_lambda_.1} parent=71 // pred_region
        %s3465 = smul.u32 8, %s27
        %p3466 = scmp.lt.s32.totalorder %s26, 1
        %s3467 = scalar_select %p3466, %s26, 1
        %p3468 = scmp.lt.s32.totalorder %s3465, 15
        %s3469 = scalar_select %p3468, %s3465, 15
        %s3470 = smul.addr %s3469, 2
        %s3471 = smul.addr %s3467, 32
        %s3472 = sadd.s32 %s3470, %s3471
        %s3473 = smul.addr %s3472, 8
        %s3474 = scalar_lea.vmem %s9, %s3473
      $region76: #{_lambda_.1} parent=71 // pred_fallthru
        _
    $region72: #{_lambda_.1} parent=5 // pred_fallthru
      _
  $region6: #{_lambda_.1} parent=0 // loop_footer
    %s19 = sadd.s32 1, %s15
  $region7: #{_lambda_.1} parent=0 // loop_footer_branch
    %14 = sbr.rel target = $region3
  $region8: #{_lambda_.1} parent=0 // loop_exit
    _

</llo_original>
